<compile_context>
chip_gen: v6e
topology: v6e:2x2x1
jax: 0.10.0
libtpu: 0.0.40
codegen_flags: <defaults>
</compile_context>

<pallas_src>
import jax
import jax.numpy as jnp
from jax import lax
from jax.experimental import pallas as pl
from jax.experimental.pallas import tpu as pltpu


def _conv3d_aware_kernel(x_ref, uw_ref, vh_ref, ws_ref, wu_ref, wv_ref, b_ref,
                         out_ref):
    """One (batch, branch) step of the triplane-aware conv.

    x_ref  : (1, H, W, C)    bf16  dense panel of this branch
    uw_ref : (1, 1, W, C)    f32   channel group constant along H (value(w))
    vh_ref : (1, 1, H, C)    f32   channel group constant along W (value(h))
    ws_ref : (1, 3, 3C, Co)  bf16  dense-panel weights, kx folded into cin, per ky
    wu_ref : (1, 3, 3C, Co)  bf16  W-broadcast-group weights, kx folded, per ky
    wv_ref : (1, 3, 3C, Co)  bf16  H-broadcast-group weights, ky folded, per kx
    b_ref  : (1, 1, Co)      f32   bias
    out_ref: (1, H, W, Co)   f32
    """
    _, H, W, C = x_ref.shape
    Co = out_ref.shape[3]
    f32 = jnp.float32

    def mm(a, w):  # 2-D MXU matmul, bf16 operands, f32 accumulation
        return lax.dot_general(a, w, (((1,), (0,)), ((), ())),
                               preferred_element_type=f32)

    def shift_stack(a):
        # (N, C) -> (N, 3C) = [a(i-1) | a(i) | a(i+1)]  with zero at the edges
        z = jnp.zeros((1, a.shape[-1]), a.dtype)
        return jnp.concatenate(
            [jnp.concatenate([z, a[:-1]], axis=0), a,
             jnp.concatenate([a[1:], z], axis=0)], axis=-1)

    # --- broadcast channel groups: the 3x3 conv collapses to 1-D convs -------
    u = uw_ref[0, 0].astype(jnp.bfloat16)            # (W, C) value depends on w
    v = vh_ref[0, 0].astype(jnp.bfloat16)            # (H, C) value depends on h
    uk = shift_stack(u)                              # (W, 3C)  kx taps in K
    vk = shift_stack(v)                              # (H, 3C)  ky taps in K
    wu = wu_ref[0]                                   # (3, 3C, Co) per ky
    wv = wv_ref[0]                                   # (3, 3C, Co) per kx

    r0, r1, r2 = mm(uk, wu[0]), mm(uk, wu[1]), mm(uk, wu[2])   # (W, Co)
    s0, s1, s2 = mm(vk, wv[0]), mm(vk, wv[1]), mm(vk, wv[2])   # (H, Co)

    bias = b_ref[0].astype(f32)                      # (1, Co)
    base = (bias[None, :, :] + (r0 + r1 + r2)[None, :, :]
            + (s0 + s1 + s2)[:, None, :])            # (H, W, Co) f32

    # --- dense panel: 3x3 conv as 3 MXU matmuls with K = 3C -------------------
    x = x_ref[0]                                     # (H, W, C) bf16
    zc = jnp.zeros((H, 1, C), x.dtype)
    xk = jnp.concatenate(
        [jnp.concatenate([zc, x[:, :W - 1, :]], axis=1), x,
         jnp.concatenate([x[:, 1:, :], zc], axis=1)], axis=-1)   # (H, W, 3C)
    xk2 = xk.reshape(H * W, 3 * C)
    ws = ws_ref[0]                                   # (3, 3C, Co) per ky

    y1 = mm(xk2, ws[1]).reshape(H, W, Co)            # ky = 1 : no row shift
    out_ref[0] = base + y1

    # zero-padding edge corrections for the broadcast channel groups
    out_ref[0, 0:1, :, :] -= r0[None, :, :]          # top row: ky=0 tap is pad
    out_ref[0, H - 1:H, :, :] -= r2[None, :, :]      # bottom row: ky=2 tap is pad
    out_ref[0, :, 0:1, :] -= s0[:, None, :]          # left col: kx=0 tap is pad
    out_ref[0, :, W - 1:W, :] -= s2[:, None, :]      # right col: kx=2 tap is pad

    # ky = 0 / ky = 2 contributions: the row shift is a cheap leading-dim slice
    y0 = mm(xk2, ws[0]).reshape(H, W, Co)
    out_ref[0, 1:, :, :] += y0[:H - 1]
    y2 = mm(xk2, ws[2]).reshape(H, W, Co)
    out_ref[0, :H - 1, :, :] += y2[1:]


def _prepare_params(weights, biases, C, Coutp):
    """Repack (3,3,3,3C,Cout) weights into per-role, tap-folded, lane-padded bf16."""
    Cout = weights.shape[-1]
    w = weights.astype(jnp.float32)
    # channel-group index (in the torch.cat order) of each role, per branch
    self_g = (0, 1, 2)    # the branch's own dense panel
    wcast_g = (1, 0, 0)   # the group constant along H (value depends on w)
    hcast_g = (2, 2, 1)   # the group constant along W (value depends on h)

    ws_l, wu_l, wv_l = [], [], []
    for p in range(3):
        grab = lambda g: w[p, :, :, g * C:(g + 1) * C, :]       # (ky, kx, C, Cout)
        ws_l.append(grab(self_g[p]).reshape(3, 3 * C, Cout))    # fold (kx, c); per ky
        wu_l.append(grab(wcast_g[p]).reshape(3, 3 * C, Cout))   # fold (kx, c); per ky
        wv_l.append(jnp.transpose(grab(hcast_g[p]),
                                  (1, 0, 2, 3)).reshape(3, 3 * C, Cout))  # fold (ky, c); per kx

    pad = ((0, 0), (0, 0), (0, 0), (0, Coutp - Cout))
    fold = lambda lst: jnp.pad(jnp.stack(lst, 0), pad).astype(jnp.bfloat16)
    b = jnp.pad(biases.astype(jnp.float32), ((0, 0), (0, Coutp - Cout)))
    return fold(ws_l), fold(wu_l), fold(wv_l), b.reshape(3, 1, Coutp)


@jax.jit
def conv3d_aware(triplane_nchw, weights, biases):
    """triplane_nchw: (B, C, H, 3W) f32 (PyTorch NCHW convention).
    weights: (3, 3, 3, 3C, Cout) = (branch, ky, kx, cin, cout).
    biases:  (3, Cout).
    Returns (B, Cout, H, 3W) matching the PyTorch module's output."""
    B, C, H, W3 = triplane_nchw.shape
    W = W3 // 3
    if H != W:
        raise ValueError("Conv3DAware requires square panels (H == W).")
    Cout = weights.shape[-1]
    Coutp = ((Cout + 127) // 128) * 128              # lane-dense output width

    x = jnp.transpose(triplane_nchw, (0, 2, 3, 1))   # (B, H, 3W, C) channels-last
    xoy, xoz, yoz = x[:, :, :W], x[:, :, W:2 * W], x[:, :, 2 * W:]

    ud = lambda a: jnp.mean(a, axis=1)               # AdaptiveAvgPool2d((1, None))
    lr = lambda a: jnp.mean(a, axis=2)               # AdaptiveAvgPool2d((None, 1))
    # pooled channel groups per branch (tiny; computed once in f32 in XLA)
    wpool = jnp.stack([ud(xoz), ud(xoy), lr(xoy)], axis=1)   # (B, 3, W, C)
    hpool = jnp.stack([ud(yoz), lr(yoz), lr(xoz)], axis=1)   # (B, 3, H, C)

    w_self, w_wcast, w_hcast, bias_p = _prepare_params(weights, biases, C, Coutp)
    x_bf = x.astype(jnp.bfloat16)                    # halve panel HBM traffic

    out = pl.pallas_call(
        _conv3d_aware_kernel,
        out_shape=jax.ShapeDtypeStruct((B, H, 3 * W, Coutp), jnp.float32),
        grid_spec=pltpu.PrefetchScalarGridSpec(
            num_scalar_prefetch=0,
            grid=(B, 3),
            in_specs=[
                pl.BlockSpec((1, H, W, C), lambda b, p: (b, 0, p, 0)),
                pl.BlockSpec((1, 1, W, C), lambda b, p: (b, p, 0, 0)),
                pl.BlockSpec((1, 1, H, C), lambda b, p: (b, p, 0, 0)),
                pl.BlockSpec((1, 3, 3 * C, Coutp), lambda b, p: (p, 0, 0, 0)),
                pl.BlockSpec((1, 3, 3 * C, Coutp), lambda b, p: (p, 0, 0, 0)),
                pl.BlockSpec((1, 3, 3 * C, Coutp), lambda b, p: (p, 0, 0, 0)),
                pl.BlockSpec((1, 1, Coutp), lambda b, p: (p, 0, 0)),
            ],
            out_specs=pl.BlockSpec((1, H, W, Coutp), lambda b, p: (b, 0, p, 0)),
        ),
        compiler_params=pltpu.CompilerParams(
            dimension_semantics=("parallel", "parallel")),
    )(x_bf, wpool, hpool, w_self, w_wcast, w_hcast, bias_p)

    # TODO(synk): at production triplane sizes add an H-tile grid axis (1-row halo)
    # so the per-step working set stays a few MiB inside v7x's 64 MiB VMEM.
    return jnp.transpose(out[..., :Cout], (0, 3, 1, 2))   # -> (B, Cout, H, 3W)


def reference_forward(triplane, weights, biases):
    """Pure-JAX (NCHW, f32) reference mirroring the PyTorch forward exactly."""
    B, C, H, W3 = triplane.shape
    W = W3 // 3
    xoy = triplane[:, :, :, 0 * W:1 * W]
    xoz = triplane[:, :, :, 1 * W:2 * W]
    yoz = triplane[:, :, :, 2 * W:3 * W]
    ud = lambda p: jnp.broadcast_to(jnp.mean(p, axis=2, keepdims=True), p.shape)
    lr = lambda p: jnp.broadcast_to(jnp.mean(p, axis=3, keepdims=True), p.shape)
    perm = lambda p: jnp.transpose(p, (0, 1, 3, 2))
    xoy_ = jnp.concatenate([xoy, ud(xoz), perm(ud(yoz))], axis=1)
    xoz_ = jnp.concatenate([ud(xoy), xoz, lr(yoz)], axis=1)
    yoz_ = jnp.concatenate([perm(lr(xoy)), lr(xoz), yoz], axis=1)
    outs = []
    for i, xin in enumerate((xoy_, xoz_, yoz_)):
        w_oihw = jnp.transpose(weights[i], (3, 2, 0, 1))  # (Cout, 3C, 3, 3)
        o = lax.conv_general_dilated(
            xin, w_oihw, window_strides=(1, 1), padding="SAME",
            dimension_numbers=("NCHW", "OIHW", "NCHW"))
        outs.append(o + biases[i][None, :, None, None])
    return jnp.concatenate(outs, axis=-1)


if __name__ == "__main__":
    B, C, H = 2, 4, 16
    W = H                      # module requires H == W (permuted branches concatenated)
    C_out = 8

    key = jax.random.PRNGKey(0)
    k_x, k_w, k_b = jax.random.split(key, 3)

    triplane = jax.random.normal(k_x, (B, C, H, 3 * W), dtype=jnp.float32)
    # NOTE: the PyTorch module zero-inits these convs (zero_module), which would
    # make the output identically zero; use small nonzero values so the math is
    # actually exercised.
    weights = 0.02 * jax.random.normal(k_w, (3, 3, 3, 3 * C, C_out), dtype=jnp.float32)
    biases = 0.02 * jax.random.normal(k_b, (3, C_out), dtype=jnp.float32)

    out = jax.block_until_ready(conv3d_aware(triplane, weights, biases))
    ref = jax.block_until_ready(reference_forward(triplane, weights, biases))

    assert out.shape == (B, C_out, H, 3 * W), out.shape
    max_err = float(jnp.max(jnp.abs(out - ref)))
    # bf16 matmul operands with f32 accumulation -> ~1e-2 scale tolerance
    assert jnp.allclose(out, ref, rtol=3e-2, atol=3e-2), max_err
    print("KERNEL_OK")
</pallas_src>

<mosaic_0001>
module attributes {stable_mosaic.version = 11 : i64} {
  func.func @_conv3d_aware_kernel(%arg0: i32, %arg1: i32, %arg2: memref<1x16x16x4xbf16, #tpu.memory_space<vmem>>, %arg3: memref<1x1x16x4xf32, #tpu.memory_space<vmem>>, %arg4: memref<1x1x16x4xf32, #tpu.memory_space<vmem>>, %arg5: memref<1x3x12x128xbf16, #tpu.memory_space<vmem>>, %arg6: memref<1x3x12x128xbf16, #tpu.memory_space<vmem>>, %arg7: memref<1x3x12x128xbf16, #tpu.memory_space<vmem>>, %arg8: memref<1x1x128xf32, #tpu.memory_space<vmem>>, %arg9: memref<1x16x16x128xf32, #tpu.memory_space<vmem>>) attributes {dimension_semantics = [#tpu.dimension_semantics<parallel>, #tpu.dimension_semantics<parallel>], iteration_bounds = array<i64: 2, 3>, scalar_prefetch = 0 : i64, scratch_operands = 0 : i64, tpu.core_type = #tpu.core_type<tc>, window_params = [{transform_indices = @transform_0, window_bounds = array<i64: 1, 16, 16, 4>}, {transform_indices = @transform_1, window_bounds = array<i64: 1, 1, 16, 4>}, {transform_indices = @transform_2, window_bounds = array<i64: 1, 1, 16, 4>}, {transform_indices = @transform_3, window_bounds = array<i64: 1, 3, 12, 128>}, {transform_indices = @transform_4, window_bounds = array<i64: 1, 3, 12, 128>}, {transform_indices = @transform_5, window_bounds = array<i64: 1, 3, 12, 128>}, {transform_indices = @transform_6, window_bounds = array<i64: 1, 1, 128>}, {transform_indices = @transform_7, window_bounds = array<i64: 1, 16, 16, 128>}]} {
    %c0 = arith.constant 0 : index
    %c0_0 = arith.constant 0 : index
    %c0_1 = arith.constant 0 : index
    %c0_2 = arith.constant 0 : index
    %0 = vector.load %arg3[%c0, %c0_0, %c0_1, %c0_2] : memref<1x1x16x4xf32, #tpu.memory_space<vmem>>, vector<1x1x16x4xf32>
    %1 = vector.shape_cast %0 : vector<1x1x16x4xf32> to vector<16x4xf32>
    %2 = arith.truncf %1 : vector<16x4xf32> to vector<16x4xbf16>
    %c0_3 = arith.constant 0 : index
    %c0_4 = arith.constant 0 : index
    %c0_5 = arith.constant 0 : index
    %c0_6 = arith.constant 0 : index
    %3 = vector.load %arg4[%c0_3, %c0_4, %c0_5, %c0_6] : memref<1x1x16x4xf32, #tpu.memory_space<vmem>>, vector<1x1x16x4xf32>
    %4 = vector.shape_cast %3 : vector<1x1x16x4xf32> to vector<16x4xf32>
    %5 = arith.truncf %4 : vector<16x4xf32> to vector<16x4xbf16>
    %cst = arith.constant 0.000000e+00 : bf16
    %6 = vector.broadcast %cst : bf16 to vector<1x4xbf16>
    %7 = vector.extract_strided_slice %2 {offsets = [0, 0], sizes = [15, 4], strides = [1, 1]} : vector<16x4xbf16> to vector<15x4xbf16>
    %8 = tpu.concatenate %6, %7 in 0 : vector<1x4xbf16>, vector<15x4xbf16> -> vector<16x4xbf16>
    %9 = vector.extract_strided_slice %2 {offsets = [1, 0], sizes = [15, 4], strides = [1, 1]} : vector<16x4xbf16> to vector<15x4xbf16>
    %10 = tpu.concatenate %9, %6 in 0 : vector<15x4xbf16>, vector<1x4xbf16> -> vector<16x4xbf16>
    %11 = tpu.concatenate %8, %2, %10 in 1 : vector<16x4xbf16>, vector<16x4xbf16>, vector<16x4xbf16> -> vector<16x12xbf16>
    %cst_7 = arith.constant 0.000000e+00 : bf16
    %12 = vector.broadcast %cst_7 : bf16 to vector<1x4xbf16>
    %13 = vector.extract_strided_slice %5 {offsets = [0, 0], sizes = [15, 4], strides = [1, 1]} : vector<16x4xbf16> to vector<15x4xbf16>
    %14 = tpu.concatenate %12, %13 in 0 : vector<1x4xbf16>, vector<15x4xbf16> -> vector<16x4xbf16>
    %15 = vector.extract_strided_slice %5 {offsets = [1, 0], sizes = [15, 4], strides = [1, 1]} : vector<16x4xbf16> to vector<15x4xbf16>
    %16 = tpu.concatenate %15, %12 in 0 : vector<15x4xbf16>, vector<1x4xbf16> -> vector<16x4xbf16>
    %17 = tpu.concatenate %14, %5, %16 in 1 : vector<16x4xbf16>, vector<16x4xbf16>, vector<16x4xbf16> -> vector<16x12xbf16>
    %c0_8 = arith.constant 0 : index
    %c0_9 = arith.constant 0 : index
    %c0_10 = arith.constant 0 : index
    %c0_11 = arith.constant 0 : index
    %18 = vector.load %arg6[%c0_8, %c0_9, %c0_10, %c0_11] : memref<1x3x12x128xbf16, #tpu.memory_space<vmem>>, vector<1x3x12x128xbf16>
    %19 = vector.shape_cast %18 : vector<1x3x12x128xbf16> to vector<3x12x128xbf16>
    %c0_12 = arith.constant 0 : index
    %c0_13 = arith.constant 0 : index
    %c0_14 = arith.constant 0 : index
    %c0_15 = arith.constant 0 : index
    %20 = vector.load %arg7[%c0_12, %c0_13, %c0_14, %c0_15] : memref<1x3x12x128xbf16, #tpu.memory_space<vmem>>, vector<1x3x12x128xbf16>
    %21 = vector.shape_cast %20 : vector<1x3x12x128xbf16> to vector<3x12x128xbf16>
    %22 = vector.extract_strided_slice %19 {offsets = [0, 0, 0], sizes = [1, 12, 128], strides = [1, 1, 1]} : vector<3x12x128xbf16> to vector<1x12x128xbf16>
    %23 = vector.shape_cast %22 : vector<1x12x128xbf16> to vector<12x128xbf16>
    %cst_16 = arith.constant dense<0.000000e+00> : vector<16x128xf32>
    %24 = tpu.matmul %11, %23, %cst_16 {dimension_numbers = #tpu.dot_dimension_numbers<[1], [0], [0], [1], [0, 0, 1, 1], [], []>} : vector<16x12xbf16>, vector<12x128xbf16>, vector<16x128xf32> -> vector<16x128xf32>
    %25 = vector.extract_strided_slice %19 {offsets = [1, 0, 0], sizes = [1, 12, 128], strides = [1, 1, 1]} : vector<3x12x128xbf16> to vector<1x12x128xbf16>
    %26 = vector.shape_cast %25 : vector<1x12x128xbf16> to vector<12x128xbf16>
    %cst_17 = arith.constant dense<0.000000e+00> : vector<16x128xf32>
    %27 = tpu.matmul %11, %26, %cst_17 {dimension_numbers = #tpu.dot_dimension_numbers<[1], [0], [0], [1], [0, 0, 1, 1], [], []>} : vector<16x12xbf16>, vector<12x128xbf16>, vector<16x128xf32> -> vector<16x128xf32>
    %28 = vector.extract_strided_slice %19 {offsets = [2, 0, 0], sizes = [1, 12, 128], strides = [1, 1, 1]} : vector<3x12x128xbf16> to vector<1x12x128xbf16>
    %29 = vector.shape_cast %28 : vector<1x12x128xbf16> to vector<12x128xbf16>
    %cst_18 = arith.constant dense<0.000000e+00> : vector<16x128xf32>
    %30 = tpu.matmul %11, %29, %cst_18 {dimension_numbers = #tpu.dot_dimension_numbers<[1], [0], [0], [1], [0, 0, 1, 1], [], []>} : vector<16x12xbf16>, vector<12x128xbf16>, vector<16x128xf32> -> vector<16x128xf32>
    %31 = vector.extract_strided_slice %21 {offsets = [0, 0, 0], sizes = [1, 12, 128], strides = [1, 1, 1]} : vector<3x12x128xbf16> to vector<1x12x128xbf16>
    %32 = vector.shape_cast %31 : vector<1x12x128xbf16> to vector<12x128xbf16>
    %cst_19 = arith.constant dense<0.000000e+00> : vector<16x128xf32>
    %33 = tpu.matmul %17, %32, %cst_19 {dimension_numbers = #tpu.dot_dimension_numbers<[1], [0], [0], [1], [0, 0, 1, 1], [], []>} : vector<16x12xbf16>, vector<12x128xbf16>, vector<16x128xf32> -> vector<16x128xf32>
    %34 = vector.extract_strided_slice %21 {offsets = [1, 0, 0], sizes = [1, 12, 128], strides = [1, 1, 1]} : vector<3x12x128xbf16> to vector<1x12x128xbf16>
    %35 = vector.shape_cast %34 : vector<1x12x128xbf16> to vector<12x128xbf16>
    %cst_20 = arith.constant dense<0.000000e+00> : vector<16x128xf32>
    %36 = tpu.matmul %17, %35, %cst_20 {dimension_numbers = #tpu.dot_dimension_numbers<[1], [0], [0], [1], [0, 0, 1, 1], [], []>} : vector<16x12xbf16>, vector<12x128xbf16>, vector<16x128xf32> -> vector<16x128xf32>
    %37 = vector.extract_strided_slice %21 {offsets = [2, 0, 0], sizes = [1, 12, 128], strides = [1, 1, 1]} : vector<3x12x128xbf16> to vector<1x12x128xbf16>
    %38 = vector.shape_cast %37 : vector<1x12x128xbf16> to vector<12x128xbf16>
    %cst_21 = arith.constant dense<0.000000e+00> : vector<16x128xf32>
    %39 = tpu.matmul %17, %38, %cst_21 {dimension_numbers = #tpu.dot_dimension_numbers<[1], [0], [0], [1], [0, 0, 1, 1], [], []>} : vector<16x12xbf16>, vector<12x128xbf16>, vector<16x128xf32> -> vector<16x128xf32>
    %c0_22 = arith.constant 0 : index
    %c0_23 = arith.constant 0 : index
    %c0_24 = arith.constant 0 : index
    %40 = vector.load %arg8[%c0_22, %c0_23, %c0_24] : memref<1x1x128xf32, #tpu.memory_space<vmem>>, vector<1x1x128xf32>
    %41 = vector.shape_cast %40 : vector<1x1x128xf32> to vector<1x128xf32>
    %42 = vector.shape_cast %41 : vector<1x128xf32> to vector<1x1x128xf32>
    %43 = arith.addf %24, %27 : vector<16x128xf32>
    %44 = arith.addf %43, %30 : vector<16x128xf32>
    %45 = vector.shape_cast %44 : vector<16x128xf32> to vector<1x16x128xf32>
    %46 = vector.broadcast %42 : vector<1x1x128xf32> to vector<1x16x128xf32>
    %47 = arith.addf %46, %45 : vector<1x16x128xf32>
    %48 = arith.addf %33, %36 : vector<16x128xf32>
    %49 = arith.addf %48, %39 : vector<16x128xf32>
    %50 = vector.shape_cast %49 : vector<16x128xf32> to vector<16x1x128xf32>
    %51 = vector.broadcast %47 : vector<1x16x128xf32> to vector<16x16x128xf32>
    %52 = vector.broadcast %50 : vector<16x1x128xf32> to vector<16x16x128xf32>
    %53 = arith.addf %51, %52 : vector<16x16x128xf32>
    %c0_25 = arith.constant 0 : index
    %c0_26 = arith.constant 0 : index
    %c0_27 = arith.constant 0 : index
    %c0_28 = arith.constant 0 : index
    %54 = vector.load %arg2[%c0_25, %c0_26, %c0_27, %c0_28] : memref<1x16x16x4xbf16, #tpu.memory_space<vmem>>, vector<1x16x16x4xbf16>
    %55 = vector.shape_cast %54 : vector<1x16x16x4xbf16> to vector<16x16x4xbf16>
    %cst_29 = arith.constant 0.000000e+00 : bf16
    %56 = vector.broadcast %cst_29 : bf16 to vector<16x1x4xbf16>
    %57 = vector.extract_strided_slice %55 {offsets = [0, 0, 0], sizes = [16, 15, 4], strides = [1, 1, 1]} : vector<16x16x4xbf16> to vector<16x15x4xbf16>
    %58 = tpu.concatenate %56, %57 in 1 : vector<16x1x4xbf16>, vector<16x15x4xbf16> -> vector<16x16x4xbf16>
    %59 = vector.extract_strided_slice %55 {offsets = [0, 1, 0], sizes = [16, 15, 4], strides = [1, 1, 1]} : vector<16x16x4xbf16> to vector<16x15x4xbf16>
    %60 = tpu.concatenate %59, %56 in 1 : vector<16x15x4xbf16>, vector<16x1x4xbf16> -> vector<16x16x4xbf16>
    %61 = tpu.concatenate %58, %55, %60 in 2 : vector<16x16x4xbf16>, vector<16x16x4xbf16>, vector<16x16x4xbf16> -> vector<16x16x12xbf16>
    %62 = vector.shape_cast %61 : vector<16x16x12xbf16> to vector<256x12xbf16>
    %c0_30 = arith.constant 0 : index
    %c0_31 = arith.constant 0 : index
    %c0_32 = arith.constant 0 : index
    %c0_33 = arith.constant 0 : index
    %63 = vector.load %arg5[%c0_30, %c0_31, %c0_32, %c0_33] : memref<1x3x12x128xbf16, #tpu.memory_space<vmem>>, vector<1x3x12x128xbf16>
    %64 = vector.shape_cast %63 : vector<1x3x12x128xbf16> to vector<3x12x128xbf16>
    %65 = vector.extract_strided_slice %64 {offsets = [1, 0, 0], sizes = [1, 12, 128], strides = [1, 1, 1]} : vector<3x12x128xbf16> to vector<1x12x128xbf16>
    %66 = vector.shape_cast %65 : vector<1x12x128xbf16> to vector<12x128xbf16>
    %cst_34 = arith.constant dense<0.000000e+00> : vector<256x128xf32>
    %67 = tpu.matmul %62, %66, %cst_34 {dimension_numbers = #tpu.dot_dimension_numbers<[1], [0], [0], [1], [0, 0, 1, 1], [], []>} : vector<256x12xbf16>, vector<12x128xbf16>, vector<256x128xf32> -> vector<256x128xf32>
    %68 = vector.shape_cast %67 : vector<256x128xf32> to vector<16x16x128xf32>
    %69 = arith.addf %53, %68 : vector<16x16x128xf32>
    %c0_35 = arith.constant 0 : index
    %c0_36 = arith.constant 0 : index
    %c0_37 = arith.constant 0 : index
    %c0_38 = arith.constant 0 : index
    %70 = vector.load %arg9[%c0_35, %c0_36, %c0_37, %c0_38] : memref<1x16x16x128xf32, #tpu.memory_space<vmem>>, vector<1x16x16x128xf32>
    %71 = vector.shape_cast %70 : vector<1x16x16x128xf32> to vector<16x16x128xf32>
    %72 = vector.shape_cast %69 : vector<16x16x128xf32> to vector<1x16x16x128xf32>
    tpu.vector_store %arg9[%c0_35, %c0_36, %c0_37, %c0_38], %72 {strides = array<i32>} : memref<1x16x16x128xf32, #tpu.memory_space<vmem>>, vector<1x16x16x128xf32>,
    %c0_39 = arith.constant 0 : index
    %c0_40 = arith.constant 0 : index
    %c0_41 = arith.constant 0 : index
    %c0_42 = arith.constant 0 : index
    %73 = vector.load %arg9[%c0_39, %c0_40, %c0_41, %c0_42] : memref<1x16x16x128xf32, #tpu.memory_space<vmem>>, vector<1x1x16x128xf32>
    %74 = vector.shape_cast %73 : vector<1x1x16x128xf32> to vector<1x16x128xf32>
    %75 = vector.shape_cast %24 : vector<16x128xf32> to vector<1x16x128xf32>
    %76 = arith.subf %74, %75 : vector<1x16x128xf32>
    %c0_43 = arith.constant 0 : index
    %c0_44 = arith.constant 0 : index
    %c0_45 = arith.constant 0 : index
    %c0_46 = arith.constant 0 : index
    %77 = vector.load %arg9[%c0_43, %c0_44, %c0_45, %c0_46] : memref<1x16x16x128xf32, #tpu.memory_space<vmem>>, vector<1x1x16x128xf32>
    %78 = vector.shape_cast %77 : vector<1x1x16x128xf32> to vector<1x16x128xf32>
    %79 = vector.shape_cast %76 : vector<1x16x128xf32> to vector<1x1x16x128xf32>
    tpu.vector_store %arg9[%c0_43, %c0_44, %c0_45, %c0_46], %79 {strides = array<i32>} : memref<1x16x16x128xf32, #tpu.memory_space<vmem>>, vector<1x1x16x128xf32>,
    %c0_47 = arith.constant 0 : index
    %c15 = arith.constant 15 : index
    %c0_48 = arith.constant 0 : index
    %c0_49 = arith.constant 0 : index
    %80 = vector.load %arg9[%c0_47, %c15, %c0_48, %c0_49] : memref<1x16x16x128xf32, #tpu.memory_space<vmem>>, vector<1x1x16x128xf32>
    %81 = vector.shape_cast %80 : vector<1x1x16x128xf32> to vector<1x16x128xf32>
    %82 = vector.shape_cast %30 : vector<16x128xf32> to vector<1x16x128xf32>
    %83 = arith.subf %81, %82 : vector<1x16x128xf32>
    %c0_50 = arith.constant 0 : index
    %c15_51 = arith.constant 15 : index
    %c0_52 = arith.constant 0 : index
    %c0_53 = arith.constant 0 : index
    %84 = vector.load %arg9[%c0_50, %c15_51, %c0_52, %c0_53] : memref<1x16x16x128xf32, #tpu.memory_space<vmem>>, vector<1x1x16x128xf32>
    %85 = vector.shape_cast %84 : vector<1x1x16x128xf32> to vector<1x16x128xf32>
    %86 = vector.shape_cast %83 : vector<1x16x128xf32> to vector<1x1x16x128xf32>
    tpu.vector_store %arg9[%c0_50, %c15_51, %c0_52, %c0_53], %86 {strides = array<i32>} : memref<1x16x16x128xf32, #tpu.memory_space<vmem>>, vector<1x1x16x128xf32>,
    %c0_54 = arith.constant 0 : index
    %c0_55 = arith.constant 0 : index
    %c0_56 = arith.constant 0 : index
    %c0_57 = arith.constant 0 : index
    %87 = vector.load %arg9[%c0_54, %c0_55, %c0_56, %c0_57] : memref<1x16x16x128xf32, #tpu.memory_space<vmem>>, vector<1x16x1x128xf32>
    %88 = vector.shape_cast %87 : vector<1x16x1x128xf32> to vector<16x1x128xf32>
    %89 = vector.shape_cast %33 : vector<16x128xf32> to vector<16x1x128xf32>
    %90 = arith.subf %88, %89 : vector<16x1x128xf32>
    %c0_58 = arith.constant 0 : index
    %c0_59 = arith.constant 0 : index
    %c0_60 = arith.constant 0 : index
    %c0_61 = arith.constant 0 : index
    %91 = vector.load %arg9[%c0_58, %c0_59, %c0_60, %c0_61] : memref<1x16x16x128xf32, #tpu.memory_space<vmem>>, vector<1x16x1x128xf32>
    %92 = vector.shape_cast %91 : vector<1x16x1x128xf32> to vector<16x1x128xf32>
    %93 = vector.shape_cast %90 : vector<16x1x128xf32> to vector<1x16x1x128xf32>
    tpu.vector_store %arg9[%c0_58, %c0_59, %c0_60, %c0_61], %93 {strides = array<i32>} : memref<1x16x16x128xf32, #tpu.memory_space<vmem>>, vector<1x16x1x128xf32>,
    %c0_62 = arith.constant 0 : index
    %c0_63 = arith.constant 0 : index
    %c15_64 = arith.constant 15 : index
    %c0_65 = arith.constant 0 : index
    %94 = vector.load %arg9[%c0_62, %c0_63, %c15_64, %c0_65] : memref<1x16x16x128xf32, #tpu.memory_space<vmem>>, vector<1x16x1x128xf32>
    %95 = vector.shape_cast %94 : vector<1x16x1x128xf32> to vector<16x1x128xf32>
    %96 = vector.shape_cast %39 : vector<16x128xf32> to vector<16x1x128xf32>
    %97 = arith.subf %95, %96 : vector<16x1x128xf32>
    %c0_66 = arith.constant 0 : index
    %c0_67 = arith.constant 0 : index
    %c15_68 = arith.constant 15 : index
    %c0_69 = arith.constant 0 : index
    %98 = vector.load %arg9[%c0_66, %c0_67, %c15_68, %c0_69] : memref<1x16x16x128xf32, #tpu.memory_space<vmem>>, vector<1x16x1x128xf32>
    %99 = vector.shape_cast %98 : vector<1x16x1x128xf32> to vector<16x1x128xf32>
    %100 = vector.shape_cast %97 : vector<16x1x128xf32> to vector<1x16x1x128xf32>
    tpu.vector_store %arg9[%c0_66, %c0_67, %c15_68, %c0_69], %100 {strides = array<i32>} : memref<1x16x16x128xf32, #tpu.memory_space<vmem>>, vector<1x16x1x128xf32>,
    %101 = vector.extract_strided_slice %64 {offsets = [0, 0, 0], sizes = [1, 12, 128], strides = [1, 1, 1]} : vector<3x12x128xbf16> to vector<1x12x128xbf16>
    %102 = vector.shape_cast %101 : vector<1x12x128xbf16> to vector<12x128xbf16>
    %cst_70 = arith.constant dense<0.000000e+00> : vector<256x128xf32>
    %103 = tpu.matmul %62, %102, %cst_70 {dimension_numbers = #tpu.dot_dimension_numbers<[1], [0], [0], [1], [0, 0, 1, 1], [], []>} : vector<256x12xbf16>, vector<12x128xbf16>, vector<256x128xf32> -> vector<256x128xf32>
    %104 = vector.shape_cast %103 : vector<256x128xf32> to vector<16x16x128xf32>
    %c0_71 = arith.constant 0 : index
    %c1 = arith.constant 1 : index
    %c0_72 = arith.constant 0 : index
    %c0_73 = arith.constant 0 : index
    %105 = vector.load %arg9[%c0_71, %c1, %c0_72, %c0_73] : memref<1x16x16x128xf32, #tpu.memory_space<vmem>>, vector<1x15x16x128xf32>
    %106 = vector.shape_cast %105 : vector<1x15x16x128xf32> to vector<15x16x128xf32>
    %107 = vector.extract_strided_slice %104 {offsets = [0, 0, 0], sizes = [15, 16, 128], strides = [1, 1, 1]} : vector<16x16x128xf32> to vector<15x16x128xf32>
    %108 = arith.addf %106, %107 : vector<15x16x128xf32>
    %c0_74 = arith.constant 0 : index
    %c1_75 = arith.constant 1 : index
    %c0_76 = arith.constant 0 : index
    %c0_77 = arith.constant 0 : index
    %109 = vector.load %arg9[%c0_74, %c1_75, %c0_76, %c0_77] : memref<1x16x16x128xf32, #tpu.memory_space<vmem>>, vector<1x15x16x128xf32>
    %110 = vector.shape_cast %109 : vector<1x15x16x128xf32> to vector<15x16x128xf32>
    %111 = vector.shape_cast %108 : vector<15x16x128xf32> to vector<1x15x16x128xf32>
    tpu.vector_store %arg9[%c0_74, %c1_75, %c0_76, %c0_77], %111 {strides = array<i32>} : memref<1x16x16x128xf32, #tpu.memory_space<vmem>>, vector<1x15x16x128xf32>,
    %112 = vector.extract_strided_slice %64 {offsets = [2, 0, 0], sizes = [1, 12, 128], strides = [1, 1, 1]} : vector<3x12x128xbf16> to vector<1x12x128xbf16>
    %113 = vector.shape_cast %112 : vector<1x12x128xbf16> to vector<12x128xbf16>
    %cst_78 = arith.constant dense<0.000000e+00> : vector<256x128xf32>
    %114 = tpu.matmul %62, %113, %cst_78 {dimension_numbers = #tpu.dot_dimension_numbers<[1], [0], [0], [1], [0, 0, 1, 1], [], []>} : vector<256x12xbf16>, vector<12x128xbf16>, vector<256x128xf32> -> vector<256x128xf32>
    %115 = vector.shape_cast %114 : vector<256x128xf32> to vector<16x16x128xf32>
    %c0_79 = arith.constant 0 : index
    %c0_80 = arith.constant 0 : index
    %c0_81 = arith.constant 0 : index
    %c0_82 = arith.constant 0 : index
    %116 = vector.load %arg9[%c0_79, %c0_80, %c0_81, %c0_82] : memref<1x16x16x128xf32, #tpu.memory_space<vmem>>, vector<1x15x16x128xf32>
    %117 = vector.shape_cast %116 : vector<1x15x16x128xf32> to vector<15x16x128xf32>
    %118 = vector.extract_strided_slice %115 {offsets = [1, 0, 0], sizes = [15, 16, 128], strides = [1, 1, 1]} : vector<16x16x128xf32> to vector<15x16x128xf32>
    %119 = arith.addf %117, %118 : vector<15x16x128xf32>
    %c0_83 = arith.constant 0 : index
    %c0_84 = arith.constant 0 : index
    %c0_85 = arith.constant 0 : index
    %c0_86 = arith.constant 0 : index
    %120 = vector.load %arg9[%c0_83, %c0_84, %c0_85, %c0_86] : memref<1x16x16x128xf32, #tpu.memory_space<vmem>>, vector<1x15x16x128xf32>
    %121 = vector.shape_cast %120 : vector<1x15x16x128xf32> to vector<15x16x128xf32>
    %122 = vector.shape_cast %119 : vector<15x16x128xf32> to vector<1x15x16x128xf32>
    tpu.vector_store %arg9[%c0_83, %c0_84, %c0_85, %c0_86], %122 {strides = array<i32>} : memref<1x16x16x128xf32, #tpu.memory_space<vmem>>, vector<1x15x16x128xf32>,
    return
  }
  func.func @transform_0(%arg0: i32, %arg1: i32) -> (i32, i32, i32, i32) {
    %c0_i32 = arith.constant 0 : i32
    %c0_i32_0 = arith.constant 0 : i32
    %c0_i32_1 = arith.constant 0 : i32
    return %arg0, %c0_i32, %arg1, %c0_i32_0 : i32, i32, i32, i32
  }
  func.func @transform_1(%arg0: i32, %arg1: i32) -> (i32, i32, i32, i32) {
    %c0_i32 = arith.constant 0 : i32
    %c0_i32_0 = arith.constant 0 : i32
    %c0_i32_1 = arith.constant 0 : i32
    return %arg0, %arg1, %c0_i32, %c0_i32_0 : i32, i32, i32, i32
  }
  func.func @transform_2(%arg0: i32, %arg1: i32) -> (i32, i32, i32, i32) {
    %c0_i32 = arith.constant 0 : i32
    %c0_i32_0 = arith.constant 0 : i32
    %c0_i32_1 = arith.constant 0 : i32
    return %arg0, %arg1, %c0_i32, %c0_i32_0 : i32, i32, i32, i32
  }
  func.func @transform_3(%arg0: i32, %arg1: i32) -> (i32, i32, i32, i32) {
    %c0_i32 = arith.constant 0 : i32
    %c0_i32_0 = arith.constant 0 : i32
    %c0_i32_1 = arith.constant 0 : i32
    %c0_i32_2 = arith.constant 0 : i32
    return %arg1, %c0_i32, %c0_i32_0, %c0_i32_1 : i32, i32, i32, i32
  }
  func.func @transform_4(%arg0: i32, %arg1: i32) -> (i32, i32, i32, i32) {
    %c0_i32 = arith.constant 0 : i32
    %c0_i32_0 = arith.constant 0 : i32
    %c0_i32_1 = arith.constant 0 : i32
    %c0_i32_2 = arith.constant 0 : i32
    return %arg1, %c0_i32, %c0_i32_0, %c0_i32_1 : i32, i32, i32, i32
  }
  func.func @transform_5(%arg0: i32, %arg1: i32) -> (i32, i32, i32, i32) {
    %c0_i32 = arith.constant 0 : i32
    %c0_i32_0 = arith.constant 0 : i32
    %c0_i32_1 = arith.constant 0 : i32
    %c0_i32_2 = arith.constant 0 : i32
    return %arg1, %c0_i32, %c0_i32_0, %c0_i32_1 : i32, i32, i32, i32
  }
  func.func @transform_6(%arg0: i32, %arg1: i32) -> (i32, i32, i32) {
    %c0_i32 = arith.constant 0 : i32
    %c0_i32_0 = arith.constant 0 : i32
    %c0_i32_1 = arith.constant 0 : i32
    return %arg1, %c0_i32, %c0_i32_0 : i32, i32, i32
  }
  func.func @transform_7(%arg0: i32, %arg1: i32) -> (i32, i32, i32, i32) {
    %c0_i32 = arith.constant 0 : i32
    %c0_i32_0 = arith.constant 0 : i32
    %c0_i32_1 = arith.constant 0 : i32
    return %arg0, %c0_i32, %arg1, %c0_i32_0 : i32, i32, i32, i32
  }
}

</mosaic_0001>

<llo_original>
// kernel: squeeze.3
$region0: #{squeeze.3}
  %s0 = inlined_call_operand.vmem [shape: bf16[1,3,3,4,8], index: 0, kind: input, shape index: {}]
  %s1 = inlined_call_operand.vmem [shape: bf16[1,3,12,8], index: 1, kind: output, shape index: {}]
  $region1: #{squeeze.3} parent=0
    #allocation0 [shape = 'u8[24576]{0}', space=vmem, size = 0x6000, scoped, tag = 'scoped mem for output reshape']
    #allocation1 [shape = 'u8[36864]{0}', space=vmem, size = 0x9000, scoped, tag = 'scoped mem for input reshape']
    %s3 = smul.u32 2, 2
    %s4 = sshll.u32 1, %s3
    %s5 = ssub.s32 %s4, 1
    %s6 = smul.addr 2, 8
    %s7 = scalar_lea.vmem %s0, %s6
    %s8 = sshrl.u32 %s5, 1
    %s9 = sor.u32 %s5, %s8
    %s10 = sand.u32 %s9, 85
    %s11 = sshrl.u32 %s10, 1
    %s12 = sor.u32 %s10, %s11
    %s13 = sand.u32 51, %s12
    %s14 = sshrl.u32 %s13, 2
    %s15 = sor.u32 %s13, %s14
    %s16 = sand.u32 15, %s15
    %v17 = vld [vmem:[%s7] sm:%s16]
    %v18 = vunpack.c.l.bf16 %v17
    %v19 = vunpack.c.h.bf16 %v17
    %s20 = scalar_lea.vmem [#allocation1], 64
    %21 = vst [vmem:[%s20] sm:%s5] %v18
    %s22 = smul.addr 2, 7
    %s23 = scalar_lea.vmem %s0, %s22
    %s24 = sshrl.u32 %s5, 1
    %s25 = sor.u32 %s5, %s24
    %s26 = sand.u32 %s25, 85
    %s27 = sshrl.u32 %s26, 1
    %s28 = sor.u32 %s26, %s27
    %s29 = sand.u32 51, %s28
    %s30 = sshrl.u32 %s29, 2
    %s31 = sor.u32 %s29, %s30
    %s32 = sand.u32 15, %s31
    %v33 = vld [vmem:[%s23] sm:%s32]
    %v34 = vunpack.c.l.bf16 %v33
    %v35 = vunpack.c.h.bf16 %v33
    %s36 = scalar_lea.vmem [#allocation1], 56
    %37 = vst [vmem:[%s36] sm:%s5] %v34
    %s38 = smul.addr 2, 6
    %s39 = scalar_lea.vmem %s0, %s38
    %s40 = sshrl.u32 %s5, 1
    %s41 = sor.u32 %s5, %s40
    %s42 = sand.u32 %s41, 85
    %s43 = sshrl.u32 %s42, 1
    %s44 = sor.u32 %s42, %s43
    %s45 = sand.u32 51, %s44
    %s46 = sshrl.u32 %s45, 2
    %s47 = sor.u32 %s45, %s46
    %s48 = sand.u32 15, %s47
    %v49 = vld [vmem:[%s39] sm:%s48]
    %v50 = vunpack.c.l.bf16 %v49
    %v51 = vunpack.c.h.bf16 %v49
    %s52 = scalar_lea.vmem [#allocation1], 48
    %53 = vst [vmem:[%s52] sm:%s5] %v50
    %s54 = smul.addr 2, 5
    %s55 = scalar_lea.vmem %s0, %s54
    %s56 = sshrl.u32 %s5, 1
    %s57 = sor.u32 %s5, %s56
    %s58 = sand.u32 %s57, 85
    %s59 = sshrl.u32 %s58, 1
    %s60 = sor.u32 %s58, %s59
    %s61 = sand.u32 51, %s60
    %s62 = sshrl.u32 %s61, 2
    %s63 = sor.u32 %s61, %s62
    %s64 = sand.u32 15, %s63
    %v65 = vld [vmem:[%s55] sm:%s64]
    %v66 = vunpack.c.l.bf16 %v65
    %v67 = vunpack.c.h.bf16 %v65
    %s68 = scalar_lea.vmem [#allocation1], 40
    %69 = vst [vmem:[%s68] sm:%s5] %v66
    %s70 = smul.addr 2, 4
    %s71 = scalar_lea.vmem %s0, %s70
    %s72 = sshrl.u32 %s5, 1
    %s73 = sor.u32 %s5, %s72
    %s74 = sand.u32 %s73, 85
    %s75 = sshrl.u32 %s74, 1
    %s76 = sor.u32 %s74, %s75
    %s77 = sand.u32 51, %s76
    %s78 = sshrl.u32 %s77, 2
    %s79 = sor.u32 %s77, %s78
    %s80 = sand.u32 15, %s79
    %v81 = vld [vmem:[%s71] sm:%s80]
    %v82 = vunpack.c.l.bf16 %v81
    %v83 = vunpack.c.h.bf16 %v81
    %s84 = scalar_lea.vmem [#allocation1], 32
    %85 = vst [vmem:[%s84] sm:%s5] %v82
    %s86 = smul.addr 2, 3
    %s87 = scalar_lea.vmem %s0, %s86
    %s88 = sshrl.u32 %s5, 1
    %s89 = sor.u32 %s5, %s88
    %s90 = sand.u32 %s89, 85
    %s91 = sshrl.u32 %s90, 1
    %s92 = sor.u32 %s90, %s91
    %s93 = sand.u32 51, %s92
    %s94 = sshrl.u32 %s93, 2
    %s95 = sor.u32 %s93, %s94
    %s96 = sand.u32 15, %s95
    %v97 = vld [vmem:[%s87] sm:%s96]
    %v98 = vunpack.c.l.bf16 %v97
    %v99 = vunpack.c.h.bf16 %v97
    %s100 = scalar_lea.vmem [#allocation1], 24
    %101 = vst [vmem:[%s100] sm:%s5] %v98
    %s102 = smul.addr 2, 2
    %s103 = scalar_lea.vmem %s0, %s102
    %s104 = sshrl.u32 %s5, 1
    %s105 = sor.u32 %s5, %s104
    %s106 = sand.u32 %s105, 85
    %s107 = sshrl.u32 %s106, 1
    %s108 = sor.u32 %s106, %s107
    %s109 = sand.u32 51, %s108
    %s110 = sshrl.u32 %s109, 2
    %s111 = sor.u32 %s109, %s110
    %s112 = sand.u32 15, %s111
    %v113 = vld [vmem:[%s103] sm:%s112]
    %v114 = vunpack.c.l.bf16 %v113
    %v115 = vunpack.c.h.bf16 %v113
    %s116 = scalar_lea.vmem [#allocation1], 16
    %117 = vst [vmem:[%s116] sm:%s5] %v114
    %s118 = scalar_lea.vmem %s0, 2
    %s119 = sshrl.u32 %s5, 1
    %s120 = sor.u32 %s5, %s119
    %s121 = sand.u32 %s120, 85
    %s122 = sshrl.u32 %s121, 1
    %s123 = sor.u32 %s121, %s122
    %s124 = sand.u32 51, %s123
    %s125 = sshrl.u32 %s124, 2
    %s126 = sor.u32 %s124, %s125
    %s127 = sand.u32 15, %s126
    %v128 = vld [vmem:[%s118] sm:%s127]
    %v129 = vunpack.c.l.bf16 %v128
    %v130 = vunpack.c.h.bf16 %v128
    %s131 = scalar_lea.vmem [#allocation1], 8
    %132 = vst [vmem:[%s131] sm:%s5] %v129
    %s133 = sshrl.u32 %s5, 1
    %s134 = sor.u32 %s5, %s133
    %s135 = sand.u32 %s134, 85
    %s136 = sshrl.u32 %s135, 1
    %s137 = sor.u32 %s135, %s136
    %s138 = sand.u32 51, %s137
    %s139 = sshrl.u32 %s138, 2
    %s140 = sor.u32 %s138, %s139
    %s141 = sand.u32 15, %s140
    %v142 = vld [vmem:[%s0] sm:%s141]
    %v143 = vunpack.c.l.bf16 %v142
    %v144 = vunpack.c.h.bf16 %v142
    %145 = vst [vmem:[#allocation1] sm:%s5] %v143
    %v146 = vld [vmem:[#allocation1] sm:$0xf]
    %vm147 = vcmask 64512
    %148 = vst.msk [vmem:[#allocation0] sm:$0xf] %vm147, %v146
    %s149 = scalar_lea.vmem [#allocation1], 8
    %v150 = vld [vmem:[%s149] sm:$0xf]
    %vm151 = vcmask 64512
    %s152 = scalar_lea.vmem [#allocation0], 4
    %153 = vst.msk [vmem:[%s152] sm:$0xf] %vm151, %v150
    %s154 = scalar_lea.vmem [#allocation1], 16
    %v155 = vld [vmem:[%s154] sm:$0xf]
    %vm156 = vcmask 64512
    %s157 = scalar_lea.vmem [#allocation0], 8
    %158 = vst.msk [vmem:[%s157] sm:$0xf] %vm156, %v155
    %s159 = scalar_lea.vmem [#allocation1], 24
    %v160 = vld [vmem:[%s159] sm:$0xf]
    %vm161 = vcmask 64512
    %s162 = scalar_lea.vmem [#allocation0], 16
    %163 = vst.msk [vmem:[%s162] sm:$0xf] %vm161, %v160
    %s164 = scalar_lea.vmem [#allocation1], 32
    %v165 = vld [vmem:[%s164] sm:$0xf]
    %vm166 = vcmask 64512
    %s167 = scalar_lea.vmem [#allocation0], 20
    %168 = vst.msk [vmem:[%s167] sm:$0xf] %vm166, %v165
    %s169 = scalar_lea.vmem [#allocation1], 40
    %v170 = vld [vmem:[%s169] sm:$0xf]
    %vm171 = vcmask 64512
    %s172 = scalar_lea.vmem [#allocation0], 24
    %173 = vst.msk [vmem:[%s172] sm:$0xf] %vm171, %v170
    %s174 = scalar_lea.vmem [#allocation1], 48
    %v175 = vld [vmem:[%s174] sm:$0xf]
    %vm176 = vcmask 64512
    %s177 = scalar_lea.vmem [#allocation0], 32
    %178 = vst.msk [vmem:[%s177] sm:$0xf] %vm176, %v175
    %s179 = scalar_lea.vmem [#allocation1], 56
    %v180 = vld [vmem:[%s179] sm:$0xf]
    %vm181 = vcmask 64512
    %s182 = scalar_lea.vmem [#allocation0], 36
    %183 = vst.msk [vmem:[%s182] sm:$0xf] %vm181, %v180
    %s184 = scalar_lea.vmem [#allocation1], 64
    %v185 = vld [vmem:[%s184] sm:$0xf]
    %vm186 = vcmask 64512
    %s187 = scalar_lea.vmem [#allocation0], 40
    %188 = vst.msk [vmem:[%s187] sm:$0xf] %vm186, %v185
    %s190 = smul.u32 4, 2
    %s191 = sshll.u32 1, %s190
    %s192 = ssub.s32 %s191, 1
    %s193 = sshrl.u32 %s190, 1
    %v194 = vld [vmem:[#allocation0] sm:%s192]
    %v195 = vpack.c.bf16 0.0, %v194
    %s196 = sshll.u32 1, %s193
    %s197 = ssub.s32 %s196, 1
    %198 = vst [vmem:[%s1] sm:%s197] %v195
    %s199 = scalar_lea.vmem [#allocation0], 8
    %v200 = vld [vmem:[%s199] sm:%s192]
    %v201 = vpack.c.bf16 0.0, %v200
    %s202 = sshll.u32 1, %s193
    %s203 = ssub.s32 %s202, 1
    %s204 = scalar_lea.vmem %s1, 4
    %205 = vst [vmem:[%s204] sm:%s203] %v201
    %s206 = scalar_lea.vmem [#allocation0], 16
    %v207 = vld [vmem:[%s206] sm:%s192]
    %v208 = vpack.c.bf16 0.0, %v207
    %s209 = sshll.u32 1, %s193
    %s210 = ssub.s32 %s209, 1
    %s211 = smul.addr 4, 2
    %s212 = scalar_lea.vmem %s1, %s211
    %213 = vst [vmem:[%s212] sm:%s210] %v208
    %s214 = scalar_lea.vmem [#allocation0], 24
    %v215 = vld [vmem:[%s214] sm:%s192]
    %v216 = vpack.c.bf16 0.0, %v215
    %s217 = sshll.u32 1, %s193
    %s218 = ssub.s32 %s217, 1
    %s219 = smul.addr 4, 3
    %s220 = scalar_lea.vmem %s1, %s219
    %221 = vst [vmem:[%s220] sm:%s218] %v216
    %s222 = scalar_lea.vmem [#allocation0], 32
    %v223 = vld [vmem:[%s222] sm:%s192]
    %v224 = vpack.c.bf16 0.0, %v223
    %s225 = sshll.u32 1, %s193
    %s226 = ssub.s32 %s225, 1
    %s227 = smul.addr 4, 4
    %s228 = scalar_lea.vmem %s1, %s227
    %229 = vst [vmem:[%s228] sm:%s226] %v224
    %s230 = scalar_lea.vmem [#allocation0], 40
    %v231 = vld [vmem:[%s230] sm:%s192]
    %v232 = vpack.c.bf16 0.0, %v231
    %s233 = sshll.u32 1, %s193
    %s234 = ssub.s32 %s233, 1
    %s235 = smul.addr 4, 5
    %s236 = scalar_lea.vmem %s1, %s235
    %237 = vst [vmem:[%s236] sm:%s234] %v232

// kernel: conv3d_aware.1
$region0: #{conv3d_aware.1}
  #allocation0 [shape = 'u32[]', space=smem, size = 0x4, offset = 0x4, fixed_abs, tag = 'smem constant byte address 0x4 - core index']
  #allocation1 [shape = 'u32[144,128]{1,0:T(1,128)}', space=vmem, size = 0x12000, scoped, tag = 'internal scratch']
  %s0 = inlined_call_operand.vmem [shape: bf16[2,16,48,4], index: 0, kind: input, shape index: {}]
  %s1 = inlined_call_operand.vmem [shape: f32[2,3,16,4], index: 1, kind: input, shape index: {}]
  %s2 = inlined_call_operand.vmem [shape: f32[2,3,16,4], index: 2, kind: input, shape index: {}]
  %s3 = inlined_call_operand.vmem [shape: bf16[3,3,12,128], index: 3, kind: input, shape index: {}]
  %s4 = inlined_call_operand.vmem [shape: bf16[3,3,12,128], index: 4, kind: input, shape index: {}]
  %s5 = inlined_call_operand.vmem [shape: bf16[3,3,12,128], index: 5, kind: input, shape index: {}]
  %s6 = inlined_call_operand.vmem [shape: f32[3,1,128], index: 6, kind: input, shape index: {}]
  %s7 = inlined_call_operand.vmem [shape: f32[2,16,48,128], index: 7, kind: output, shape index: {}]
  %s8 = sld [smem:[#allocation0]]
  $region136: #{conv3d_aware.1} parent=0
    _
  %s10 = ssub.s32 1, %s8
  %s11 = scalar_select 0, %s10, %s8
  $region1: #{conv3d_aware.1} parent=0
    #allocation2 [shape = 'u8[131072]{0}', space=vmem, size = 0x20000, scoped, tag = 'input window, operand 0']
    #allocation3 [shape = 'u8[262144]{0}', space=vmem, size = 0x40000, scoped, tag = 'output window, operand 0']
    loop: start=0, step=1, limit=8
    $region2: #{conv3d_aware.1} parent=1 // loop_pre_header
      _
    $region3: #{conv3d_aware.1} parent=1 // loop_header
      %s13 = sphi 0, %s17
      %p14 = scmp.ge.s32.totalorder %s13, 8
      %s20 = sphi 0, %s32
      %s21 = sphi 0, %s28
      %s22 = sphi 0, %s20
      %s23 = sphi 0, %s21
      %s24 = sphi 0, %s22
      %s25 = sphi 0, %s23
      %s37 = sphi 0, %s39
      %s40 = sphi 0, %s37
      %s41 = sphi 0, %s40
      %s57 = sphi 0, %s41
      %s65 = sphi 0, %s67
      %s68 = sphi 0, %s65
      %s69 = sphi 0, %s68
      %s85 = sphi 0, %s69
      %s93 = sphi 0, %s95
      %s96 = sphi 0, %s93
      %s97 = sphi 0, %s96
      %s113 = sphi 0, %s97
      %s119 = sphi 0, %s121
      %s122 = sphi 0, %s119
      %s123 = sphi 0, %s122
      %s139 = sphi 0, %s123
      %s145 = sphi 0, %s147
      %s148 = sphi 0, %s145
      %s149 = sphi 0, %s148
      %s165 = sphi 0, %s149
      %s171 = sphi 0, %s173
      %s174 = sphi 0, %s171
      %s175 = sphi 0, %s174
      %s191 = sphi 0, %s175
      %s197 = sphi 0, %s199
      %s200 = sphi 0, %s197
      %s201 = sphi 0, %s200
      %s217 = sphi 0, %s201
      %s225 = sphi 0, %s227
      %s228 = sphi 0, %s225
      %s229 = sphi 0, %s228
      %s245 = sphi 0, %s229
    $region4: #{conv3d_aware.1} parent=1 // loop_header_branch
      %16 = sbr.rel (%p14) target = $region8
    $region5: #{conv3d_aware.1} parent=1 // loop_body
      %s18 = ssub.s32 %s13, 1
      %s19 = ssub.s32 %s13, 2
      %s26 = sadd.s32 1, %s21
      %p27 = scmp.ge.s32.totalorder %s26, 3
      %s28 = scalar_select %p27, 0, %s26
      %s29 = sadd.s32 1, %s20
      %s30 = scalar_select %p27, %s29, %s20
      %p31 = scmp.ge.s32.totalorder %s30, 2
      %s32 = scalar_select %p31, 0, %s30
      %s33 = ssub.s32 %s20, %s32
      %s34 = ssub.s32 %s21, %s28
      %s35 = sor.u32 %s33, %s34
      %p36 = scmp.eq.s32.totalorder %s35, 0
      %s38 = sadd.s32 %s37, 1
      %s39 = scalar_select %p36, %s37, %s38
      %p42 = pneg %p36
      %p43 = scmp.eq.s32.totalorder %s13, 5
      %p44 = por %p42, %p43
      %p45 = scmp.ne.s32.totalorder %s37, %s40
      %p46 = scmp.eq.s32.totalorder %s13, 0
      %p47 = por %p45, %p46
      %p48 = scmp.ne.s32.totalorder %s37, %s40
      %p49 = scmp.eq.s32.totalorder %s18, 5
      %p50 = por %p48, %p49
      %p51 = scmp.ne.s32.totalorder %s40, %s41
      %p52 = scmp.eq.s32.totalorder %s18, 0
      %p53 = por %p51, %p52
      %p54 = scmp.ne.s32.totalorder %s40, %s41
      %p55 = scmp.eq.s32.totalorder %s19, 5
      %p56 = por %p54, %p55
      %p58 = scmp.ne.s32.totalorder %s41, %s57
      %p59 = scmp.eq.s32.totalorder %s19, 0
      %p60 = por %p58, %p59
      %s61 = ssub.s32 %s20, %s32
      %s62 = ssub.s32 %s21, %s28
      %s63 = sor.u32 %s61, %s62
      %p64 = scmp.eq.s32.totalorder %s63, 0
      %s66 = sadd.s32 %s65, 1
      %s67 = scalar_select %p64, %s65, %s66
      %p70 = pneg %p64
      %p71 = scmp.eq.s32.totalorder %s13, 5
      %p72 = por %p70, %p71
      %p73 = scmp.ne.s32.totalorder %s65, %s68
      %p74 = scmp.eq.s32.totalorder %s13, 0
      %p75 = por %p73, %p74
      %p76 = scmp.ne.s32.totalorder %s65, %s68
      %p77 = scmp.eq.s32.totalorder %s18, 5
      %p78 = por %p76, %p77
      %p79 = scmp.ne.s32.totalorder %s68, %s69
      %p80 = scmp.eq.s32.totalorder %s18, 0
      %p81 = por %p79, %p80
      %p82 = scmp.ne.s32.totalorder %s68, %s69
      %p83 = scmp.eq.s32.totalorder %s19, 5
      %p84 = por %p82, %p83
      %p86 = scmp.ne.s32.totalorder %s69, %s85
      %p87 = scmp.eq.s32.totalorder %s19, 0
      %p88 = por %p86, %p87
      %s89 = ssub.s32 %s20, %s32
      %s90 = ssub.s32 %s21, %s28
      %s91 = sor.u32 %s89, %s90
      %p92 = scmp.eq.s32.totalorder %s91, 0
      %s94 = sadd.s32 %s93, 1
      %s95 = scalar_select %p92, %s93, %s94
      %p98 = pneg %p92
      %p99 = scmp.eq.s32.totalorder %s13, 5
      %p100 = por %p98, %p99
      %p101 = scmp.ne.s32.totalorder %s93, %s96
      %p102 = scmp.eq.s32.totalorder %s13, 0
      %p103 = por %p101, %p102
      %p104 = scmp.ne.s32.totalorder %s93, %s96
      %p105 = scmp.eq.s32.totalorder %s18, 5
      %p106 = por %p104, %p105
      %p107 = scmp.ne.s32.totalorder %s96, %s97
      %p108 = scmp.eq.s32.totalorder %s18, 0
      %p109 = por %p107, %p108
      %p110 = scmp.ne.s32.totalorder %s96, %s97
      %p111 = scmp.eq.s32.totalorder %s19, 5
      %p112 = por %p110, %p111
      %p114 = scmp.ne.s32.totalorder %s97, %s113
      %p115 = scmp.eq.s32.totalorder %s19, 0
      %p116 = por %p114, %p115
      %s117 = ssub.s32 %s21, %s28
      %p118 = scmp.eq.s32.totalorder %s117, 0
      %s120 = sadd.s32 %s119, 1
      %s121 = scalar_select %p118, %s119, %s120
      %p124 = pneg %p118
      %p125 = scmp.eq.s32.totalorder %s13, 5
      %p126 = por %p124, %p125
      %p127 = scmp.ne.s32.totalorder %s119, %s122
      %p128 = scmp.eq.s32.totalorder %s13, 0
      %p129 = por %p127, %p128
      %p130 = scmp.ne.s32.totalorder %s119, %s122
      %p131 = scmp.eq.s32.totalorder %s18, 5
      %p132 = por %p130, %p131
      %p133 = scmp.ne.s32.totalorder %s122, %s123
      %p134 = scmp.eq.s32.totalorder %s18, 0
      %p135 = por %p133, %p134
      %p136 = scmp.ne.s32.totalorder %s122, %s123
      %p137 = scmp.eq.s32.totalorder %s19, 5
      %p138 = por %p136, %p137
      %p140 = scmp.ne.s32.totalorder %s123, %s139
      %p141 = scmp.eq.s32.totalorder %s19, 0
      %p142 = por %p140, %p141
      %s143 = ssub.s32 %s21, %s28
      %p144 = scmp.eq.s32.totalorder %s143, 0
      %s146 = sadd.s32 %s145, 1
      %s147 = scalar_select %p144, %s145, %s146
      %p150 = pneg %p144
      %p151 = scmp.eq.s32.totalorder %s13, 5
      %p152 = por %p150, %p151
      %p153 = scmp.ne.s32.totalorder %s145, %s148
      %p154 = scmp.eq.s32.totalorder %s13, 0
      %p155 = por %p153, %p154
      %p156 = scmp.ne.s32.totalorder %s145, %s148
      %p157 = scmp.eq.s32.totalorder %s18, 5
      %p158 = por %p156, %p157
      %p159 = scmp.ne.s32.totalorder %s148, %s149
      %p160 = scmp.eq.s32.totalorder %s18, 0
      %p161 = por %p159, %p160
      %p162 = scmp.ne.s32.totalorder %s148, %s149
      %p163 = scmp.eq.s32.totalorder %s19, 5
      %p164 = por %p162, %p163
      %p166 = scmp.ne.s32.totalorder %s149, %s165
      %p167 = scmp.eq.s32.totalorder %s19, 0
      %p168 = por %p166, %p167
      %s169 = ssub.s32 %s21, %s28
      %p170 = scmp.eq.s32.totalorder %s169, 0
      %s172 = sadd.s32 %s171, 1
      %s173 = scalar_select %p170, %s171, %s172
      %p176 = pneg %p170
      %p177 = scmp.eq.s32.totalorder %s13, 5
      %p178 = por %p176, %p177
      %p179 = scmp.ne.s32.totalorder %s171, %s174
      %p180 = scmp.eq.s32.totalorder %s13, 0
      %p181 = por %p179, %p180
      %p182 = scmp.ne.s32.totalorder %s171, %s174
      %p183 = scmp.eq.s32.totalorder %s18, 5
      %p184 = por %p182, %p183
      %p185 = scmp.ne.s32.totalorder %s174, %s175
      %p186 = scmp.eq.s32.totalorder %s18, 0
      %p187 = por %p185, %p186
      %p188 = scmp.ne.s32.totalorder %s174, %s175
      %p189 = scmp.eq.s32.totalorder %s19, 5
      %p190 = por %p188, %p189
      %p192 = scmp.ne.s32.totalorder %s175, %s191
      %p193 = scmp.eq.s32.totalorder %s19, 0
      %p194 = por %p192, %p193
      %s195 = ssub.s32 %s21, %s28
      %p196 = scmp.eq.s32.totalorder %s195, 0
      %s198 = sadd.s32 %s197, 1
      %s199 = scalar_select %p196, %s197, %s198
      %p202 = pneg %p196
      %p203 = scmp.eq.s32.totalorder %s13, 5
      %p204 = por %p202, %p203
      %p205 = scmp.ne.s32.totalorder %s197, %s200
      %p206 = scmp.eq.s32.totalorder %s13, 0
      %p207 = por %p205, %p206
      %p208 = scmp.ne.s32.totalorder %s197, %s200
      %p209 = scmp.eq.s32.totalorder %s18, 5
      %p210 = por %p208, %p209
      %p211 = scmp.ne.s32.totalorder %s200, %s201
      %p212 = scmp.eq.s32.totalorder %s18, 0
      %p213 = por %p211, %p212
      %p214 = scmp.ne.s32.totalorder %s200, %s201
      %p215 = scmp.eq.s32.totalorder %s19, 5
      %p216 = por %p214, %p215
      %p218 = scmp.ne.s32.totalorder %s201, %s217
      %p219 = scmp.eq.s32.totalorder %s19, 0
      %p220 = por %p218, %p219
      %s221 = ssub.s32 %s20, %s32
      %s222 = ssub.s32 %s21, %s28
      %s223 = sor.u32 %s221, %s222
      %p224 = scmp.eq.s32.totalorder %s223, 0
      %s226 = sadd.s32 %s225, 1
      %s227 = scalar_select %p224, %s225, %s226
      %p230 = pneg %p224
      %p231 = scmp.eq.s32.totalorder %s13, 5
      %p232 = por %p230, %p231
      %p233 = scmp.ne.s32.totalorder %s225, %s228
      %p234 = scmp.eq.s32.totalorder %s13, 0
      %p235 = por %p233, %p234
      %p236 = scmp.ne.s32.totalorder %s225, %s228
      %p237 = scmp.eq.s32.totalorder %s18, 5
      %p238 = por %p236, %p237
      %p239 = scmp.ne.s32.totalorder %s228, %s229
      %p240 = scmp.eq.s32.totalorder %s18, 0
      %p241 = por %p239, %p240
      %p242 = scmp.ne.s32.totalorder %s228, %s229
      %p243 = scmp.eq.s32.totalorder %s19, 5
      %p244 = por %p242, %p243
      %p246 = scmp.ne.s32.totalorder %s229, %s245
      %p247 = scmp.eq.s32.totalorder %s19, 0
      %p248 = por %p246, %p247
      %p249 = scmp.le.s32.totalorder 1, %s13
      %p250 = scmp.lt.s32.totalorder %s13, 7
      %p251 = pnand %p249, %p250
      %p252 = pneg %p251
      // Predicated region
      $region9: #{conv3d_aware.1} parent=5 // pred_check
        _
      $region10: #{conv3d_aware.1} parent=5 // pred_check_branch
        %254 = sbr.rel (%p251) target = $region12
      $region11: #{conv3d_aware.1} parent=5 // pred_region
        %s255 = ssub.s32 %s13, 1
      $region12: #{conv3d_aware.1} parent=5 // pred_fallthru
        _
      %p256 = scmp.lt.s32.totalorder %s13, 6
      // Predicated region
      $region13: #{conv3d_aware.1} parent=5 // pred_check
        %p257 = pneg %p256
      $region14: #{conv3d_aware.1} parent=5 // pred_check_branch
        %259 = sbr.rel (%p257) target = $region16
      $region15: #{conv3d_aware.1} parent=5 // pred_region
        // Predicated region
        $region17: #{conv3d_aware.1} parent=15 // pred_check
          %p260 = pneg %p47
        $region18: #{conv3d_aware.1} parent=15 // pred_check_branch
          %262 = sbr.rel (%p260) target = $region20
        $region19: #{conv3d_aware.1} parent=15 // pred_region
          %s263 = sand.u32 %s37, 1
          %s264 = sand.u32 %s37, 1
          %s265 = smul.addr %s264, 128
          %s266 = scalar_lea.vmem [#allocation2], %s265
          %s267 = smul.u32 2, %s21
          %s268 = smul.addr %s20, 96
          %s269 = sadd.s32 %s267, %s268
          %s270 = smul.addr %s269, 4
          %s271 = scalar_lea.vmem %s0, %s270
          // Predicated region
          $region21: #{conv3d_aware.1} parent=19 // pred_check
            _
          $region22: #{conv3d_aware.1} parent=19 // pred_check_branch
            %273 = sbr.rel (0) target = $region24
          $region23: #{conv3d_aware.1} parent=19 // pred_region
            // Predicated region
            $region25: #{conv3d_aware.1} parent=23 // pred_check
              _
            $region26: #{conv3d_aware.1} parent=23 // pred_check_branch
              %275 = sbr.rel target = $region28
            $region27: #{conv3d_aware.1} parent=23 // pred_region
              // Predicated region
              $region40: #{conv3d_aware.1} parent=27 // pred_check
                _
              $region41: #{conv3d_aware.1} parent=27 // pred_check_branch
                %353 = sbr.rel (0) target = $region43
              $region42: #{conv3d_aware.1} parent=27 // pred_region
                loop: start=0, step=1, limit=1
                $region44: #{conv3d_aware.1} parent=42 // loop_pre_header
                  _
                $region45: #{conv3d_aware.1} parent=42 // loop_header
                  %s355 = sphi 0, %s359
                  %p356 = scmp.ge.s32.totalorder %s355, 1
                  %s360 = sphi %s271, %s271
                  %s361 = sphi %s266, %s266
                $region46: #{conv3d_aware.1} parent=42 // loop_header_branch
                  %358 = sbr.rel (%p356) target = $region50
                $region47: #{conv3d_aware.1} parent=42 // loop_body
                  _
                $region48: #{conv3d_aware.1} parent=42 // loop_footer
                  %s359 = sadd.s32 1, %s355
                $region49: #{conv3d_aware.1} parent=42 // loop_footer_branch
                  %354 = sbr.rel target = $region45
                $region50: #{conv3d_aware.1} parent=42 // loop_exit
                  _
                %s363 = ssub.s32 16, 1
                loop: start=0, step=1, limit=1
                $region51: #{conv3d_aware.1} parent=42 // loop_pre_header
                  _
                $region52: #{conv3d_aware.1} parent=42 // loop_header
                  %s365 = sphi 0, %s369
                  %p366 = scmp.ge.s32.totalorder %s365, 1
                  %s370 = sphi %s271, %s271
                  %s371 = sphi %s266, %s266
                $region53: #{conv3d_aware.1} parent=42 // loop_header_branch
                  %368 = sbr.rel (%p366) target = $region57
                $region54: #{conv3d_aware.1} parent=42 // loop_body
                  %v372 = vld [vmem:[%s370] sm:%s363]
                  %373 = vst [vmem:[%s371] sm:%s363] %v372
                  %v374 = vld [vmem:[%s370 + $0x4] sm:%s363]
                  %375 = vst [vmem:[%s371 + $0x4] sm:%s363] %v374
                  %v376 = vld [vmem:[%s370 + $0x18] sm:%s363]
                  %377 = vst [vmem:[%s371 + $0x8] sm:%s363] %v376
                  %v378 = vld [vmem:[%s370 + $0x1c] sm:%s363]
                  %379 = vst [vmem:[%s371 + $0xc] sm:%s363] %v378
                  %v380 = vld [vmem:[%s370 + $0x30] sm:%s363]
                  %381 = vst [vmem:[%s371 + $0x10] sm:%s363] %v380
                  %v382 = vld [vmem:[%s370 + $0x34] sm:%s363]
                  %383 = vst [vmem:[%s371 + $0x14] sm:%s363] %v382
                  %v384 = vld [vmem:[%s370 + $0x48] sm:%s363]
                  %385 = vst [vmem:[%s371 + $0x18] sm:%s363] %v384
                  %v386 = vld [vmem:[%s370 + $0x4c] sm:%s363]
                  %387 = vst [vmem:[%s371 + $0x1c] sm:%s363] %v386
                  %v388 = vld [vmem:[%s370 + $0x60] sm:%s363]
                  %389 = vst [vmem:[%s371 + $0x20] sm:%s363] %v388
                  %v390 = vld [vmem:[%s370 + $0x64] sm:%s363]
                  %391 = vst [vmem:[%s371 + $0x24] sm:%s363] %v390
                  %v392 = vld [vmem:[%s370 + $0x78] sm:%s363]
                  %393 = vst [vmem:[%s371 + $0x28] sm:%s363] %v392
                  %v394 = vld [vmem:[%s370 + $0x7c] sm:%s363]
                  %395 = vst [vmem:[%s371 + $0x2c] sm:%s363] %v394
                  %v396 = vld [vmem:[%s370 + $0x90] sm:%s363]
                  %397 = vst [vmem:[%s371 + $0x30] sm:%s363] %v396
                  %v398 = vld [vmem:[%s370 + $0x94] sm:%s363]
                  %399 = vst [vmem:[%s371 + $0x34] sm:%s363] %v398
                  %v400 = vld [vmem:[%s370 + $0xa8] sm:%s363]
                  %401 = vst [vmem:[%s371 + $0x38] sm:%s363] %v400
                  %v402 = vld [vmem:[%s370 + $0xac] sm:%s363]
                  %403 = vst [vmem:[%s371 + $0x3c] sm:%s363] %v402
                  %v404 = vld [vmem:[%s370 + $0xc0] sm:%s363]
                  %405 = vst [vmem:[%s371 + $0x40] sm:%s363] %v404
                  %v406 = vld [vmem:[%s370 + $0xc4] sm:%s363]
                  %407 = vst [vmem:[%s371 + $0x44] sm:%s363] %v406
                  %v408 = vld [vmem:[%s370 + $0xd8] sm:%s363]
                  %409 = vst [vmem:[%s371 + $0x48] sm:%s363] %v408
                  %v410 = vld [vmem:[%s370 + $0xdc] sm:%s363]
                  %411 = vst [vmem:[%s371 + $0x4c] sm:%s363] %v410
                  %v412 = vld [vmem:[%s370 + $0xf0] sm:%s363]
                  %413 = vst [vmem:[%s371 + $0x50] sm:%s363] %v412
                  %v414 = vld [vmem:[%s370 + $0xf4] sm:%s363]
                  %415 = vst [vmem:[%s371 + $0x54] sm:%s363] %v414
                  %v416 = vld [vmem:[%s370 + $0x108] sm:%s363]
                  %417 = vst [vmem:[%s371 + $0x58] sm:%s363] %v416
                  %v418 = vld [vmem:[%s370 + $0x10c] sm:%s363]
                  %419 = vst [vmem:[%s371 + $0x5c] sm:%s363] %v418
                  %v420 = vld [vmem:[%s370 + $0x120] sm:%s363]
                  %421 = vst [vmem:[%s371 + $0x60] sm:%s363] %v420
                  %v422 = vld [vmem:[%s370 + $0x124] sm:%s363]
                  %423 = vst [vmem:[%s371 + $0x64] sm:%s363] %v422
                  %v424 = vld [vmem:[%s370 + $0x138] sm:%s363]
                  %425 = vst [vmem:[%s371 + $0x68] sm:%s363] %v424
                  %v426 = vld [vmem:[%s370 + $0x13c] sm:%s363]
                  %427 = vst [vmem:[%s371 + $0x6c] sm:%s363] %v426
                  %v428 = vld [vmem:[%s370 + $0x150] sm:%s363]
                  %429 = vst [vmem:[%s371 + $0x70] sm:%s363] %v428
                  %v430 = vld [vmem:[%s370 + $0x154] sm:%s363]
                  %431 = vst [vmem:[%s371 + $0x74] sm:%s363] %v430
                  %v432 = vld [vmem:[%s370 + $0x168] sm:%s363]
                  %433 = vst [vmem:[%s371 + $0x78] sm:%s363] %v432
                  %v434 = vld [vmem:[%s370 + $0x16c] sm:%s363]
                  %435 = vst [vmem:[%s371 + $0x7c] sm:%s363] %v434
                $region55: #{conv3d_aware.1} parent=42 // loop_footer
                  %s369 = sadd.s32 1, %s365
                $region56: #{conv3d_aware.1} parent=42 // loop_footer_branch
                  %364 = sbr.rel target = $region52
                $region57: #{conv3d_aware.1} parent=42 // loop_exit
                  _
              $region43: #{conv3d_aware.1} parent=27 // pred_fallthru
                _
            $region28: #{conv3d_aware.1} parent=23 // pred_fallthru
              _
            // Predicated region
            $region29: #{conv3d_aware.1} parent=23 // pred_check
              _
            $region30: #{conv3d_aware.1} parent=23 // pred_check_branch
              %277 = sbr.rel (0) target = $region32
            $region31: #{conv3d_aware.1} parent=23 // pred_region
              %s279 = ssub.s32 16, 1
              loop: start=0, step=1, limit=1
              $region33: #{conv3d_aware.1} parent=31 // loop_pre_header
                _
              $region34: #{conv3d_aware.1} parent=31 // loop_header
                %s281 = sphi 0, %s285
                %p282 = scmp.ge.s32.totalorder %s281, 1
                %s286 = sphi %s271, %s271
                %s287 = sphi %s266, %s266
              $region35: #{conv3d_aware.1} parent=31 // loop_header_branch
                %284 = sbr.rel (%p282) target = $region39
              $region36: #{conv3d_aware.1} parent=31 // loop_body
                %v288 = vld [vmem:[%s286] sm:%s279]
                %289 = vst [vmem:[%s287] sm:%s279] %v288
                %v290 = vld [vmem:[%s286 + $0x4] sm:%s279]
                %291 = vst [vmem:[%s287 + $0x4] sm:%s279] %v290
                %v292 = vld [vmem:[%s286 + $0x18] sm:%s279]
                %293 = vst [vmem:[%s287 + $0x8] sm:%s279] %v292
                %v294 = vld [vmem:[%s286 + $0x1c] sm:%s279]
                %295 = vst [vmem:[%s287 + $0xc] sm:%s279] %v294
                %v296 = vld [vmem:[%s286 + $0x30] sm:%s279]
                %297 = vst [vmem:[%s287 + $0x10] sm:%s279] %v296
                %v298 = vld [vmem:[%s286 + $0x34] sm:%s279]
                %299 = vst [vmem:[%s287 + $0x14] sm:%s279] %v298
                %v300 = vld [vmem:[%s286 + $0x48] sm:%s279]
                %301 = vst [vmem:[%s287 + $0x18] sm:%s279] %v300
                %v302 = vld [vmem:[%s286 + $0x4c] sm:%s279]
                %303 = vst [vmem:[%s287 + $0x1c] sm:%s279] %v302
                %v304 = vld [vmem:[%s286 + $0x60] sm:%s279]
                %305 = vst [vmem:[%s287 + $0x20] sm:%s279] %v304
                %v306 = vld [vmem:[%s286 + $0x64] sm:%s279]
                %307 = vst [vmem:[%s287 + $0x24] sm:%s279] %v306
                %v308 = vld [vmem:[%s286 + $0x78] sm:%s279]
                %309 = vst [vmem:[%s287 + $0x28] sm:%s279] %v308
                %v310 = vld [vmem:[%s286 + $0x7c] sm:%s279]
                %311 = vst [vmem:[%s287 + $0x2c] sm:%s279] %v310
                %v312 = vld [vmem:[%s286 + $0x90] sm:%s279]
                %313 = vst [vmem:[%s287 + $0x30] sm:%s279] %v312
                %v314 = vld [vmem:[%s286 + $0x94] sm:%s279]
                %315 = vst [vmem:[%s287 + $0x34] sm:%s279] %v314
                %v316 = vld [vmem:[%s286 + $0xa8] sm:%s279]
                %317 = vst [vmem:[%s287 + $0x38] sm:%s279] %v316
                %v318 = vld [vmem:[%s286 + $0xac] sm:%s279]
                %319 = vst [vmem:[%s287 + $0x3c] sm:%s279] %v318
                %v320 = vld [vmem:[%s286 + $0xc0] sm:%s279]
                %321 = vst [vmem:[%s287 + $0x40] sm:%s279] %v320
                %v322 = vld [vmem:[%s286 + $0xc4] sm:%s279]
                %323 = vst [vmem:[%s287 + $0x44] sm:%s279] %v322
                %v324 = vld [vmem:[%s286 + $0xd8] sm:%s279]
                %325 = vst [vmem:[%s287 + $0x48] sm:%s279] %v324
                %v326 = vld [vmem:[%s286 + $0xdc] sm:%s279]
                %327 = vst [vmem:[%s287 + $0x4c] sm:%s279] %v326
                %v328 = vld [vmem:[%s286 + $0xf0] sm:%s279]
                %329 = vst [vmem:[%s287 + $0x50] sm:%s279] %v328
                %v330 = vld [vmem:[%s286 + $0xf4] sm:%s279]
                %331 = vst [vmem:[%s287 + $0x54] sm:%s279] %v330
                %v332 = vld [vmem:[%s286 + $0x108] sm:%s279]
                %333 = vst [vmem:[%s287 + $0x58] sm:%s279] %v332
                %v334 = vld [vmem:[%s286 + $0x10c] sm:%s279]
                %335 = vst [vmem:[%s287 + $0x5c] sm:%s279] %v334
                %v336 = vld [vmem:[%s286 + $0x120] sm:%s279]
                %337 = vst [vmem:[%s287 + $0x60] sm:%s279] %v336
                %v338 = vld [vmem:[%s286 + $0x124] sm:%s279]
                %339 = vst [vmem:[%s287 + $0x64] sm:%s279] %v338
                %v340 = vld [vmem:[%s286 + $0x138] sm:%s279]
                %341 = vst [vmem:[%s287 + $0x68] sm:%s279] %v340
                %v342 = vld [vmem:[%s286 + $0x13c] sm:%s279]
                %343 = vst [vmem:[%s287 + $0x6c] sm:%s279] %v342
                %v344 = vld [vmem:[%s286 + $0x150] sm:%s279]
                %345 = vst [vmem:[%s287 + $0x70] sm:%s279] %v344
                %v346 = vld [vmem:[%s286 + $0x154] sm:%s279]
                %347 = vst [vmem:[%s287 + $0x74] sm:%s279] %v346
                %v348 = vld [vmem:[%s286 + $0x168] sm:%s279]
                %349 = vst [vmem:[%s287 + $0x78] sm:%s279] %v348
                %v350 = vld [vmem:[%s286 + $0x16c] sm:%s279]
                %351 = vst [vmem:[%s287 + $0x7c] sm:%s279] %v350
              $region37: #{conv3d_aware.1} parent=31 // loop_footer
                %s285 = sadd.s32 1, %s281
              $region38: #{conv3d_aware.1} parent=31 // loop_footer_branch
                %280 = sbr.rel target = $region34
              $region39: #{conv3d_aware.1} parent=31 // loop_exit
                _
            $region32: #{conv3d_aware.1} parent=23 // pred_fallthru
              _
          $region24: #{conv3d_aware.1} parent=19 // pred_fallthru
            _
          %436 = vnop
        $region20: #{conv3d_aware.1} parent=15 // pred_fallthru
          _
        // Predicated region
        $region58: #{conv3d_aware.1} parent=15 // pred_check
          %p437 = pneg %p75
        $region59: #{conv3d_aware.1} parent=15 // pred_check_branch
          %439 = sbr.rel (%p437) target = $region61
        $region60: #{conv3d_aware.1} parent=15 // pred_region
          %p440 = scmp.lt.s32.totalorder %s20, 1
          %s441 = scalar_select %p440, %s20, 1
          %p442 = scmp.lt.s32.totalorder %s21, 2
          %s443 = scalar_select %p442, %s21, 2
          %s444 = smul.addr %s443, 2
          %s445 = smul.addr %s441, 6
          %s446 = sadd.s32 %s444, %s445
          %s447 = smul.addr %s446, 8
          %s448 = scalar_lea.vmem %s1, %s447
        $region61: #{conv3d_aware.1} parent=15 // pred_fallthru
          _
        // Predicated region
        $region62: #{conv3d_aware.1} parent=15 // pred_check
          %p449 = pneg %p103
        $region63: #{conv3d_aware.1} parent=15 // pred_check_branch
          %451 = sbr.rel (%p449) target = $region65
        $region64: #{conv3d_aware.1} parent=15 // pred_region
          %p452 = scmp.lt.s32.totalorder %s20, 1
          %s453 = scalar_select %p452, %s20, 1
          %p454 = scmp.lt.s32.totalorder %s21, 2
          %s455 = scalar_select %p454, %s21, 2
          %s456 = smul.addr %s455, 2
          %s457 = smul.addr %s453, 6
          %s458 = sadd.s32 %s456, %s457
          %s459 = smul.addr %s458, 8
          %s460 = scalar_lea.vmem %s2, %s459
        $region65: #{conv3d_aware.1} parent=15 // pred_fallthru
          _
        // Predicated region
        $region66: #{conv3d_aware.1} parent=15 // pred_check
          %p461 = pneg %p129
        $region67: #{conv3d_aware.1} parent=15 // pred_check_branch
          %463 = sbr.rel (%p461) target = $region69
        $region68: #{conv3d_aware.1} parent=15 // pred_region
          %p464 = scmp.lt.s32.totalorder %s21, 2
          %s465 = scalar_select %p464, %s21, 2
          %s466 = smul.addr %s465, 6
          %s467 = smul.addr %s466, 4
          %s468 = scalar_lea.vmem %s3, %s467
        $region69: #{conv3d_aware.1} parent=15 // pred_fallthru
          _
        // Predicated region
        $region70: #{conv3d_aware.1} parent=15 // pred_check
          %p469 = pneg %p155
        $region71: #{conv3d_aware.1} parent=15 // pred_check_branch
          %471 = sbr.rel (%p469) target = $region73
        $region72: #{conv3d_aware.1} parent=15 // pred_region
          %p472 = scmp.lt.s32.totalorder %s21, 2
          %s473 = scalar_select %p472, %s21, 2
          %s474 = smul.addr %s473, 6
          %s475 = smul.addr %s474, 4
          %s476 = scalar_lea.vmem %s4, %s475
        $region73: #{conv3d_aware.1} parent=15 // pred_fallthru
          _
        // Predicated region
        $region74: #{conv3d_aware.1} parent=15 // pred_check
          %p477 = pneg %p181
        $region75: #{conv3d_aware.1} parent=15 // pred_check_branch
          %479 = sbr.rel (%p477) target = $region77
        $region76: #{conv3d_aware.1} parent=15 // pred_region
          %p480 = scmp.lt.s32.totalorder %s21, 2
          %s481 = scalar_select %p480, %s21, 2
          %s482 = smul.addr %s481, 6
          %s483 = smul.addr %s482, 4
          %s484 = scalar_lea.vmem %s5, %s483
        $region77: #{conv3d_aware.1} parent=15 // pred_fallthru
          _
        // Predicated region
        $region78: #{conv3d_aware.1} parent=15 // pred_check
          %p485 = pneg %p207
        $region79: #{conv3d_aware.1} parent=15 // pred_check_branch
          %487 = sbr.rel (%p485) target = $region81
        $region80: #{conv3d_aware.1} parent=15 // pred_region
          %p488 = scmp.lt.s32.totalorder %s21, 2
          %s489 = scalar_select %p488, %s21, 2
          %s490 = scalar_lea.vmem %s6, %s489
        $region81: #{conv3d_aware.1} parent=15 // pred_fallthru
          _
      $region16: #{conv3d_aware.1} parent=5 // pred_fallthru
        _
      %p491 = scmp.le.s32.totalorder 1, %s13
      %p492 = scmp.lt.s32.totalorder %s13, 7
      %p493 = pnand %p491, %p492
      %p494 = pneg %p493
      // Predicated region
      $region82: #{conv3d_aware.1} parent=5 // pred_check
        _
      $region83: #{conv3d_aware.1} parent=5 // pred_check_branch
        %496 = sbr.rel (%p493) target = $region85
      $region84: #{conv3d_aware.1} parent=5 // pred_region
        %s497 = ssub.s32 %s13, 1
        %s498 = sand.u32 %s40, 1
        %s499 = sand.u32 %s40, 1
        %s500 = smul.addr %s499, 128
        %s501 = scalar_lea.vmem [#allocation2], %s500
        // Predicated region
        $region86: #{conv3d_aware.1} parent=84 // pred_check
          %p502 = pneg %p53
        $region87: #{conv3d_aware.1} parent=84 // pred_check_branch
          %504 = sbr.rel (%p502) target = $region89
        $region88: #{conv3d_aware.1} parent=84 // pred_region
          _
        $region89: #{conv3d_aware.1} parent=84 // pred_fallthru
          _
        %s505 = sand.u32 %s40, 1
        %s506 = sand.u32 %s40, 1
        %s507 = smul.addr %s506, 128
        %s508 = scalar_lea.vmem [#allocation2], %s507
        %p509 = pneg %p53
        %p510 = pneg %p50
        %p511 = scmp.lt.s32.totalorder %s22, 1
        %s512 = scalar_select %p511, %s22, 1
        %p513 = scmp.lt.s32.totalorder %s23, 2
        %s514 = scalar_select %p513, %s23, 2
        %s515 = smul.addr %s514, 2
        %s516 = smul.addr %s512, 6
        %s517 = sadd.s32 %s515, %s516
        %s518 = smul.addr %s517, 8
        %s519 = scalar_lea.vmem %s1, %s518
        %p520 = pneg %p81
        %p521 = pneg %p78
        %p522 = scmp.lt.s32.totalorder %s22, 1
        %s523 = scalar_select %p522, %s22, 1
        %p524 = scmp.lt.s32.totalorder %s23, 2
        %s525 = scalar_select %p524, %s23, 2
        %s526 = smul.addr %s525, 2
        %s527 = smul.addr %s523, 6
        %s528 = sadd.s32 %s526, %s527
        %s529 = smul.addr %s528, 8
        %s530 = scalar_lea.vmem %s2, %s529
        %p531 = pneg %p109
        %p532 = pneg %p106
        %p533 = scmp.lt.s32.totalorder %s23, 2
        %s534 = scalar_select %p533, %s23, 2
        %s535 = smul.addr %s534, 6
        %s536 = smul.addr %s535, 4
        %s537 = scalar_lea.vmem %s3, %s536
        %p538 = pneg %p135
        %p539 = pneg %p132
        %p540 = scmp.lt.s32.totalorder %s23, 2
        %s541 = scalar_select %p540, %s23, 2
        %s542 = smul.addr %s541, 6
        %s543 = smul.addr %s542, 4
        %s544 = scalar_lea.vmem %s4, %s543
        %p545 = pneg %p161
        %p546 = pneg %p158
        %p547 = scmp.lt.s32.totalorder %s23, 2
        %s548 = scalar_select %p547, %s23, 2
        %s549 = smul.addr %s548, 6
        %s550 = smul.addr %s549, 4
        %s551 = scalar_lea.vmem %s5, %s550
        %p552 = pneg %p187
        %p553 = pneg %p184
        %p554 = scmp.lt.s32.totalorder %s23, 2
        %s555 = scalar_select %p554, %s23, 2
        %s556 = scalar_lea.vmem %s6, %s555
        %p557 = pneg %p213
        %p558 = pneg %p210
        %p559 = pneg %p241
        %p560 = pneg %p238
        %s561 = sand.u32 %s228, 1
        %s562 = sand.u32 %s228, 1
        %s563 = smul.addr %s562, 256
        %s564 = scalar_lea.vmem [#allocation3], %s563
        %s565 = smul.u32 2, %s23
        %p566 = scmp.lt.s32.totalorder %s22, 1
        %s567 = scalar_select %p566, %s22, 1
        %p568 = scmp.lt.s32.totalorder %s23, 2
        %s569 = scalar_select %p568, %s23, 2
        %s570 = smul.addr %s569, 2
        %s571 = smul.addr %s567, 6
        %s572 = sadd.s32 %s570, %s571
        %s573 = smul.addr %s572, 8
        %s574 = scalar_lea.vmem %s1, %s573
        %p575 = scmp.lt.s32.totalorder %s22, 1
        %s576 = scalar_select %p575, %s22, 1
        %p577 = scmp.lt.s32.totalorder %s23, 2
        %s578 = scalar_select %p577, %s23, 2
        %s579 = smul.addr %s578, 2
        %s580 = smul.addr %s576, 6
        %s581 = sadd.s32 %s579, %s580
        %s582 = smul.addr %s581, 8
        %s583 = scalar_lea.vmem %s2, %s582
        %p584 = scmp.lt.s32.totalorder %s23, 2
        %s585 = scalar_select %p584, %s23, 2
        %s586 = smul.addr %s585, 6
        %s587 = smul.addr %s586, 4
        %s588 = scalar_lea.vmem %s3, %s587
        %p589 = scmp.lt.s32.totalorder %s23, 2
        %s590 = scalar_select %p589, %s23, 2
        %s591 = smul.addr %s590, 6
        %s592 = smul.addr %s591, 4
        %s593 = scalar_lea.vmem %s4, %s592
        %p594 = scmp.lt.s32.totalorder %s23, 2
        %s595 = scalar_select %p594, %s23, 2
        %s596 = smul.addr %s595, 6
        %s597 = smul.addr %s596, 4
        %s598 = scalar_lea.vmem %s5, %s597
        %p599 = scmp.lt.s32.totalorder %s23, 2
        %s600 = scalar_select %p599, %s23, 2
        %s601 = scalar_lea.vmem %s6, %s600
        %s602 = smul.u32 2, %s23
        %v604 = vld [vmem:[%s574] sm:$0xff]
        %v605 = vld [vmem:[%s574 + $0x8] sm:$0xff]
        %v606 = vpack.c.bf16 %v605, %v604
        %v607 = vld [vmem:[%s583] sm:$0xff]
        %v608 = vld [vmem:[%s583 + $0x8] sm:$0xff]
        %v609 = vpack.c.bf16 %v608, %v607
        %v611 = vshrl.u32 %v606, 16
        %v613 = vrot.slane %v611, 7
        %v614 = vshll.u32 %v606, 16
        %v616 = vor.u32 %v613, %v614
        %vm618 = vcmask 1040384
        %vm619 = vsmask.f32 256
        %vm620 = vmand %vm618, %vm619
        %v621 = vsel %vm620, 0, %v616
        %v622 = vrot.slane %v614, 1
        %v623 = vor.u32 %v611, %v622
        %vm625 = vcmask 1047552
        %vm626 = vsmask.f32 7424
        %vm627 = vmand %vm625, %vm626
        %v628 = vsel %vm627, %v623, 0
        %630 = vrot.lane.b32.xlu0 %v606, 4
        %v631 = vpop.permute.xlu0 %630
        %633 = vrot.lane.b32.xlu0 %v628, 8
        %v634 = vpop.permute.xlu0 %633
        %vm635 = vcmask 31744
        %v638 = vsel %vm635, %v621, %v631
        %vm639 = vcmask 64512
        %v641 = vsel %vm639, %v638, %v634
        %v643 = vshrl.u32 %v609, 16
        %v645 = vrot.slane %v643, 7
        %v646 = vshll.u32 %v609, 16
        %v648 = vor.u32 %v645, %v646
        %v650 = vsel %vm620, 0, %v648
        %v651 = vrot.slane %v646, 1
        %v652 = vor.u32 %v643, %v651
        %v654 = vsel %vm627, %v652, 0
        %656 = vrot.lane.b32.xlu0 %v609, 4
        %v657 = vpop.permute.xlu0 %656
        %659 = vrot.lane.b32.xlu0 %v654, 8
        %v660 = vpop.permute.xlu0 %659
        %v663 = vsel %vm635, %v650, %v657
        %v665 = vsel %vm639, %v663, %v660
        %v666 = vld [vmem:[%s593] sm:$0xf]
        %v667 = vld [vmem:[%s593 + $0x4] sm:$0x3]
        %v668 = vld [vmem:[%s593 + $0x8] sm:$0xf]
        %v669 = vld [vmem:[%s593 + $0xc] sm:$0x3]
        %v670 = vld [vmem:[%s593 + $0x10] sm:$0xf]
        %v671 = vld [vmem:[%s593 + $0x14] sm:$0x3]
        %v672 = vld [vmem:[%s598] sm:$0xf]
        %v673 = vld [vmem:[%s598 + $0x4] sm:$0x3]
        %v674 = vld [vmem:[%s598 + $0x8] sm:$0xf]
        %v675 = vld [vmem:[%s598 + $0xc] sm:$0x3]
        %v676 = vld [vmem:[%s598 + $0x10] sm:$0xf]
        %v677 = vld [vmem:[%s598 + $0x14] sm:$0x3]
        %v680 = vunpack.c.l.b16 %v666
        %v681 = vunpack.c.l.b16 %v667
        %v682 = vpack.c.b16 %v681, %v680
        %vm683 = vcmask 97280
        %v684 = vsel %vm683, %v641, 0
        %vm686 = vcmask 1045504
        %v688 = vsel %vm686, %v682, 0
        %690 = vmatprep.subr.bf16.mxu0 0
        %691 = vmatpush1.bf16.msra.mxu0 0
        %692 = vmatprep.subr.bf16.mxu0 0
        %693 = vmatpush1.bf16.msra.mxu0 0
        %694 = vmatprep.subr.bf16.mxu0 0
        %695 = vmatpush1.bf16.msra.mxu0 0
        %696 = vmatprep.subr.bf16.mxu0 0
        %697 = vmatpush1.bf16.msra.mxu0 0
        %698 = vmatprep.subr.bf16.mxu0 0
        %699 = vmatpush1.bf16.msra.mxu0 0
        %700 = vmatprep.subr.bf16.mxu0 0
        %701 = vmatpush1.bf16.msra.mxu0 0
        %702 = vmatprep.subr.bf16.mxu0 0
        %703 = vmatpush1.bf16.msra.mxu0 0
        %704 = vmatprep.subr.bf16.mxu0 0
        %705 = vmatpush1.bf16.msra.mxu0 %v688
        %706 = vmatprep.subr.bf16.mxu0 0
        %707 = vmatpush2.bf16.msra.mxu0 0
        %708 = vmatprep.subr.bf16.mxu0 0
        %709 = vmatpush2.bf16.msra.mxu0 0
        %710 = vmatprep.subr.bf16.mxu0 0
        %711 = vmatpush2.bf16.msra.mxu0 0
        %712 = vmatprep.subr.bf16.mxu0 0
        %713 = vmatpush2.bf16.msra.mxu0 0
        %714 = vmatprep.subr.bf16.mxu0 0
        %715 = vmatpush2.bf16.msra.mxu0 0
        %716 = vmatprep.subr.bf16.mxu0 0
        %717 = vmatpush2.bf16.msra.mxu0 0
        %718 = vmatprep.subr.bf16.mxu0 0
        %719 = vmatpush2.bf16.msra.mxu0 0
        %720 = vmatprep.subr.bf16.mxu0 0
        %721 = vmatpush2.bf16.msra.mxu0 0
        %722 = vmatprep.mubr.bf16.mxu0 0
        %723 = vmatmul.mubr.bf16.gmra.mxu0 %v684
        %v724 = vpop.f32.mrf.mxu0
        %v725 = vadd.f32 0.0, %v724
        %v726 = vpop.f32.mrf.mxu0
        %v727 = vpop.f32.mrf.mxu0
        %v728 = vadd.f32 0.0, %v727
        %v729 = vpop.f32.mrf.mxu0
        %730 = vdwg.mxu0
        %v733 = vunpack.c.l.b16 %v668
        %v734 = vunpack.c.l.b16 %v669
        %v735 = vpack.c.b16 %v734, %v733
        %v737 = vsel %vm686, %v735, 0
        %739 = vmatprep.subr.bf16.mxu0 0
        %740 = vmatpush1.bf16.msra.mxu0 0
        %741 = vmatprep.subr.bf16.mxu0 0
        %742 = vmatpush1.bf16.msra.mxu0 0
        %743 = vmatprep.subr.bf16.mxu0 0
        %744 = vmatpush1.bf16.msra.mxu0 0
        %745 = vmatprep.subr.bf16.mxu0 0
        %746 = vmatpush1.bf16.msra.mxu0 0
        %747 = vmatprep.subr.bf16.mxu0 0
        %748 = vmatpush1.bf16.msra.mxu0 0
        %749 = vmatprep.subr.bf16.mxu0 0
        %750 = vmatpush1.bf16.msra.mxu0 0
        %751 = vmatprep.subr.bf16.mxu0 0
        %752 = vmatpush1.bf16.msra.mxu0 0
        %753 = vmatprep.subr.bf16.mxu0 0
        %754 = vmatpush1.bf16.msra.mxu0 %v737
        %755 = vmatprep.subr.bf16.mxu0 0
        %756 = vmatpush2.bf16.msra.mxu0 0
        %757 = vmatprep.subr.bf16.mxu0 0
        %758 = vmatpush2.bf16.msra.mxu0 0
        %759 = vmatprep.subr.bf16.mxu0 0
        %760 = vmatpush2.bf16.msra.mxu0 0
        %761 = vmatprep.subr.bf16.mxu0 0
        %762 = vmatpush2.bf16.msra.mxu0 0
        %763 = vmatprep.subr.bf16.mxu0 0
        %764 = vmatpush2.bf16.msra.mxu0 0
        %765 = vmatprep.subr.bf16.mxu0 0
        %766 = vmatpush2.bf16.msra.mxu0 0
        %767 = vmatprep.subr.bf16.mxu0 0
        %768 = vmatpush2.bf16.msra.mxu0 0
        %769 = vmatprep.subr.bf16.mxu0 0
        %770 = vmatpush2.bf16.msra.mxu0 0
        %771 = vmatprep.mubr.bf16.mxu0 0
        %772 = vmatmul.mubr.bf16.gmra.mxu0 %v684
        %v773 = vpop.f32.mrf.mxu0
        %v774 = vadd.f32 0.0, %v773
        %v775 = vpop.f32.mrf.mxu0
        %v776 = vpop.f32.mrf.mxu0
        %v777 = vadd.f32 0.0, %v776
        %v778 = vpop.f32.mrf.mxu0
        %779 = vdwg.mxu0
        %v782 = vunpack.c.l.b16 %v670
        %v783 = vunpack.c.l.b16 %v671
        %v784 = vpack.c.b16 %v783, %v782
        %v786 = vsel %vm686, %v784, 0
        %788 = vmatprep.subr.bf16.mxu0 0
        %789 = vmatpush1.bf16.msra.mxu0 0
        %790 = vmatprep.subr.bf16.mxu0 0
        %791 = vmatpush1.bf16.msra.mxu0 0
        %792 = vmatprep.subr.bf16.mxu0 0
        %793 = vmatpush1.bf16.msra.mxu0 0
        %794 = vmatprep.subr.bf16.mxu0 0
        %795 = vmatpush1.bf16.msra.mxu0 0
        %796 = vmatprep.subr.bf16.mxu0 0
        %797 = vmatpush1.bf16.msra.mxu0 0
        %798 = vmatprep.subr.bf16.mxu0 0
        %799 = vmatpush1.bf16.msra.mxu0 0
        %800 = vmatprep.subr.bf16.mxu0 0
        %801 = vmatpush1.bf16.msra.mxu0 0
        %802 = vmatprep.subr.bf16.mxu0 0
        %803 = vmatpush1.bf16.msra.mxu0 %v786
        %804 = vmatprep.subr.bf16.mxu0 0
        %805 = vmatpush2.bf16.msra.mxu0 0
        %806 = vmatprep.subr.bf16.mxu0 0
        %807 = vmatpush2.bf16.msra.mxu0 0
        %808 = vmatprep.subr.bf16.mxu0 0
        %809 = vmatpush2.bf16.msra.mxu0 0
        %810 = vmatprep.subr.bf16.mxu0 0
        %811 = vmatpush2.bf16.msra.mxu0 0
        %812 = vmatprep.subr.bf16.mxu0 0
        %813 = vmatpush2.bf16.msra.mxu0 0
        %814 = vmatprep.subr.bf16.mxu0 0
        %815 = vmatpush2.bf16.msra.mxu0 0
        %816 = vmatprep.subr.bf16.mxu0 0
        %817 = vmatpush2.bf16.msra.mxu0 0
        %818 = vmatprep.subr.bf16.mxu0 0
        %819 = vmatpush2.bf16.msra.mxu0 0
        %820 = vmatprep.mubr.bf16.mxu0 0
        %821 = vmatmul.mubr.bf16.gmra.mxu0 %v684
        %v822 = vpop.f32.mrf.mxu0
        %v823 = vadd.f32 0.0, %v822
        %v824 = vpop.f32.mrf.mxu0
        %v825 = vpop.f32.mrf.mxu0
        %v826 = vadd.f32 0.0, %v825
        %v827 = vpop.f32.mrf.mxu0
        %828 = vdwg.mxu0
        %v831 = vunpack.c.l.b16 %v672
        %v832 = vunpack.c.l.b16 %v673
        %v833 = vpack.c.b16 %v832, %v831
        %v834 = vsel %vm683, %v665, 0
        %v837 = vsel %vm686, %v833, 0
        %839 = vmatprep.subr.bf16.mxu0 0
        %840 = vmatpush1.bf16.msra.mxu0 0
        %841 = vmatprep.subr.bf16.mxu0 0
        %842 = vmatpush1.bf16.msra.mxu0 0
        %843 = vmatprep.subr.bf16.mxu0 0
        %844 = vmatpush1.bf16.msra.mxu0 0
        %845 = vmatprep.subr.bf16.mxu0 0
        %846 = vmatpush1.bf16.msra.mxu0 0
        %847 = vmatprep.subr.bf16.mxu0 0
        %848 = vmatpush1.bf16.msra.mxu0 0
        %849 = vmatprep.subr.bf16.mxu0 0
        %850 = vmatpush1.bf16.msra.mxu0 0
        %851 = vmatprep.subr.bf16.mxu0 0
        %852 = vmatpush1.bf16.msra.mxu0 0
        %853 = vmatprep.subr.bf16.mxu0 0
        %854 = vmatpush1.bf16.msra.mxu0 %v837
        %855 = vmatprep.subr.bf16.mxu0 0
        %856 = vmatpush2.bf16.msra.mxu0 0
        %857 = vmatprep.subr.bf16.mxu0 0
        %858 = vmatpush2.bf16.msra.mxu0 0
        %859 = vmatprep.subr.bf16.mxu0 0
        %860 = vmatpush2.bf16.msra.mxu0 0
        %861 = vmatprep.subr.bf16.mxu0 0
        %862 = vmatpush2.bf16.msra.mxu0 0
        %863 = vmatprep.subr.bf16.mxu0 0
        %864 = vmatpush2.bf16.msra.mxu0 0
        %865 = vmatprep.subr.bf16.mxu0 0
        %866 = vmatpush2.bf16.msra.mxu0 0
        %867 = vmatprep.subr.bf16.mxu0 0
        %868 = vmatpush2.bf16.msra.mxu0 0
        %869 = vmatprep.subr.bf16.mxu0 0
        %870 = vmatpush2.bf16.msra.mxu0 0
        %871 = vmatprep.mubr.bf16.mxu0 0
        %872 = vmatmul.mubr.bf16.gmra.mxu0 %v834
        %v873 = vpop.f32.mrf.mxu0
        %v874 = vadd.f32 0.0, %v873
        %v875 = vpop.f32.mrf.mxu0
        %v876 = vpop.f32.mrf.mxu0
        %v877 = vadd.f32 0.0, %v876
        %v878 = vpop.f32.mrf.mxu0
        %879 = vdwg.mxu0
        %v882 = vunpack.c.l.b16 %v674
        %v883 = vunpack.c.l.b16 %v675
        %v884 = vpack.c.b16 %v883, %v882
        %v886 = vsel %vm686, %v884, 0
        %888 = vmatprep.subr.bf16.mxu0 0
        %889 = vmatpush1.bf16.msra.mxu0 0
        %890 = vmatprep.subr.bf16.mxu0 0
        %891 = vmatpush1.bf16.msra.mxu0 0
        %892 = vmatprep.subr.bf16.mxu0 0
        %893 = vmatpush1.bf16.msra.mxu0 0
        %894 = vmatprep.subr.bf16.mxu0 0
        %895 = vmatpush1.bf16.msra.mxu0 0
        %896 = vmatprep.subr.bf16.mxu0 0
        %897 = vmatpush1.bf16.msra.mxu0 0
        %898 = vmatprep.subr.bf16.mxu0 0
        %899 = vmatpush1.bf16.msra.mxu0 0
        %900 = vmatprep.subr.bf16.mxu0 0
        %901 = vmatpush1.bf16.msra.mxu0 0
        %902 = vmatprep.subr.bf16.mxu0 0
        %903 = vmatpush1.bf16.msra.mxu0 %v886
        %904 = vmatprep.subr.bf16.mxu0 0
        %905 = vmatpush2.bf16.msra.mxu0 0
        %906 = vmatprep.subr.bf16.mxu0 0
        %907 = vmatpush2.bf16.msra.mxu0 0
        %908 = vmatprep.subr.bf16.mxu0 0
        %909 = vmatpush2.bf16.msra.mxu0 0
        %910 = vmatprep.subr.bf16.mxu0 0
        %911 = vmatpush2.bf16.msra.mxu0 0
        %912 = vmatprep.subr.bf16.mxu0 0
        %913 = vmatpush2.bf16.msra.mxu0 0
        %914 = vmatprep.subr.bf16.mxu0 0
        %915 = vmatpush2.bf16.msra.mxu0 0
        %916 = vmatprep.subr.bf16.mxu0 0
        %917 = vmatpush2.bf16.msra.mxu0 0
        %918 = vmatprep.subr.bf16.mxu0 0
        %919 = vmatpush2.bf16.msra.mxu0 0
        %920 = vmatprep.mubr.bf16.mxu0 0
        %921 = vmatmul.mubr.bf16.gmra.mxu0 %v834
        %v922 = vpop.f32.mrf.mxu0
        %v923 = vadd.f32 0.0, %v922
        %v924 = vpop.f32.mrf.mxu0
        %v925 = vpop.f32.mrf.mxu0
        %v926 = vadd.f32 0.0, %v925
        %v927 = vpop.f32.mrf.mxu0
        %928 = vdwg.mxu0
        %v931 = vunpack.c.l.b16 %v676
        %v932 = vunpack.c.l.b16 %v677
        %v933 = vpack.c.b16 %v932, %v931
        %v935 = vsel %vm686, %v933, 0
        %937 = vmatprep.subr.bf16.mxu0 0
        %938 = vmatpush1.bf16.msra.mxu0 0
        %939 = vmatprep.subr.bf16.mxu0 0
        %940 = vmatpush1.bf16.msra.mxu0 0
        %941 = vmatprep.subr.bf16.mxu0 0
        %942 = vmatpush1.bf16.msra.mxu0 0
        %943 = vmatprep.subr.bf16.mxu0 0
        %944 = vmatpush1.bf16.msra.mxu0 0
        %945 = vmatprep.subr.bf16.mxu0 0
        %946 = vmatpush1.bf16.msra.mxu0 0
        %947 = vmatprep.subr.bf16.mxu0 0
        %948 = vmatpush1.bf16.msra.mxu0 0
        %949 = vmatprep.subr.bf16.mxu0 0
        %950 = vmatpush1.bf16.msra.mxu0 0
        %951 = vmatprep.subr.bf16.mxu0 0
        %952 = vmatpush1.bf16.msra.mxu0 %v935
        %953 = vmatprep.subr.bf16.mxu0 0
        %954 = vmatpush2.bf16.msra.mxu0 0
        %955 = vmatprep.subr.bf16.mxu0 0
        %956 = vmatpush2.bf16.msra.mxu0 0
        %957 = vmatprep.subr.bf16.mxu0 0
        %958 = vmatpush2.bf16.msra.mxu0 0
        %959 = vmatprep.subr.bf16.mxu0 0
        %960 = vmatpush2.bf16.msra.mxu0 0
        %961 = vmatprep.subr.bf16.mxu0 0
        %962 = vmatpush2.bf16.msra.mxu0 0
        %963 = vmatprep.subr.bf16.mxu0 0
        %964 = vmatpush2.bf16.msra.mxu0 0
        %965 = vmatprep.subr.bf16.mxu0 0
        %966 = vmatpush2.bf16.msra.mxu0 0
        %967 = vmatprep.subr.bf16.mxu0 0
        %968 = vmatpush2.bf16.msra.mxu0 0
        %969 = vmatprep.mubr.bf16.mxu0 0
        %970 = vmatmul.mubr.bf16.gmra.mxu0 %v834
        %v971 = vpop.f32.mrf.mxu0
        %v972 = vadd.f32 0.0, %v971
        %v973 = vpop.f32.mrf.mxu0
        %v974 = vpop.f32.mrf.mxu0
        %v975 = vadd.f32 0.0, %v974
        %v976 = vpop.f32.mrf.mxu0
        %977 = vdwg.mxu0
        %v978 = vld [vmem:[%s601] sm:$0x1]
        %v979 = vadd.f32 %v725, %v774
        %v980 = vadd.f32 %v728, %v777
        %v981 = vadd.f32 %v979, %v823
        %v982 = vadd.f32 %v980, %v826
        %v984 = vlaneseq
        %v985 = vshrl.u32 %v984, 7
        %v986 = vsub.s32 0, %v985
        %v987 = vrot.slane %v978, %v986
        %v989 = vadd.f32 %v987, %v981
        %v990 = vadd.f32 %v987, %v982
        %v991 = vadd.f32 %v874, %v923
        %v992 = vadd.f32 %v877, %v926
        %v993 = vadd.f32 %v991, %v972
        %v994 = vadd.f32 %v992, %v975
        %v997 = vcombine.high %v993, %v993
        %v999 = vunpack.c.l.s4 1966171168
        %v1000 = vunpack.c.0.s8 %v999
        %v1001 = vlaneseq
        %v1002 = vshrl.u32 %v1001, 7
        %v1003 = vsub.s32 %v1000, %v1002
        %v1004 = vrot.slane %v993, %v1003
        %v1006 = vunpack.c.l.s4 1966171168
        %v1007 = vunpack.c.0.s8 %v1006
        %v1008 = vlaneseq
        %v1009 = vshrl.u32 %v1008, 7
        %v1010 = vsub.s32 %v1007, %v1009
        %v1011 = vrot.slane %v997, %v1010
        %v1012 = vcombine.high %v1004, %v1004
        %v1013 = vcombine.high %v1011, %v1011
        %v1015 = vunpack.c.l.s4 1966171168
        %v1016 = vunpack.c.0.s8 %v1015
        %v1017 = vlaneseq
        %v1018 = vshrl.u32 %v1017, 7
        %v1019 = vsub.s32 %v1016, %v1018
        %v1020 = vrot.slane %v1004, %v1019
        %v1022 = vunpack.c.l.s4 1966171168
        %v1023 = vunpack.c.0.s8 %v1022
        %v1024 = vlaneseq
        %v1025 = vshrl.u32 %v1024, 7
        %v1026 = vsub.s32 %v1023, %v1025
        %v1027 = vrot.slane %v1011, %v1026
        %v1029 = vunpack.c.l.s4 1966171168
        %v1030 = vunpack.c.0.s8 %v1029
        %v1031 = vlaneseq
        %v1032 = vshrl.u32 %v1031, 7
        %v1033 = vsub.s32 %v1030, %v1032
        %v1034 = vrot.slane %v1012, %v1033
        %v1036 = vunpack.c.l.s4 1966171168
        %v1037 = vunpack.c.0.s8 %v1036
        %v1038 = vlaneseq
        %v1039 = vshrl.u32 %v1038, 7
        %v1040 = vsub.s32 %v1037, %v1039
        %v1041 = vrot.slane %v1013, %v1040
        %v1042 = vcombine.high %v1020, %v1020
        %v1043 = vcombine.high %v1027, %v1027
        %v1044 = vcombine.high %v1034, %v1034
        %v1045 = vcombine.high %v1041, %v1041
        %v1046 = vcombine.high %v994, %v994
        %v1048 = vunpack.c.l.s4 1966171168
        %v1049 = vunpack.c.0.s8 %v1048
        %v1050 = vlaneseq
        %v1051 = vshrl.u32 %v1050, 7
        %v1052 = vsub.s32 %v1049, %v1051
        %v1053 = vrot.slane %v994, %v1052
        %v1055 = vunpack.c.l.s4 1966171168
        %v1056 = vunpack.c.0.s8 %v1055
        %v1057 = vlaneseq
        %v1058 = vshrl.u32 %v1057, 7
        %v1059 = vsub.s32 %v1056, %v1058
        %v1060 = vrot.slane %v1046, %v1059
        %v1061 = vcombine.high %v1053, %v1053
        %v1062 = vcombine.high %v1060, %v1060
        %v1064 = vunpack.c.l.s4 1966171168
        %v1065 = vunpack.c.0.s8 %v1064
        %v1066 = vlaneseq
        %v1067 = vshrl.u32 %v1066, 7
        %v1068 = vsub.s32 %v1065, %v1067
        %v1069 = vrot.slane %v1053, %v1068
        %v1071 = vunpack.c.l.s4 1966171168
        %v1072 = vunpack.c.0.s8 %v1071
        %v1073 = vlaneseq
        %v1074 = vshrl.u32 %v1073, 7
        %v1075 = vsub.s32 %v1072, %v1074
        %v1076 = vrot.slane %v1060, %v1075
        %v1078 = vunpack.c.l.s4 1966171168
        %v1079 = vunpack.c.0.s8 %v1078
        %v1080 = vlaneseq
        %v1081 = vshrl.u32 %v1080, 7
        %v1082 = vsub.s32 %v1079, %v1081
        %v1083 = vrot.slane %v1061, %v1082
        %v1085 = vunpack.c.l.s4 1966171168
        %v1086 = vunpack.c.0.s8 %v1085
        %v1087 = vlaneseq
        %v1088 = vshrl.u32 %v1087, 7
        %v1089 = vsub.s32 %v1086, %v1088
        %v1090 = vrot.slane %v1062, %v1089
        %v1091 = vcombine.high %v1069, %v1069
        %v1092 = vcombine.high %v1076, %v1076
        %v1093 = vcombine.high %v1083, %v1083
        %v1094 = vcombine.high %v1090, %v1090
        %v1095 = vlaneseq
        %v1096 = vshrl.u32 %v1095, 7
        %v1097 = vsub.s32 0, %v1096
        %v1098 = vrot.slane %v1020, %v1097
        %v1099 = vlaneseq
        %v1100 = vshrl.u32 %v1099, 7
        %v1101 = vsub.s32 0, %v1100
        %v1102 = vrot.slane %v1034, %v1101
        %v1103 = vlaneseq
        %v1104 = vshrl.u32 %v1103, 7
        %v1105 = vsub.s32 0, %v1104
        %v1106 = vrot.slane %v1042, %v1105
        %v1107 = vlaneseq
        %v1108 = vshrl.u32 %v1107, 7
        %v1109 = vsub.s32 0, %v1108
        %v1110 = vrot.slane %v1044, %v1109
        %v1111 = vlaneseq
        %v1112 = vshrl.u32 %v1111, 7
        %v1113 = vsub.s32 0, %v1112
        %v1114 = vrot.slane %v1027, %v1113
        %v1115 = vlaneseq
        %v1116 = vshrl.u32 %v1115, 7
        %v1117 = vsub.s32 0, %v1116
        %v1118 = vrot.slane %v1041, %v1117
        %v1119 = vlaneseq
        %v1120 = vshrl.u32 %v1119, 7
        %v1121 = vsub.s32 0, %v1120
        %v1122 = vrot.slane %v1043, %v1121
        %v1123 = vlaneseq
        %v1124 = vshrl.u32 %v1123, 7
        %v1125 = vsub.s32 0, %v1124
        %v1126 = vrot.slane %v1045, %v1125
        %v1127 = vlaneseq
        %v1128 = vshrl.u32 %v1127, 7
        %v1129 = vsub.s32 0, %v1128
        %v1130 = vrot.slane %v1069, %v1129
        %v1131 = vlaneseq
        %v1132 = vshrl.u32 %v1131, 7
        %v1133 = vsub.s32 0, %v1132
        %v1134 = vrot.slane %v1083, %v1133
        %v1135 = vlaneseq
        %v1136 = vshrl.u32 %v1135, 7
        %v1137 = vsub.s32 0, %v1136
        %v1138 = vrot.slane %v1091, %v1137
        %v1139 = vlaneseq
        %v1140 = vshrl.u32 %v1139, 7
        %v1141 = vsub.s32 0, %v1140
        %v1142 = vrot.slane %v1093, %v1141
        %v1143 = vlaneseq
        %v1144 = vshrl.u32 %v1143, 7
        %v1145 = vsub.s32 0, %v1144
        %v1146 = vrot.slane %v1076, %v1145
        %v1147 = vlaneseq
        %v1148 = vshrl.u32 %v1147, 7
        %v1149 = vsub.s32 0, %v1148
        %v1150 = vrot.slane %v1090, %v1149
        %v1151 = vlaneseq
        %v1152 = vshrl.u32 %v1151, 7
        %v1153 = vsub.s32 0, %v1152
        %v1154 = vrot.slane %v1092, %v1153
        %v1155 = vlaneseq
        %v1156 = vshrl.u32 %v1155, 7
        %v1157 = vsub.s32 0, %v1156
        %v1158 = vrot.slane %v1094, %v1157
        %v1175 = vadd.f32 %v989, %v1098
        %v1176 = vadd.f32 %v990, %v1098
        %v1177 = vadd.f32 %v989, %v1102
        %v1178 = vadd.f32 %v990, %v1102
        %v1179 = vadd.f32 %v989, %v1106
        %v1180 = vadd.f32 %v990, %v1106
        %v1181 = vadd.f32 %v989, %v1110
        %v1182 = vadd.f32 %v990, %v1110
        %v1183 = vadd.f32 %v989, %v1114
        %v1184 = vadd.f32 %v990, %v1114
        %v1185 = vadd.f32 %v989, %v1118
        %v1186 = vadd.f32 %v990, %v1118
        %v1187 = vadd.f32 %v989, %v1122
        %v1188 = vadd.f32 %v990, %v1122
        %v1189 = vadd.f32 %v989, %v1126
        %v1190 = vadd.f32 %v990, %v1126
        %v1191 = vadd.f32 %v989, %v1130
        %v1192 = vadd.f32 %v990, %v1130
        %v1193 = vadd.f32 %v989, %v1134
        %v1194 = vadd.f32 %v990, %v1134
        %v1195 = vadd.f32 %v989, %v1138
        %v1196 = vadd.f32 %v990, %v1138
        %v1197 = vadd.f32 %v989, %v1142
        %v1198 = vadd.f32 %v990, %v1142
        %v1199 = vadd.f32 %v989, %v1146
        %v1200 = vadd.f32 %v990, %v1146
        %v1201 = vadd.f32 %v989, %v1150
        %v1202 = vadd.f32 %v990, %v1150
        %v1203 = vadd.f32 %v989, %v1154
        %v1204 = vadd.f32 %v990, %v1154
        %v1205 = vadd.f32 %v989, %v1158
        %v1206 = vadd.f32 %v990, %v1158
        %v1207 = vld [vmem:[%s501] sm:$0xf]
        %v1208 = vld [vmem:[%s501 + $0x4] sm:$0xf]
        %v1209 = vld [vmem:[%s501 + $0x8] sm:$0xf]
        %v1210 = vld [vmem:[%s501 + $0xc] sm:$0xf]
        %v1211 = vld [vmem:[%s501 + $0x10] sm:$0xf]
        %v1212 = vld [vmem:[%s501 + $0x14] sm:$0xf]
        %v1213 = vld [vmem:[%s501 + $0x18] sm:$0xf]
        %v1214 = vld [vmem:[%s501 + $0x1c] sm:$0xf]
        %v1215 = vld [vmem:[%s501 + $0x20] sm:$0xf]
        %v1216 = vld [vmem:[%s501 + $0x24] sm:$0xf]
        %v1217 = vld [vmem:[%s501 + $0x28] sm:$0xf]
        %v1218 = vld [vmem:[%s501 + $0x2c] sm:$0xf]
        %v1219 = vld [vmem:[%s501 + $0x30] sm:$0xf]
        %v1220 = vld [vmem:[%s501 + $0x34] sm:$0xf]
        %v1221 = vld [vmem:[%s501 + $0x38] sm:$0xf]
        %v1222 = vld [vmem:[%s501 + $0x3c] sm:$0xf]
        %v1223 = vld [vmem:[%s501 + $0x40] sm:$0xf]
        %v1224 = vld [vmem:[%s501 + $0x44] sm:$0xf]
        %v1225 = vld [vmem:[%s501 + $0x48] sm:$0xf]
        %v1226 = vld [vmem:[%s501 + $0x4c] sm:$0xf]
        %v1227 = vld [vmem:[%s501 + $0x50] sm:$0xf]
        %v1228 = vld [vmem:[%s501 + $0x54] sm:$0xf]
        %v1229 = vld [vmem:[%s501 + $0x58] sm:$0xf]
        %v1230 = vld [vmem:[%s501 + $0x5c] sm:$0xf]
        %v1231 = vld [vmem:[%s501 + $0x60] sm:$0xf]
        %v1232 = vld [vmem:[%s501 + $0x64] sm:$0xf]
        %v1233 = vld [vmem:[%s501 + $0x68] sm:$0xf]
        %v1234 = vld [vmem:[%s501 + $0x6c] sm:$0xf]
        %v1235 = vld [vmem:[%s501 + $0x70] sm:$0xf]
        %v1236 = vld [vmem:[%s501 + $0x74] sm:$0xf]
        %v1237 = vld [vmem:[%s501 + $0x78] sm:$0xf]
        %v1238 = vld [vmem:[%s501 + $0x7c] sm:$0xf]
        %v1271 = vunpack.c.l.b16 %v1207
        %v1272 = vunpack.c.l.b16 %v1208
        %v1273 = vunpack.c.l.b16 %v1209
        %v1274 = vunpack.c.l.b16 %v1210
        %v1275 = vunpack.c.l.b16 %v1211
        %v1276 = vunpack.c.l.b16 %v1212
        %v1277 = vunpack.c.l.b16 %v1213
        %v1278 = vunpack.c.l.b16 %v1214
        %v1279 = vunpack.c.l.b16 %v1215
        %v1280 = vunpack.c.l.b16 %v1216
        %v1281 = vunpack.c.l.b16 %v1217
        %v1282 = vunpack.c.l.b16 %v1218
        %v1283 = vunpack.c.l.b16 %v1219
        %v1284 = vunpack.c.l.b16 %v1220
        %v1285 = vunpack.c.l.b16 %v1221
        %v1286 = vunpack.c.l.b16 %v1222
        %v1287 = vunpack.c.l.b16 %v1223
        %v1288 = vunpack.c.l.b16 %v1224
        %v1289 = vunpack.c.l.b16 %v1225
        %v1290 = vunpack.c.l.b16 %v1226
        %v1291 = vunpack.c.l.b16 %v1227
        %v1292 = vunpack.c.l.b16 %v1228
        %v1293 = vunpack.c.l.b16 %v1229
        %v1294 = vunpack.c.l.b16 %v1230
        %v1295 = vunpack.c.l.b16 %v1231
        %v1296 = vunpack.c.l.b16 %v1232
        %v1297 = vunpack.c.l.b16 %v1233
        %v1298 = vunpack.c.l.b16 %v1234
        %v1299 = vunpack.c.l.b16 %v1235
        %v1300 = vunpack.c.l.b16 %v1236
        %v1301 = vunpack.c.l.b16 %v1237
        %v1302 = vunpack.c.l.b16 %v1238
        %v1303 = vpack.c.b16 %v1272, %v1271
        %v1304 = vpack.c.b16 %v1274, %v1273
        %v1305 = vpack.c.b16 %v1276, %v1275
        %v1306 = vpack.c.b16 %v1278, %v1277
        %v1307 = vpack.c.b16 %v1280, %v1279
        %v1308 = vpack.c.b16 %v1282, %v1281
        %v1309 = vpack.c.b16 %v1284, %v1283
        %v1310 = vpack.c.b16 %v1286, %v1285
        %v1311 = vpack.c.b16 %v1288, %v1287
        %v1312 = vpack.c.b16 %v1290, %v1289
        %v1313 = vpack.c.b16 %v1292, %v1291
        %v1314 = vpack.c.b16 %v1294, %v1293
        %v1315 = vpack.c.b16 %v1296, %v1295
        %v1316 = vpack.c.b16 %v1298, %v1297
        %v1317 = vpack.c.b16 %v1300, %v1299
        %v1318 = vpack.c.b16 %v1302, %v1301
        %v1320 = vshrl.u32 %v1303, 16
        %v1322 = vrot.slane %v1320, 7
        %v1323 = vshll.u32 %v1303, 16
        %v1325 = vor.u32 %v1322, %v1323
        %v1327 = vshrl.u32 %v1304, 16
        %v1329 = vrot.slane %v1327, 7
        %v1330 = vshll.u32 %v1304, 16
        %v1332 = vor.u32 %v1329, %v1330
        %v1334 = vshrl.u32 %v1305, 16
        %v1336 = vrot.slane %v1334, 7
        %v1337 = vshll.u32 %v1305, 16
        %v1339 = vor.u32 %v1336, %v1337
        %v1341 = vshrl.u32 %v1306, 16
        %v1343 = vrot.slane %v1341, 7
        %v1344 = vshll.u32 %v1306, 16
        %v1346 = vor.u32 %v1343, %v1344
        %v1348 = vshrl.u32 %v1307, 16
        %v1350 = vrot.slane %v1348, 7
        %v1351 = vshll.u32 %v1307, 16
        %v1353 = vor.u32 %v1350, %v1351
        %v1355 = vshrl.u32 %v1308, 16
        %v1357 = vrot.slane %v1355, 7
        %v1358 = vshll.u32 %v1308, 16
        %v1360 = vor.u32 %v1357, %v1358
        %v1362 = vshrl.u32 %v1309, 16
        %v1364 = vrot.slane %v1362, 7
        %v1365 = vshll.u32 %v1309, 16
        %v1367 = vor.u32 %v1364, %v1365
        %v1369 = vshrl.u32 %v1310, 16
        %v1371 = vrot.slane %v1369, 7
        %v1372 = vshll.u32 %v1310, 16
        %v1374 = vor.u32 %v1371, %v1372
        %v1376 = vshrl.u32 %v1311, 16
        %v1378 = vrot.slane %v1376, 7
        %v1379 = vshll.u32 %v1311, 16
        %v1381 = vor.u32 %v1378, %v1379
        %v1383 = vshrl.u32 %v1312, 16
        %v1385 = vrot.slane %v1383, 7
        %v1386 = vshll.u32 %v1312, 16
        %v1388 = vor.u32 %v1385, %v1386
        %v1390 = vshrl.u32 %v1313, 16
        %v1392 = vrot.slane %v1390, 7
        %v1393 = vshll.u32 %v1313, 16
        %v1395 = vor.u32 %v1392, %v1393
        %v1397 = vshrl.u32 %v1314, 16
        %v1399 = vrot.slane %v1397, 7
        %v1400 = vshll.u32 %v1314, 16
        %v1402 = vor.u32 %v1399, %v1400
        %v1404 = vshrl.u32 %v1315, 16
        %v1406 = vrot.slane %v1404, 7
        %v1407 = vshll.u32 %v1315, 16
        %v1409 = vor.u32 %v1406, %v1407
        %v1411 = vshrl.u32 %v1316, 16
        %v1413 = vrot.slane %v1411, 7
        %v1414 = vshll.u32 %v1316, 16
        %v1416 = vor.u32 %v1413, %v1414
        %v1418 = vshrl.u32 %v1317, 16
        %v1420 = vrot.slane %v1418, 7
        %v1421 = vshll.u32 %v1317, 16
        %v1423 = vor.u32 %v1420, %v1421
        %v1425 = vshrl.u32 %v1318, 16
        %v1427 = vrot.slane %v1425, 7
        %v1428 = vshll.u32 %v1318, 16
        %v1430 = vor.u32 %v1427, %v1428
        %v1447 = vsel %vm620, 0, %v1325
        %v1448 = vsel %vm620, 0, %v1332
        %v1449 = vsel %vm620, 0, %v1339
        %v1450 = vsel %vm620, 0, %v1346
        %v1451 = vsel %vm620, 0, %v1353
        %v1452 = vsel %vm620, 0, %v1360
        %v1453 = vsel %vm620, 0, %v1367
        %v1454 = vsel %vm620, 0, %v1374
        %v1455 = vsel %vm620, 0, %v1381
        %v1456 = vsel %vm620, 0, %v1388
        %v1457 = vsel %vm620, 0, %v1395
        %v1458 = vsel %vm620, 0, %v1402
        %v1459 = vsel %vm620, 0, %v1409
        %v1460 = vsel %vm620, 0, %v1416
        %v1461 = vsel %vm620, 0, %v1423
        %v1462 = vsel %vm620, 0, %v1430
        %v1463 = vrot.slane %v1323, 1
        %v1464 = vor.u32 %v1320, %v1463
        %v1465 = vrot.slane %v1330, 1
        %v1466 = vor.u32 %v1327, %v1465
        %v1467 = vrot.slane %v1337, 1
        %v1468 = vor.u32 %v1334, %v1467
        %v1469 = vrot.slane %v1344, 1
        %v1470 = vor.u32 %v1341, %v1469
        %v1471 = vrot.slane %v1351, 1
        %v1472 = vor.u32 %v1348, %v1471
        %v1473 = vrot.slane %v1358, 1
        %v1474 = vor.u32 %v1355, %v1473
        %v1475 = vrot.slane %v1365, 1
        %v1476 = vor.u32 %v1362, %v1475
        %v1477 = vrot.slane %v1372, 1
        %v1478 = vor.u32 %v1369, %v1477
        %v1479 = vrot.slane %v1379, 1
        %v1480 = vor.u32 %v1376, %v1479
        %v1481 = vrot.slane %v1386, 1
        %v1482 = vor.u32 %v1383, %v1481
        %v1483 = vrot.slane %v1393, 1
        %v1484 = vor.u32 %v1390, %v1483
        %v1485 = vrot.slane %v1400, 1
        %v1486 = vor.u32 %v1397, %v1485
        %v1487 = vrot.slane %v1407, 1
        %v1488 = vor.u32 %v1404, %v1487
        %v1489 = vrot.slane %v1414, 1
        %v1490 = vor.u32 %v1411, %v1489
        %v1491 = vrot.slane %v1421, 1
        %v1492 = vor.u32 %v1418, %v1491
        %v1493 = vrot.slane %v1428, 1
        %v1494 = vor.u32 %v1425, %v1493
        %v1511 = vsel %vm627, %v1464, 0
        %v1512 = vsel %vm627, %v1466, 0
        %v1513 = vsel %vm627, %v1468, 0
        %v1514 = vsel %vm627, %v1470, 0
        %v1515 = vsel %vm627, %v1472, 0
        %v1516 = vsel %vm627, %v1474, 0
        %v1517 = vsel %vm627, %v1476, 0
        %v1518 = vsel %vm627, %v1478, 0
        %v1519 = vsel %vm627, %v1480, 0
        %v1520 = vsel %vm627, %v1482, 0
        %v1521 = vsel %vm627, %v1484, 0
        %v1522 = vsel %vm627, %v1486, 0
        %v1523 = vsel %vm627, %v1488, 0
        %v1524 = vsel %vm627, %v1490, 0
        %v1525 = vsel %vm627, %v1492, 0
        %v1526 = vsel %vm627, %v1494, 0
        %1527 = vrot.lane.b32.xlu0 %v1303, 4
        %v1528 = vpop.permute.xlu0 %1527
        %1529 = vrot.lane.b32.xlu0 %v1304, 4
        %v1530 = vpop.permute.xlu0 %1529
        %1531 = vrot.lane.b32.xlu0 %v1305, 4
        %v1532 = vpop.permute.xlu0 %1531
        %1533 = vrot.lane.b32.xlu0 %v1306, 4
        %v1534 = vpop.permute.xlu0 %1533
        %1535 = vrot.lane.b32.xlu0 %v1307, 4
        %v1536 = vpop.permute.xlu0 %1535
        %1537 = vrot.lane.b32.xlu0 %v1308, 4
        %v1538 = vpop.permute.xlu0 %1537
        %1539 = vrot.lane.b32.xlu0 %v1309, 4
        %v1540 = vpop.permute.xlu0 %1539
        %1541 = vrot.lane.b32.xlu0 %v1310, 4
        %v1542 = vpop.permute.xlu0 %1541
        %1543 = vrot.lane.b32.xlu0 %v1311, 4
        %v1544 = vpop.permute.xlu0 %1543
        %1545 = vrot.lane.b32.xlu0 %v1312, 4
        %v1546 = vpop.permute.xlu0 %1545
        %1547 = vrot.lane.b32.xlu0 %v1313, 4
        %v1548 = vpop.permute.xlu0 %1547
        %1549 = vrot.lane.b32.xlu0 %v1314, 4
        %v1550 = vpop.permute.xlu0 %1549
        %1551 = vrot.lane.b32.xlu0 %v1315, 4
        %v1552 = vpop.permute.xlu0 %1551
        %1553 = vrot.lane.b32.xlu0 %v1316, 4
        %v1554 = vpop.permute.xlu0 %1553
        %1555 = vrot.lane.b32.xlu0 %v1317, 4
        %v1556 = vpop.permute.xlu0 %1555
        %1557 = vrot.lane.b32.xlu0 %v1318, 4
        %v1558 = vpop.permute.xlu0 %1557
        %1575 = vrot.lane.b32.xlu0 %v1511, 8
        %v1576 = vpop.permute.xlu0 %1575
        %1577 = vrot.lane.b32.xlu0 %v1512, 8
        %v1578 = vpop.permute.xlu0 %1577
        %1579 = vrot.lane.b32.xlu0 %v1513, 8
        %v1580 = vpop.permute.xlu0 %1579
        %1581 = vrot.lane.b32.xlu0 %v1514, 8
        %v1582 = vpop.permute.xlu0 %1581
        %1583 = vrot.lane.b32.xlu0 %v1515, 8
        %v1584 = vpop.permute.xlu0 %1583
        %1585 = vrot.lane.b32.xlu0 %v1516, 8
        %v1586 = vpop.permute.xlu0 %1585
        %1587 = vrot.lane.b32.xlu0 %v1517, 8
        %v1588 = vpop.permute.xlu0 %1587
        %1589 = vrot.lane.b32.xlu0 %v1518, 8
        %v1590 = vpop.permute.xlu0 %1589
        %1591 = vrot.lane.b32.xlu0 %v1519, 8
        %v1592 = vpop.permute.xlu0 %1591
        %1593 = vrot.lane.b32.xlu0 %v1520, 8
        %v1594 = vpop.permute.xlu0 %1593
        %1595 = vrot.lane.b32.xlu0 %v1521, 8
        %v1596 = vpop.permute.xlu0 %1595
        %1597 = vrot.lane.b32.xlu0 %v1522, 8
        %v1598 = vpop.permute.xlu0 %1597
        %1599 = vrot.lane.b32.xlu0 %v1523, 8
        %v1600 = vpop.permute.xlu0 %1599
        %1601 = vrot.lane.b32.xlu0 %v1524, 8
        %v1602 = vpop.permute.xlu0 %1601
        %1603 = vrot.lane.b32.xlu0 %v1525, 8
        %v1604 = vpop.permute.xlu0 %1603
        %1605 = vrot.lane.b32.xlu0 %v1526, 8
        %v1606 = vpop.permute.xlu0 %1605
        %v1609 = vsel %vm635, %v1447, %v1528
        %v1612 = vsel %vm635, %v1448, %v1530
        %v1615 = vsel %vm635, %v1449, %v1532
        %v1618 = vsel %vm635, %v1450, %v1534
        %v1621 = vsel %vm635, %v1451, %v1536
        %v1624 = vsel %vm635, %v1452, %v1538
        %v1627 = vsel %vm635, %v1453, %v1540
        %v1630 = vsel %vm635, %v1454, %v1542
        %v1633 = vsel %vm635, %v1455, %v1544
        %v1636 = vsel %vm635, %v1456, %v1546
        %v1639 = vsel %vm635, %v1457, %v1548
        %v1642 = vsel %vm635, %v1458, %v1550
        %v1645 = vsel %vm635, %v1459, %v1552
        %v1648 = vsel %vm635, %v1460, %v1554
        %v1651 = vsel %vm635, %v1461, %v1556
        %v1654 = vsel %vm635, %v1462, %v1558
        %v1656 = vsel %vm639, %v1609, %v1576
        %v1658 = vsel %vm639, %v1612, %v1578
        %v1660 = vsel %vm639, %v1615, %v1580
        %v1662 = vsel %vm639, %v1618, %v1582
        %v1664 = vsel %vm639, %v1621, %v1584
        %v1666 = vsel %vm639, %v1624, %v1586
        %v1668 = vsel %vm639, %v1627, %v1588
        %v1670 = vsel %vm639, %v1630, %v1590
        %v1672 = vsel %vm639, %v1633, %v1592
        %v1674 = vsel %vm639, %v1636, %v1594
        %v1676 = vsel %vm639, %v1639, %v1596
        %v1678 = vsel %vm639, %v1642, %v1598
        %v1680 = vsel %vm639, %v1645, %v1600
        %v1682 = vsel %vm639, %v1648, %v1602
        %v1684 = vsel %vm639, %v1651, %v1604
        %v1686 = vsel %vm639, %v1654, %v1606
        %v1687 = vld [vmem:[%s588] sm:$0xf]
        %v1688 = vld [vmem:[%s588 + $0x4] sm:$0x3]
        %v1689 = vld [vmem:[%s588 + $0x8] sm:$0xf]
        %v1690 = vld [vmem:[%s588 + $0xc] sm:$0x3]
        %v1691 = vld [vmem:[%s588 + $0x10] sm:$0xf]
        %v1692 = vld [vmem:[%s588 + $0x14] sm:$0x3]
        %v1695 = vunpack.c.l.b16 %v1689
        %v1696 = vunpack.c.l.b16 %v1690
        %v1697 = vpack.c.b16 %v1696, %v1695
        %v1698 = vsel %vm683, %v1656, 0
        %v1700 = vsel %vm683, %v1658, 0
        %v1702 = vsel %vm683, %v1660, 0
        %v1704 = vsel %vm683, %v1662, 0
        %v1706 = vsel %vm683, %v1664, 0
        %v1708 = vsel %vm683, %v1666, 0
        %v1710 = vsel %vm683, %v1668, 0
        %v1712 = vsel %vm683, %v1670, 0
        %v1714 = vsel %vm683, %v1672, 0
        %v1716 = vsel %vm683, %v1674, 0
        %v1718 = vsel %vm683, %v1676, 0
        %v1720 = vsel %vm683, %v1678, 0
        %v1722 = vsel %vm683, %v1680, 0
        %v1724 = vsel %vm683, %v1682, 0
        %v1726 = vsel %vm683, %v1684, 0
        %v1728 = vsel %vm683, %v1686, 0
        %v1731 = vsel %vm686, %v1697, 0
        %1733 = vmatprep.subr.bf16.mxu0 0
        %1734 = vmatpush1.bf16.msra.mxu0 0
        %1735 = vmatprep.subr.bf16.mxu0 0
        %1736 = vmatpush1.bf16.msra.mxu0 0
        %1737 = vmatprep.subr.bf16.mxu0 0
        %1738 = vmatpush1.bf16.msra.mxu0 0
        %1739 = vmatprep.subr.bf16.mxu0 0
        %1740 = vmatpush1.bf16.msra.mxu0 0
        %1741 = vmatprep.subr.bf16.mxu0 0
        %1742 = vmatpush1.bf16.msra.mxu0 0
        %1743 = vmatprep.subr.bf16.mxu0 0
        %1744 = vmatpush1.bf16.msra.mxu0 0
        %1745 = vmatprep.subr.bf16.mxu0 0
        %1746 = vmatpush1.bf16.msra.mxu0 0
        %1747 = vmatprep.subr.bf16.mxu0 0
        %1748 = vmatpush1.bf16.msra.mxu0 %v1731
        %1749 = vmatprep.subr.bf16.mxu0 0
        %1750 = vmatpush2.bf16.msra.mxu0 0
        %1751 = vmatprep.subr.bf16.mxu0 0
        %1752 = vmatpush2.bf16.msra.mxu0 0
        %1753 = vmatprep.subr.bf16.mxu0 0
        %1754 = vmatpush2.bf16.msra.mxu0 0
        %1755 = vmatprep.subr.bf16.mxu0 0
        %1756 = vmatpush2.bf16.msra.mxu0 0
        %1757 = vmatprep.subr.bf16.mxu0 0
        %1758 = vmatpush2.bf16.msra.mxu0 0
        %1759 = vmatprep.subr.bf16.mxu0 0
        %1760 = vmatpush2.bf16.msra.mxu0 0
        %1761 = vmatprep.subr.bf16.mxu0 0
        %1762 = vmatpush2.bf16.msra.mxu0 0
        %1763 = vmatprep.subr.bf16.mxu0 0
        %1764 = vmatpush2.bf16.msra.mxu0 0
        %1765 = vmatprep.mubr.bf16.mxu0 0
        %1766 = vmatmul.mubr.bf16.gmra.mxu0 %v1698
        %v1767 = vpop.f32.mrf.mxu0
        %v1768 = vadd.f32 0.0, %v1767
        %v1769 = vpop.f32.mrf.mxu0
        %v1770 = vpop.f32.mrf.mxu0
        %v1771 = vadd.f32 0.0, %v1770
        %v1772 = vpop.f32.mrf.mxu0
        %1773 = vmatprep.mubr.bf16.mxu0 0
        %1774 = vmatmul.mubr.bf16.gmra.mxu0 %v1700
        %v1775 = vpop.f32.mrf.mxu0
        %v1776 = vadd.f32 0.0, %v1775
        %v1777 = vpop.f32.mrf.mxu0
        %v1778 = vpop.f32.mrf.mxu0
        %v1779 = vadd.f32 0.0, %v1778
        %v1780 = vpop.f32.mrf.mxu0
        %1781 = vmatprep.mubr.bf16.mxu0 0
        %1782 = vmatmul.mubr.bf16.gmra.mxu0 %v1702
        %v1783 = vpop.f32.mrf.mxu0
        %v1784 = vadd.f32 0.0, %v1783
        %v1785 = vpop.f32.mrf.mxu0
        %v1786 = vpop.f32.mrf.mxu0
        %v1787 = vadd.f32 0.0, %v1786
        %v1788 = vpop.f32.mrf.mxu0
        %1789 = vmatprep.mubr.bf16.mxu0 0
        %1790 = vmatmul.mubr.bf16.gmra.mxu0 %v1704
        %v1791 = vpop.f32.mrf.mxu0
        %v1792 = vadd.f32 0.0, %v1791
        %v1793 = vpop.f32.mrf.mxu0
        %v1794 = vpop.f32.mrf.mxu0
        %v1795 = vadd.f32 0.0, %v1794
        %v1796 = vpop.f32.mrf.mxu0
        %1797 = vmatprep.mubr.bf16.mxu0 0
        %1798 = vmatmul.mubr.bf16.gmra.mxu0 %v1706
        %v1799 = vpop.f32.mrf.mxu0
        %v1800 = vadd.f32 0.0, %v1799
        %v1801 = vpop.f32.mrf.mxu0
        %v1802 = vpop.f32.mrf.mxu0
        %v1803 = vadd.f32 0.0, %v1802
        %v1804 = vpop.f32.mrf.mxu0
        %1805 = vmatprep.mubr.bf16.mxu0 0
        %1806 = vmatmul.mubr.bf16.gmra.mxu0 %v1708
        %v1807 = vpop.f32.mrf.mxu0
        %v1808 = vadd.f32 0.0, %v1807
        %v1809 = vpop.f32.mrf.mxu0
        %v1810 = vpop.f32.mrf.mxu0
        %v1811 = vadd.f32 0.0, %v1810
        %v1812 = vpop.f32.mrf.mxu0
        %1813 = vmatprep.mubr.bf16.mxu0 0
        %1814 = vmatmul.mubr.bf16.gmra.mxu0 %v1710
        %v1815 = vpop.f32.mrf.mxu0
        %v1816 = vadd.f32 0.0, %v1815
        %v1817 = vpop.f32.mrf.mxu0
        %v1818 = vpop.f32.mrf.mxu0
        %v1819 = vadd.f32 0.0, %v1818
        %v1820 = vpop.f32.mrf.mxu0
        %1821 = vmatprep.mubr.bf16.mxu0 0
        %1822 = vmatmul.mubr.bf16.gmra.mxu0 %v1712
        %v1823 = vpop.f32.mrf.mxu0
        %v1824 = vadd.f32 0.0, %v1823
        %v1825 = vpop.f32.mrf.mxu0
        %v1826 = vpop.f32.mrf.mxu0
        %v1827 = vadd.f32 0.0, %v1826
        %v1828 = vpop.f32.mrf.mxu0
        %1829 = vmatprep.mubr.bf16.mxu0 0
        %1830 = vmatmul.mubr.bf16.gmra.mxu0 %v1714
        %v1831 = vpop.f32.mrf.mxu0
        %v1832 = vadd.f32 0.0, %v1831
        %v1833 = vpop.f32.mrf.mxu0
        %v1834 = vpop.f32.mrf.mxu0
        %v1835 = vadd.f32 0.0, %v1834
        %v1836 = vpop.f32.mrf.mxu0
        %1837 = vmatprep.mubr.bf16.mxu0 0
        %1838 = vmatmul.mubr.bf16.gmra.mxu0 %v1716
        %v1839 = vpop.f32.mrf.mxu0
        %v1840 = vadd.f32 0.0, %v1839
        %v1841 = vpop.f32.mrf.mxu0
        %v1842 = vpop.f32.mrf.mxu0
        %v1843 = vadd.f32 0.0, %v1842
        %v1844 = vpop.f32.mrf.mxu0
        %1845 = vmatprep.mubr.bf16.mxu0 0
        %1846 = vmatmul.mubr.bf16.gmra.mxu0 %v1718
        %v1847 = vpop.f32.mrf.mxu0
        %v1848 = vadd.f32 0.0, %v1847
        %v1849 = vpop.f32.mrf.mxu0
        %v1850 = vpop.f32.mrf.mxu0
        %v1851 = vadd.f32 0.0, %v1850
        %v1852 = vpop.f32.mrf.mxu0
        %1853 = vmatprep.mubr.bf16.mxu0 0
        %1854 = vmatmul.mubr.bf16.gmra.mxu0 %v1720
        %v1855 = vpop.f32.mrf.mxu0
        %v1856 = vadd.f32 0.0, %v1855
        %v1857 = vpop.f32.mrf.mxu0
        %v1858 = vpop.f32.mrf.mxu0
        %v1859 = vadd.f32 0.0, %v1858
        %v1860 = vpop.f32.mrf.mxu0
        %1861 = vmatprep.mubr.bf16.mxu0 0
        %1862 = vmatmul.mubr.bf16.gmra.mxu0 %v1722
        %v1863 = vpop.f32.mrf.mxu0
        %v1864 = vadd.f32 0.0, %v1863
        %v1865 = vpop.f32.mrf.mxu0
        %v1866 = vpop.f32.mrf.mxu0
        %v1867 = vadd.f32 0.0, %v1866
        %v1868 = vpop.f32.mrf.mxu0
        %1869 = vmatprep.mubr.bf16.mxu0 0
        %1870 = vmatmul.mubr.bf16.gmra.mxu0 %v1724
        %v1871 = vpop.f32.mrf.mxu0
        %v1872 = vadd.f32 0.0, %v1871
        %v1873 = vpop.f32.mrf.mxu0
        %v1874 = vpop.f32.mrf.mxu0
        %v1875 = vadd.f32 0.0, %v1874
        %v1876 = vpop.f32.mrf.mxu0
        %1877 = vmatprep.mubr.bf16.mxu0 0
        %1878 = vmatmul.mubr.bf16.gmra.mxu0 %v1726
        %v1879 = vpop.f32.mrf.mxu0
        %v1880 = vadd.f32 0.0, %v1879
        %v1881 = vpop.f32.mrf.mxu0
        %v1882 = vpop.f32.mrf.mxu0
        %v1883 = vadd.f32 0.0, %v1882
        %v1884 = vpop.f32.mrf.mxu0
        %1885 = vmatprep.mubr.bf16.mxu0 0
        %1886 = vmatmul.mubr.bf16.gmra.mxu0 %v1728
        %v1887 = vpop.f32.mrf.mxu0
        %v1888 = vadd.f32 0.0, %v1887
        %v1889 = vpop.f32.mrf.mxu0
        %v1890 = vpop.f32.mrf.mxu0
        %v1891 = vadd.f32 0.0, %v1890
        %v1892 = vpop.f32.mrf.mxu0
        %1893 = vdwg.mxu0
        %v1894 = vadd.f32 %v1175, %v1768
        %v1895 = vadd.f32 %v1176, %v1771
        %v1896 = vadd.f32 %v1177, %v1776
        %v1897 = vadd.f32 %v1178, %v1779
        %v1898 = vadd.f32 %v1179, %v1784
        %v1899 = vadd.f32 %v1180, %v1787
        %v1900 = vadd.f32 %v1181, %v1792
        %v1901 = vadd.f32 %v1182, %v1795
        %v1902 = vadd.f32 %v1183, %v1800
        %v1903 = vadd.f32 %v1184, %v1803
        %v1904 = vadd.f32 %v1185, %v1808
        %v1905 = vadd.f32 %v1186, %v1811
        %v1906 = vadd.f32 %v1187, %v1816
        %v1907 = vadd.f32 %v1188, %v1819
        %v1908 = vadd.f32 %v1189, %v1824
        %v1909 = vadd.f32 %v1190, %v1827
        %v1910 = vadd.f32 %v1191, %v1832
        %v1911 = vadd.f32 %v1192, %v1835
        %v1912 = vadd.f32 %v1193, %v1840
        %v1913 = vadd.f32 %v1194, %v1843
        %v1914 = vadd.f32 %v1195, %v1848
        %v1915 = vadd.f32 %v1196, %v1851
        %v1916 = vadd.f32 %v1197, %v1856
        %v1917 = vadd.f32 %v1198, %v1859
        %v1918 = vadd.f32 %v1199, %v1864
        %v1919 = vadd.f32 %v1200, %v1867
        %v1920 = vadd.f32 %v1201, %v1872
        %v1921 = vadd.f32 %v1202, %v1875
        %v1922 = vadd.f32 %v1203, %v1880
        %v1923 = vadd.f32 %v1204, %v1883
        %v1924 = vadd.f32 %v1205, %v1888
        %v1925 = vadd.f32 %v1206, %v1891
        %1926 = vst [vmem:[%s564] sm:$0xff] %v1894
        %1927 = vst [vmem:[%s564 + $0x8] sm:$0xff] %v1895
        %1928 = vst [vmem:[%s564 + $0x10] sm:$0xff] %v1896
        %1929 = vst [vmem:[%s564 + $0x18] sm:$0xff] %v1897
        %1930 = vst [vmem:[%s564 + $0x20] sm:$0xff] %v1898
        %1931 = vst [vmem:[%s564 + $0x28] sm:$0xff] %v1899
        %1932 = vst [vmem:[%s564 + $0x30] sm:$0xff] %v1900
        %1933 = vst [vmem:[%s564 + $0x38] sm:$0xff] %v1901
        %1934 = vst [vmem:[%s564 + $0x40] sm:$0xff] %v1902
        %1935 = vst [vmem:[%s564 + $0x48] sm:$0xff] %v1903
        %1936 = vst [vmem:[%s564 + $0x50] sm:$0xff] %v1904
        %1937 = vst [vmem:[%s564 + $0x58] sm:$0xff] %v1905
        %1938 = vst [vmem:[%s564 + $0x60] sm:$0xff] %v1906
        %1939 = vst [vmem:[%s564 + $0x68] sm:$0xff] %v1907
        %1940 = vst [vmem:[%s564 + $0x70] sm:$0xff] %v1908
        %1941 = vst [vmem:[%s564 + $0x78] sm:$0xff] %v1909
        %1942 = vst [vmem:[%s564 + $0x80] sm:$0xff] %v1910
        %1943 = vst [vmem:[%s564 + $0x88] sm:$0xff] %v1911
        %1944 = vst [vmem:[%s564 + $0x90] sm:$0xff] %v1912
        %1945 = vst [vmem:[%s564 + $0x98] sm:$0xff] %v1913
        %1946 = vst [vmem:[%s564 + $0xa0] sm:$0xff] %v1914
        %1947 = vst [vmem:[%s564 + $0xa8] sm:$0xff] %v1915
        %1948 = vst [vmem:[%s564 + $0xb0] sm:$0xff] %v1916
        %1949 = vst [vmem:[%s564 + $0xb8] sm:$0xff] %v1917
        %1950 = vst [vmem:[%s564 + $0xc0] sm:$0xff] %v1918
        %1951 = vst [vmem:[%s564 + $0xc8] sm:$0xff] %v1919
        %1952 = vst [vmem:[%s564 + $0xd0] sm:$0xff] %v1920
        %1953 = vst [vmem:[%s564 + $0xd8] sm:$0xff] %v1921
        %1954 = vst [vmem:[%s564 + $0xe0] sm:$0xff] %v1922
        %1955 = vst [vmem:[%s564 + $0xe8] sm:$0xff] %v1923
        %1956 = vst [vmem:[%s564 + $0xf0] sm:$0xff] %v1924
        %1957 = vst [vmem:[%s564 + $0xf8] sm:$0xff] %v1925
        %v1958 = vld [vmem:[%s564] sm:$0xff]
        %v1959 = vld [vmem:[%s564 + $0x8] sm:$0xff]
        %v1960 = vsub.f32 %v1958, %v725
        %v1961 = vsub.f32 %v1959, %v728
        %1962 = vst [vmem:[%s564] sm:$0xff] %v1960
        %1963 = vst [vmem:[%s564 + $0x8] sm:$0xff] %v1961
        %s1964 = scalar_lea.vmem %s564, 240 [#allocation3]
        %v1965 = vld [vmem:[%s1964] sm:$0xff]
        %v1966 = vld [vmem:[%s1964 + $0x8] sm:$0xff]
        %v1967 = vsub.f32 %v1965, %v823
        %v1968 = vsub.f32 %v1966, %v826
        %1969 = vst [vmem:[%s1964] sm:$0xff] %v1967
        %1970 = vst [vmem:[%s1964 + $0x8] sm:$0xff] %v1968
        %v1971 = vld [vmem:[%s564] sm:$0x1]
        %v1972 = vld [vmem:[%s564 + $0x10] sm:$0x1]
        %v1973 = vld [vmem:[%s564 + $0x20] sm:$0x1]
        %v1974 = vld [vmem:[%s564 + $0x30] sm:$0x1]
        %v1975 = vld [vmem:[%s564 + $0x40] sm:$0x1]
        %v1976 = vld [vmem:[%s564 + $0x50] sm:$0x1]
        %v1977 = vld [vmem:[%s564 + $0x60] sm:$0x1]
        %v1978 = vld [vmem:[%s564 + $0x70] sm:$0x1]
        %v1979 = vld [vmem:[%s564 + $0x80] sm:$0x1]
        %v1980 = vld [vmem:[%s564 + $0x90] sm:$0x1]
        %v1981 = vld [vmem:[%s564 + $0xa0] sm:$0x1]
        %v1982 = vld [vmem:[%s564 + $0xb0] sm:$0x1]
        %v1983 = vld [vmem:[%s564 + $0xc0] sm:$0x1]
        %v1984 = vld [vmem:[%s564 + $0xd0] sm:$0x1]
        %v1985 = vld [vmem:[%s564 + $0xe0] sm:$0x1]
        %v1986 = vld [vmem:[%s564 + $0xf0] sm:$0x1]
        %v1989 = vcombine.high %v874, %v874
        %v1991 = vunpack.c.l.s4 1966171168
        %v1992 = vunpack.c.0.s8 %v1991
        %v1993 = vlaneseq
        %v1994 = vshrl.u32 %v1993, 7
        %v1995 = vsub.s32 %v1992, %v1994
        %v1996 = vrot.slane %v874, %v1995
        %v1998 = vunpack.c.l.s4 1966171168
        %v1999 = vunpack.c.0.s8 %v1998
        %v2000 = vlaneseq
        %v2001 = vshrl.u32 %v2000, 7
        %v2002 = vsub.s32 %v1999, %v2001
        %v2003 = vrot.slane %v1989, %v2002
        %v2004 = vcombine.high %v1996, %v1996
        %v2005 = vcombine.high %v2003, %v2003
        %v2007 = vunpack.c.l.s4 1966171168
        %v2008 = vunpack.c.0.s8 %v2007
        %v2009 = vlaneseq
        %v2010 = vshrl.u32 %v2009, 7
        %v2011 = vsub.s32 %v2008, %v2010
        %v2012 = vrot.slane %v1996, %v2011
        %v2014 = vunpack.c.l.s4 1966171168
        %v2015 = vunpack.c.0.s8 %v2014
        %v2016 = vlaneseq
        %v2017 = vshrl.u32 %v2016, 7
        %v2018 = vsub.s32 %v2015, %v2017
        %v2019 = vrot.slane %v2003, %v2018
        %v2021 = vunpack.c.l.s4 1966171168
        %v2022 = vunpack.c.0.s8 %v2021
        %v2023 = vlaneseq
        %v2024 = vshrl.u32 %v2023, 7
        %v2025 = vsub.s32 %v2022, %v2024
        %v2026 = vrot.slane %v2004, %v2025
        %v2028 = vunpack.c.l.s4 1966171168
        %v2029 = vunpack.c.0.s8 %v2028
        %v2030 = vlaneseq
        %v2031 = vshrl.u32 %v2030, 7
        %v2032 = vsub.s32 %v2029, %v2031
        %v2033 = vrot.slane %v2005, %v2032
        %v2034 = vcombine.high %v2012, %v2012
        %v2035 = vcombine.high %v2019, %v2019
        %v2036 = vcombine.high %v2026, %v2026
        %v2037 = vcombine.high %v2033, %v2033
        %v2038 = vcombine.high %v877, %v877
        %v2040 = vunpack.c.l.s4 1966171168
        %v2041 = vunpack.c.0.s8 %v2040
        %v2042 = vlaneseq
        %v2043 = vshrl.u32 %v2042, 7
        %v2044 = vsub.s32 %v2041, %v2043
        %v2045 = vrot.slane %v877, %v2044
        %v2047 = vunpack.c.l.s4 1966171168
        %v2048 = vunpack.c.0.s8 %v2047
        %v2049 = vlaneseq
        %v2050 = vshrl.u32 %v2049, 7
        %v2051 = vsub.s32 %v2048, %v2050
        %v2052 = vrot.slane %v2038, %v2051
        %v2053 = vcombine.high %v2045, %v2045
        %v2054 = vcombine.high %v2052, %v2052
        %v2056 = vunpack.c.l.s4 1966171168
        %v2057 = vunpack.c.0.s8 %v2056
        %v2058 = vlaneseq
        %v2059 = vshrl.u32 %v2058, 7
        %v2060 = vsub.s32 %v2057, %v2059
        %v2061 = vrot.slane %v2045, %v2060
        %v2063 = vunpack.c.l.s4 1966171168
        %v2064 = vunpack.c.0.s8 %v2063
        %v2065 = vlaneseq
        %v2066 = vshrl.u32 %v2065, 7
        %v2067 = vsub.s32 %v2064, %v2066
        %v2068 = vrot.slane %v2052, %v2067
        %v2070 = vunpack.c.l.s4 1966171168
        %v2071 = vunpack.c.0.s8 %v2070
        %v2072 = vlaneseq
        %v2073 = vshrl.u32 %v2072, 7
        %v2074 = vsub.s32 %v2071, %v2073
        %v2075 = vrot.slane %v2053, %v2074
        %v2077 = vunpack.c.l.s4 1966171168
        %v2078 = vunpack.c.0.s8 %v2077
        %v2079 = vlaneseq
        %v2080 = vshrl.u32 %v2079, 7
        %v2081 = vsub.s32 %v2078, %v2080
        %v2082 = vrot.slane %v2054, %v2081
        %v2083 = vcombine.high %v2061, %v2061
        %v2084 = vcombine.high %v2068, %v2068
        %v2085 = vcombine.high %v2075, %v2075
        %v2086 = vcombine.high %v2082, %v2082
        %v2103 = vsub.f32 %v1971, %v2012
        %v2104 = vsub.f32 %v1972, %v2026
        %v2105 = vsub.f32 %v1973, %v2034
        %v2106 = vsub.f32 %v1974, %v2036
        %v2107 = vsub.f32 %v1975, %v2019
        %v2108 = vsub.f32 %v1976, %v2033
        %v2109 = vsub.f32 %v1977, %v2035
        %v2110 = vsub.f32 %v1978, %v2037
        %v2111 = vsub.f32 %v1979, %v2061
        %v2112 = vsub.f32 %v1980, %v2075
        %v2113 = vsub.f32 %v1981, %v2083
        %v2114 = vsub.f32 %v1982, %v2085
        %v2115 = vsub.f32 %v1983, %v2068
        %v2116 = vsub.f32 %v1984, %v2082
        %v2117 = vsub.f32 %v1985, %v2084
        %v2118 = vsub.f32 %v1986, %v2086
        %2119 = vst [vmem:[%s564] sm:$0x1] %v2103
        %2120 = vst [vmem:[%s564 + $0x10] sm:$0x1] %v2104
        %2121 = vst [vmem:[%s564 + $0x20] sm:$0x1] %v2105
        %2122 = vst [vmem:[%s564 + $0x30] sm:$0x1] %v2106
        %2123 = vst [vmem:[%s564 + $0x40] sm:$0x1] %v2107
        %2124 = vst [vmem:[%s564 + $0x50] sm:$0x1] %v2108
        %2125 = vst [vmem:[%s564 + $0x60] sm:$0x1] %v2109
        %2126 = vst [vmem:[%s564 + $0x70] sm:$0x1] %v2110
        %2127 = vst [vmem:[%s564 + $0x80] sm:$0x1] %v2111
        %2128 = vst [vmem:[%s564 + $0x90] sm:$0x1] %v2112
        %2129 = vst [vmem:[%s564 + $0xa0] sm:$0x1] %v2113
        %2130 = vst [vmem:[%s564 + $0xb0] sm:$0x1] %v2114
        %2131 = vst [vmem:[%s564 + $0xc0] sm:$0x1] %v2115
        %2132 = vst [vmem:[%s564 + $0xd0] sm:$0x1] %v2116
        %2133 = vst [vmem:[%s564 + $0xe0] sm:$0x1] %v2117
        %2134 = vst [vmem:[%s564 + $0xf0] sm:$0x1] %v2118
        %v2135 = vld [vmem:[%s564 + $0xf] sm:$0x1]
        %v2136 = vld [vmem:[%s564 + $0x1f] sm:$0x1]
        %v2137 = vld [vmem:[%s564 + $0x2f] sm:$0x1]
        %v2138 = vld [vmem:[%s564 + $0x3f] sm:$0x1]
        %v2139 = vld [vmem:[%s564 + $0x4f] sm:$0x1]
        %v2140 = vld [vmem:[%s564 + $0x5f] sm:$0x1]
        %v2141 = vld [vmem:[%s564 + $0x6f] sm:$0x1]
        %v2142 = vld [vmem:[%s564 + $0x7f] sm:$0x1]
        %v2143 = vld [vmem:[%s564 + $0x8f] sm:$0x1]
        %v2144 = vld [vmem:[%s564 + $0x9f] sm:$0x1]
        %v2145 = vld [vmem:[%s564 + $0xaf] sm:$0x1]
        %v2146 = vld [vmem:[%s564 + $0xbf] sm:$0x1]
        %v2147 = vld [vmem:[%s564 + $0xcf] sm:$0x1]
        %v2148 = vld [vmem:[%s564 + $0xdf] sm:$0x1]
        %v2149 = vld [vmem:[%s564 + $0xef] sm:$0x1]
        %v2150 = vld [vmem:[%s564 + $0xff] sm:$0x1]
        %v2153 = vcombine.high %v972, %v972
        %v2155 = vunpack.c.l.s4 1966171168
        %v2156 = vunpack.c.0.s8 %v2155
        %v2157 = vlaneseq
        %v2158 = vshrl.u32 %v2157, 7
        %v2159 = vsub.s32 %v2156, %v2158
        %v2160 = vrot.slane %v972, %v2159
        %v2162 = vunpack.c.l.s4 1966171168
        %v2163 = vunpack.c.0.s8 %v2162
        %v2164 = vlaneseq
        %v2165 = vshrl.u32 %v2164, 7
        %v2166 = vsub.s32 %v2163, %v2165
        %v2167 = vrot.slane %v2153, %v2166
        %v2168 = vcombine.high %v2160, %v2160
        %v2169 = vcombine.high %v2167, %v2167
        %v2171 = vunpack.c.l.s4 1966171168
        %v2172 = vunpack.c.0.s8 %v2171
        %v2173 = vlaneseq
        %v2174 = vshrl.u32 %v2173, 7
        %v2175 = vsub.s32 %v2172, %v2174
        %v2176 = vrot.slane %v2160, %v2175
        %v2178 = vunpack.c.l.s4 1966171168
        %v2179 = vunpack.c.0.s8 %v2178
        %v2180 = vlaneseq
        %v2181 = vshrl.u32 %v2180, 7
        %v2182 = vsub.s32 %v2179, %v2181
        %v2183 = vrot.slane %v2167, %v2182
        %v2185 = vunpack.c.l.s4 1966171168
        %v2186 = vunpack.c.0.s8 %v2185
        %v2187 = vlaneseq
        %v2188 = vshrl.u32 %v2187, 7
        %v2189 = vsub.s32 %v2186, %v2188
        %v2190 = vrot.slane %v2168, %v2189
        %v2192 = vunpack.c.l.s4 1966171168
        %v2193 = vunpack.c.0.s8 %v2192
        %v2194 = vlaneseq
        %v2195 = vshrl.u32 %v2194, 7
        %v2196 = vsub.s32 %v2193, %v2195
        %v2197 = vrot.slane %v2169, %v2196
        %v2198 = vcombine.high %v2176, %v2176
        %v2199 = vcombine.high %v2183, %v2183
        %v2200 = vcombine.high %v2190, %v2190
        %v2201 = vcombine.high %v2197, %v2197
        %v2202 = vcombine.high %v975, %v975
        %v2204 = vunpack.c.l.s4 1966171168
        %v2205 = vunpack.c.0.s8 %v2204
        %v2206 = vlaneseq
        %v2207 = vshrl.u32 %v2206, 7
        %v2208 = vsub.s32 %v2205, %v2207
        %v2209 = vrot.slane %v975, %v2208
        %v2211 = vunpack.c.l.s4 1966171168
        %v2212 = vunpack.c.0.s8 %v2211
        %v2213 = vlaneseq
        %v2214 = vshrl.u32 %v2213, 7
        %v2215 = vsub.s32 %v2212, %v2214
        %v2216 = vrot.slane %v2202, %v2215
        %v2217 = vcombine.high %v2209, %v2209
        %v2218 = vcombine.high %v2216, %v2216
        %v2220 = vunpack.c.l.s4 1966171168
        %v2221 = vunpack.c.0.s8 %v2220
        %v2222 = vlaneseq
        %v2223 = vshrl.u32 %v2222, 7
        %v2224 = vsub.s32 %v2221, %v2223
        %v2225 = vrot.slane %v2209, %v2224
        %v2227 = vunpack.c.l.s4 1966171168
        %v2228 = vunpack.c.0.s8 %v2227
        %v2229 = vlaneseq
        %v2230 = vshrl.u32 %v2229, 7
        %v2231 = vsub.s32 %v2228, %v2230
        %v2232 = vrot.slane %v2216, %v2231
        %v2234 = vunpack.c.l.s4 1966171168
        %v2235 = vunpack.c.0.s8 %v2234
        %v2236 = vlaneseq
        %v2237 = vshrl.u32 %v2236, 7
        %v2238 = vsub.s32 %v2235, %v2237
        %v2239 = vrot.slane %v2217, %v2238
        %v2241 = vunpack.c.l.s4 1966171168
        %v2242 = vunpack.c.0.s8 %v2241
        %v2243 = vlaneseq
        %v2244 = vshrl.u32 %v2243, 7
        %v2245 = vsub.s32 %v2242, %v2244
        %v2246 = vrot.slane %v2218, %v2245
        %v2247 = vcombine.high %v2225, %v2225
        %v2248 = vcombine.high %v2232, %v2232
        %v2249 = vcombine.high %v2239, %v2239
        %v2250 = vcombine.high %v2246, %v2246
        %v2267 = vsub.f32 %v2135, %v2176
        %v2268 = vsub.f32 %v2136, %v2190
        %v2269 = vsub.f32 %v2137, %v2198
        %v2270 = vsub.f32 %v2138, %v2200
        %v2271 = vsub.f32 %v2139, %v2183
        %v2272 = vsub.f32 %v2140, %v2197
        %v2273 = vsub.f32 %v2141, %v2199
        %v2274 = vsub.f32 %v2142, %v2201
        %v2275 = vsub.f32 %v2143, %v2225
        %v2276 = vsub.f32 %v2144, %v2239
        %v2277 = vsub.f32 %v2145, %v2247
        %v2278 = vsub.f32 %v2146, %v2249
        %v2279 = vsub.f32 %v2147, %v2232
        %v2280 = vsub.f32 %v2148, %v2246
        %v2281 = vsub.f32 %v2149, %v2248
        %v2282 = vsub.f32 %v2150, %v2250
        %2283 = vst [vmem:[%s564 + $0xf] sm:$0x1] %v2267
        %2284 = vst [vmem:[%s564 + $0x1f] sm:$0x1] %v2268
        %2285 = vst [vmem:[%s564 + $0x2f] sm:$0x1] %v2269
        %2286 = vst [vmem:[%s564 + $0x3f] sm:$0x1] %v2270
        %2287 = vst [vmem:[%s564 + $0x4f] sm:$0x1] %v2271
        %2288 = vst [vmem:[%s564 + $0x5f] sm:$0x1] %v2272
        %2289 = vst [vmem:[%s564 + $0x6f] sm:$0x1] %v2273
        %2290 = vst [vmem:[%s564 + $0x7f] sm:$0x1] %v2274
        %2291 = vst [vmem:[%s564 + $0x8f] sm:$0x1] %v2275
        %2292 = vst [vmem:[%s564 + $0x9f] sm:$0x1] %v2276
        %2293 = vst [vmem:[%s564 + $0xaf] sm:$0x1] %v2277
        %2294 = vst [vmem:[%s564 + $0xbf] sm:$0x1] %v2278
        %2295 = vst [vmem:[%s564 + $0xcf] sm:$0x1] %v2279
        %2296 = vst [vmem:[%s564 + $0xdf] sm:$0x1] %v2280
        %2297 = vst [vmem:[%s564 + $0xef] sm:$0x1] %v2281
        %2298 = vst [vmem:[%s564 + $0xff] sm:$0x1] %v2282
        %v2301 = vunpack.c.l.b16 %v1687
        %v2302 = vunpack.c.l.b16 %v1688
        %v2303 = vpack.c.b16 %v2302, %v2301
        %v2305 = vsel %vm686, %v2303, 0
        %2307 = vmatprep.subr.bf16.mxu0 0
        %2308 = vmatpush1.bf16.msra.mxu0 0
        %2309 = vmatprep.subr.bf16.mxu0 0
        %2310 = vmatpush1.bf16.msra.mxu0 0
        %2311 = vmatprep.subr.bf16.mxu0 0
        %2312 = vmatpush1.bf16.msra.mxu0 0
        %2313 = vmatprep.subr.bf16.mxu0 0
        %2314 = vmatpush1.bf16.msra.mxu0 0
        %2315 = vmatprep.subr.bf16.mxu0 0
        %2316 = vmatpush1.bf16.msra.mxu0 0
        %2317 = vmatprep.subr.bf16.mxu0 0
        %2318 = vmatpush1.bf16.msra.mxu0 0
        %2319 = vmatprep.subr.bf16.mxu0 0
        %2320 = vmatpush1.bf16.msra.mxu0 0
        %2321 = vmatprep.subr.bf16.mxu0 0
        %2322 = vmatpush1.bf16.msra.mxu0 %v2305
        %2323 = vmatprep.subr.bf16.mxu0 0
        %2324 = vmatpush2.bf16.msra.mxu0 0
        %2325 = vmatprep.subr.bf16.mxu0 0
        %2326 = vmatpush2.bf16.msra.mxu0 0
        %2327 = vmatprep.subr.bf16.mxu0 0
        %2328 = vmatpush2.bf16.msra.mxu0 0
        %2329 = vmatprep.subr.bf16.mxu0 0
        %2330 = vmatpush2.bf16.msra.mxu0 0
        %2331 = vmatprep.subr.bf16.mxu0 0
        %2332 = vmatpush2.bf16.msra.mxu0 0
        %2333 = vmatprep.subr.bf16.mxu0 0
        %2334 = vmatpush2.bf16.msra.mxu0 0
        %2335 = vmatprep.subr.bf16.mxu0 0
        %2336 = vmatpush2.bf16.msra.mxu0 0
        %2337 = vmatprep.subr.bf16.mxu0 0
        %2338 = vmatpush2.bf16.msra.mxu0 0
        %2339 = vmatprep.mubr.bf16.mxu0 0
        %2340 = vmatmul.mubr.bf16.gmra.mxu0 %v1698
        %v2341 = vpop.f32.mrf.mxu0
        %v2342 = vadd.f32 0.0, %v2341
        %v2343 = vpop.f32.mrf.mxu0
        %v2344 = vpop.f32.mrf.mxu0
        %v2345 = vadd.f32 0.0, %v2344
        %v2346 = vpop.f32.mrf.mxu0
        %2347 = vmatprep.mubr.bf16.mxu0 0
        %2348 = vmatmul.mubr.bf16.gmra.mxu0 %v1700
        %v2349 = vpop.f32.mrf.mxu0
        %v2350 = vadd.f32 0.0, %v2349
        %v2351 = vpop.f32.mrf.mxu0
        %v2352 = vpop.f32.mrf.mxu0
        %v2353 = vadd.f32 0.0, %v2352
        %v2354 = vpop.f32.mrf.mxu0
        %2355 = vmatprep.mubr.bf16.mxu0 0
        %2356 = vmatmul.mubr.bf16.gmra.mxu0 %v1702
        %v2357 = vpop.f32.mrf.mxu0
        %v2358 = vadd.f32 0.0, %v2357
        %v2359 = vpop.f32.mrf.mxu0
        %v2360 = vpop.f32.mrf.mxu0
        %v2361 = vadd.f32 0.0, %v2360
        %v2362 = vpop.f32.mrf.mxu0
        %2363 = vmatprep.mubr.bf16.mxu0 0
        %2364 = vmatmul.mubr.bf16.gmra.mxu0 %v1704
        %v2365 = vpop.f32.mrf.mxu0
        %v2366 = vadd.f32 0.0, %v2365
        %v2367 = vpop.f32.mrf.mxu0
        %v2368 = vpop.f32.mrf.mxu0
        %v2369 = vadd.f32 0.0, %v2368
        %v2370 = vpop.f32.mrf.mxu0
        %2371 = vmatprep.mubr.bf16.mxu0 0
        %2372 = vmatmul.mubr.bf16.gmra.mxu0 %v1706
        %v2373 = vpop.f32.mrf.mxu0
        %v2374 = vadd.f32 0.0, %v2373
        %v2375 = vpop.f32.mrf.mxu0
        %v2376 = vpop.f32.mrf.mxu0
        %v2377 = vadd.f32 0.0, %v2376
        %v2378 = vpop.f32.mrf.mxu0
        %2379 = vmatprep.mubr.bf16.mxu0 0
        %2380 = vmatmul.mubr.bf16.gmra.mxu0 %v1708
        %v2381 = vpop.f32.mrf.mxu0
        %v2382 = vadd.f32 0.0, %v2381
        %v2383 = vpop.f32.mrf.mxu0
        %v2384 = vpop.f32.mrf.mxu0
        %v2385 = vadd.f32 0.0, %v2384
        %v2386 = vpop.f32.mrf.mxu0
        %2387 = vmatprep.mubr.bf16.mxu0 0
        %2388 = vmatmul.mubr.bf16.gmra.mxu0 %v1710
        %v2389 = vpop.f32.mrf.mxu0
        %v2390 = vadd.f32 0.0, %v2389
        %v2391 = vpop.f32.mrf.mxu0
        %v2392 = vpop.f32.mrf.mxu0
        %v2393 = vadd.f32 0.0, %v2392
        %v2394 = vpop.f32.mrf.mxu0
        %2395 = vmatprep.mubr.bf16.mxu0 0
        %2396 = vmatmul.mubr.bf16.gmra.mxu0 %v1712
        %v2397 = vpop.f32.mrf.mxu0
        %v2398 = vadd.f32 0.0, %v2397
        %v2399 = vpop.f32.mrf.mxu0
        %v2400 = vpop.f32.mrf.mxu0
        %v2401 = vadd.f32 0.0, %v2400
        %v2402 = vpop.f32.mrf.mxu0
        %2403 = vmatprep.mubr.bf16.mxu0 0
        %2404 = vmatmul.mubr.bf16.gmra.mxu0 %v1714
        %v2405 = vpop.f32.mrf.mxu0
        %v2406 = vadd.f32 0.0, %v2405
        %v2407 = vpop.f32.mrf.mxu0
        %v2408 = vpop.f32.mrf.mxu0
        %v2409 = vadd.f32 0.0, %v2408
        %v2410 = vpop.f32.mrf.mxu0
        %2411 = vmatprep.mubr.bf16.mxu0 0
        %2412 = vmatmul.mubr.bf16.gmra.mxu0 %v1716
        %v2413 = vpop.f32.mrf.mxu0
        %v2414 = vadd.f32 0.0, %v2413
        %v2415 = vpop.f32.mrf.mxu0
        %v2416 = vpop.f32.mrf.mxu0
        %v2417 = vadd.f32 0.0, %v2416
        %v2418 = vpop.f32.mrf.mxu0
        %2419 = vmatprep.mubr.bf16.mxu0 0
        %2420 = vmatmul.mubr.bf16.gmra.mxu0 %v1718
        %v2421 = vpop.f32.mrf.mxu0
        %v2422 = vadd.f32 0.0, %v2421
        %v2423 = vpop.f32.mrf.mxu0
        %v2424 = vpop.f32.mrf.mxu0
        %v2425 = vadd.f32 0.0, %v2424
        %v2426 = vpop.f32.mrf.mxu0
        %2427 = vmatprep.mubr.bf16.mxu0 0
        %2428 = vmatmul.mubr.bf16.gmra.mxu0 %v1720
        %v2429 = vpop.f32.mrf.mxu0
        %v2430 = vadd.f32 0.0, %v2429
        %v2431 = vpop.f32.mrf.mxu0
        %v2432 = vpop.f32.mrf.mxu0
        %v2433 = vadd.f32 0.0, %v2432
        %v2434 = vpop.f32.mrf.mxu0
        %2435 = vmatprep.mubr.bf16.mxu0 0
        %2436 = vmatmul.mubr.bf16.gmra.mxu0 %v1722
        %v2437 = vpop.f32.mrf.mxu0
        %v2438 = vadd.f32 0.0, %v2437
        %v2439 = vpop.f32.mrf.mxu0
        %v2440 = vpop.f32.mrf.mxu0
        %v2441 = vadd.f32 0.0, %v2440
        %v2442 = vpop.f32.mrf.mxu0
        %2443 = vmatprep.mubr.bf16.mxu0 0
        %2444 = vmatmul.mubr.bf16.gmra.mxu0 %v1724
        %v2445 = vpop.f32.mrf.mxu0
        %v2446 = vadd.f32 0.0, %v2445
        %v2447 = vpop.f32.mrf.mxu0
        %v2448 = vpop.f32.mrf.mxu0
        %v2449 = vadd.f32 0.0, %v2448
        %v2450 = vpop.f32.mrf.mxu0
        %2451 = vmatprep.mubr.bf16.mxu0 0
        %2452 = vmatmul.mubr.bf16.gmra.mxu0 %v1726
        %v2453 = vpop.f32.mrf.mxu0
        %v2454 = vadd.f32 0.0, %v2453
        %v2455 = vpop.f32.mrf.mxu0
        %v2456 = vpop.f32.mrf.mxu0
        %v2457 = vadd.f32 0.0, %v2456
        %v2458 = vpop.f32.mrf.mxu0
        %2459 = vmatprep.mubr.bf16.mxu0 0
        %2460 = vmatmul.mubr.bf16.gmra.mxu0 %v1728
        %v2461 = vpop.f32.mrf.mxu0
        %v2462 = vpop.f32.mrf.mxu0
        %v2463 = vpop.f32.mrf.mxu0
        %v2464 = vpop.f32.mrf.mxu0
        %2465 = vdwg.mxu0
        %s2466 = scalar_lea.vmem %s564, 16 [#allocation3]
        %v2467 = vld [vmem:[%s2466] sm:$0xff]
        %v2468 = vld [vmem:[%s2466 + $0x8] sm:$0xff]
        %v2469 = vld [vmem:[%s2466 + $0x10] sm:$0xff]
        %v2470 = vld [vmem:[%s2466 + $0x18] sm:$0xff]
        %v2471 = vld [vmem:[%s2466 + $0x20] sm:$0xff]
        %v2472 = vld [vmem:[%s2466 + $0x28] sm:$0xff]
        %v2473 = vld [vmem:[%s2466 + $0x30] sm:$0xff]
        %v2474 = vld [vmem:[%s2466 + $0x38] sm:$0xff]
        %v2475 = vld [vmem:[%s2466 + $0x40] sm:$0xff]
        %v2476 = vld [vmem:[%s2466 + $0x48] sm:$0xff]
        %v2477 = vld [vmem:[%s2466 + $0x50] sm:$0xff]
        %v2478 = vld [vmem:[%s2466 + $0x58] sm:$0xff]
        %v2479 = vld [vmem:[%s2466 + $0x60] sm:$0xff]
        %v2480 = vld [vmem:[%s2466 + $0x68] sm:$0xff]
        %v2481 = vld [vmem:[%s2466 + $0x70] sm:$0xff]
        %v2482 = vld [vmem:[%s2466 + $0x78] sm:$0xff]
        %v2483 = vld [vmem:[%s2466 + $0x80] sm:$0xff]
        %v2484 = vld [vmem:[%s2466 + $0x88] sm:$0xff]
        %v2485 = vld [vmem:[%s2466 + $0x90] sm:$0xff]
        %v2486 = vld [vmem:[%s2466 + $0x98] sm:$0xff]
        %v2487 = vld [vmem:[%s2466 + $0xa0] sm:$0xff]
        %v2488 = vld [vmem:[%s2466 + $0xa8] sm:$0xff]
        %v2489 = vld [vmem:[%s2466 + $0xb0] sm:$0xff]
        %v2490 = vld [vmem:[%s2466 + $0xb8] sm:$0xff]
        %v2491 = vld [vmem:[%s2466 + $0xc0] sm:$0xff]
        %v2492 = vld [vmem:[%s2466 + $0xc8] sm:$0xff]
        %v2493 = vld [vmem:[%s2466 + $0xd0] sm:$0xff]
        %v2494 = vld [vmem:[%s2466 + $0xd8] sm:$0xff]
        %v2495 = vld [vmem:[%s2466 + $0xe0] sm:$0xff]
        %v2496 = vld [vmem:[%s2466 + $0xe8] sm:$0xff]
        %v2497 = vadd.f32 %v2467, %v2342
        %v2498 = vadd.f32 %v2468, %v2345
        %v2499 = vadd.f32 %v2469, %v2350
        %v2500 = vadd.f32 %v2470, %v2353
        %v2501 = vadd.f32 %v2471, %v2358
        %v2502 = vadd.f32 %v2472, %v2361
        %v2503 = vadd.f32 %v2473, %v2366
        %v2504 = vadd.f32 %v2474, %v2369
        %v2505 = vadd.f32 %v2475, %v2374
        %v2506 = vadd.f32 %v2476, %v2377
        %v2507 = vadd.f32 %v2477, %v2382
        %v2508 = vadd.f32 %v2478, %v2385
        %v2509 = vadd.f32 %v2479, %v2390
        %v2510 = vadd.f32 %v2480, %v2393
        %v2511 = vadd.f32 %v2481, %v2398
        %v2512 = vadd.f32 %v2482, %v2401
        %v2513 = vadd.f32 %v2483, %v2406
        %v2514 = vadd.f32 %v2484, %v2409
        %v2515 = vadd.f32 %v2485, %v2414
        %v2516 = vadd.f32 %v2486, %v2417
        %v2517 = vadd.f32 %v2487, %v2422
        %v2518 = vadd.f32 %v2488, %v2425
        %v2519 = vadd.f32 %v2489, %v2430
        %v2520 = vadd.f32 %v2490, %v2433
        %v2521 = vadd.f32 %v2491, %v2438
        %v2522 = vadd.f32 %v2492, %v2441
        %v2523 = vadd.f32 %v2493, %v2446
        %v2524 = vadd.f32 %v2494, %v2449
        %v2525 = vadd.f32 %v2495, %v2454
        %v2526 = vadd.f32 %v2496, %v2457
        %2527 = vst [vmem:[%s2466] sm:$0xff] %v2497
        %2528 = vst [vmem:[%s2466 + $0x8] sm:$0xff] %v2498
        %2529 = vst [vmem:[%s2466 + $0x10] sm:$0xff] %v2499
        %2530 = vst [vmem:[%s2466 + $0x18] sm:$0xff] %v2500
        %2531 = vst [vmem:[%s2466 + $0x20] sm:$0xff] %v2501
        %2532 = vst [vmem:[%s2466 + $0x28] sm:$0xff] %v2502
        %2533 = vst [vmem:[%s2466 + $0x30] sm:$0xff] %v2503
        %2534 = vst [vmem:[%s2466 + $0x38] sm:$0xff] %v2504
        %2535 = vst [vmem:[%s2466 + $0x40] sm:$0xff] %v2505
        %2536 = vst [vmem:[%s2466 + $0x48] sm:$0xff] %v2506
        %2537 = vst [vmem:[%s2466 + $0x50] sm:$0xff] %v2507
        %2538 = vst [vmem:[%s2466 + $0x58] sm:$0xff] %v2508
        %2539 = vst [vmem:[%s2466 + $0x60] sm:$0xff] %v2509
        %2540 = vst [vmem:[%s2466 + $0x68] sm:$0xff] %v2510
        %2541 = vst [vmem:[%s2466 + $0x70] sm:$0xff] %v2511
        %2542 = vst [vmem:[%s2466 + $0x78] sm:$0xff] %v2512
        %2543 = vst [vmem:[%s2466 + $0x80] sm:$0xff] %v2513
        %2544 = vst [vmem:[%s2466 + $0x88] sm:$0xff] %v2514
        %2545 = vst [vmem:[%s2466 + $0x90] sm:$0xff] %v2515
        %2546 = vst [vmem:[%s2466 + $0x98] sm:$0xff] %v2516
        %2547 = vst [vmem:[%s2466 + $0xa0] sm:$0xff] %v2517
        %2548 = vst [vmem:[%s2466 + $0xa8] sm:$0xff] %v2518
        %2549 = vst [vmem:[%s2466 + $0xb0] sm:$0xff] %v2519
        %2550 = vst [vmem:[%s2466 + $0xb8] sm:$0xff] %v2520
        %2551 = vst [vmem:[%s2466 + $0xc0] sm:$0xff] %v2521
        %2552 = vst [vmem:[%s2466 + $0xc8] sm:$0xff] %v2522
        %2553 = vst [vmem:[%s2466 + $0xd0] sm:$0xff] %v2523
        %2554 = vst [vmem:[%s2466 + $0xd8] sm:$0xff] %v2524
        %2555 = vst [vmem:[%s2466 + $0xe0] sm:$0xff] %v2525
        %2556 = vst [vmem:[%s2466 + $0xe8] sm:$0xff] %v2526
        %v2559 = vunpack.c.l.b16 %v1691
        %v2560 = vunpack.c.l.b16 %v1692
        %v2561 = vpack.c.b16 %v2560, %v2559
        %v2563 = vsel %vm686, %v2561, 0
        %2565 = vmatprep.subr.bf16.mxu0 0
        %2566 = vmatpush1.bf16.msra.mxu0 0
        %2567 = vmatprep.subr.bf16.mxu0 0
        %2568 = vmatpush1.bf16.msra.mxu0 0
        %2569 = vmatprep.subr.bf16.mxu0 0
        %2570 = vmatpush1.bf16.msra.mxu0 0
        %2571 = vmatprep.subr.bf16.mxu0 0
        %2572 = vmatpush1.bf16.msra.mxu0 0
        %2573 = vmatprep.subr.bf16.mxu0 0
        %2574 = vmatpush1.bf16.msra.mxu0 0
        %2575 = vmatprep.subr.bf16.mxu0 0
        %2576 = vmatpush1.bf16.msra.mxu0 0
        %2577 = vmatprep.subr.bf16.mxu0 0
        %2578 = vmatpush1.bf16.msra.mxu0 0
        %2579 = vmatprep.subr.bf16.mxu0 0
        %2580 = vmatpush1.bf16.msra.mxu0 %v2563
        %2581 = vmatprep.subr.bf16.mxu0 0
        %2582 = vmatpush2.bf16.msra.mxu0 0
        %2583 = vmatprep.subr.bf16.mxu0 0
        %2584 = vmatpush2.bf16.msra.mxu0 0
        %2585 = vmatprep.subr.bf16.mxu0 0
        %2586 = vmatpush2.bf16.msra.mxu0 0
        %2587 = vmatprep.subr.bf16.mxu0 0
        %2588 = vmatpush2.bf16.msra.mxu0 0
        %2589 = vmatprep.subr.bf16.mxu0 0
        %2590 = vmatpush2.bf16.msra.mxu0 0
        %2591 = vmatprep.subr.bf16.mxu0 0
        %2592 = vmatpush2.bf16.msra.mxu0 0
        %2593 = vmatprep.subr.bf16.mxu0 0
        %2594 = vmatpush2.bf16.msra.mxu0 0
        %2595 = vmatprep.subr.bf16.mxu0 0
        %2596 = vmatpush2.bf16.msra.mxu0 0
        %2597 = vmatprep.mubr.bf16.mxu0 0
        %2598 = vmatmul.mubr.bf16.gmra.mxu0 %v1698
        %v2599 = vpop.f32.mrf.mxu0
        %v2600 = vpop.f32.mrf.mxu0
        %v2601 = vpop.f32.mrf.mxu0
        %v2602 = vpop.f32.mrf.mxu0
        %2603 = vmatprep.mubr.bf16.mxu0 0
        %2604 = vmatmul.mubr.bf16.gmra.mxu0 %v1700
        %v2605 = vpop.f32.mrf.mxu0
        %v2606 = vadd.f32 0.0, %v2605
        %v2607 = vpop.f32.mrf.mxu0
        %v2608 = vpop.f32.mrf.mxu0
        %v2609 = vadd.f32 0.0, %v2608
        %v2610 = vpop.f32.mrf.mxu0
        %2611 = vmatprep.mubr.bf16.mxu0 0
        %2612 = vmatmul.mubr.bf16.gmra.mxu0 %v1702
        %v2613 = vpop.f32.mrf.mxu0
        %v2614 = vadd.f32 0.0, %v2613
        %v2615 = vpop.f32.mrf.mxu0
        %v2616 = vpop.f32.mrf.mxu0
        %v2617 = vadd.f32 0.0, %v2616
        %v2618 = vpop.f32.mrf.mxu0
        %2619 = vmatprep.mubr.bf16.mxu0 0
        %2620 = vmatmul.mubr.bf16.gmra.mxu0 %v1704
        %v2621 = vpop.f32.mrf.mxu0
        %v2622 = vadd.f32 0.0, %v2621
        %v2623 = vpop.f32.mrf.mxu0
        %v2624 = vpop.f32.mrf.mxu0
        %v2625 = vadd.f32 0.0, %v2624
        %v2626 = vpop.f32.mrf.mxu0
        %2627 = vmatprep.mubr.bf16.mxu0 0
        %2628 = vmatmul.mubr.bf16.gmra.mxu0 %v1706
        %v2629 = vpop.f32.mrf.mxu0
        %v2630 = vadd.f32 0.0, %v2629
        %v2631 = vpop.f32.mrf.mxu0
        %v2632 = vpop.f32.mrf.mxu0
        %v2633 = vadd.f32 0.0, %v2632
        %v2634 = vpop.f32.mrf.mxu0
        %2635 = vmatprep.mubr.bf16.mxu0 0
        %2636 = vmatmul.mubr.bf16.gmra.mxu0 %v1708
        %v2637 = vpop.f32.mrf.mxu0
        %v2638 = vadd.f32 0.0, %v2637
        %v2639 = vpop.f32.mrf.mxu0
        %v2640 = vpop.f32.mrf.mxu0
        %v2641 = vadd.f32 0.0, %v2640
        %v2642 = vpop.f32.mrf.mxu0
        %2643 = vmatprep.mubr.bf16.mxu0 0
        %2644 = vmatmul.mubr.bf16.gmra.mxu0 %v1710
        %v2645 = vpop.f32.mrf.mxu0
        %v2646 = vadd.f32 0.0, %v2645
        %v2647 = vpop.f32.mrf.mxu0
        %v2648 = vpop.f32.mrf.mxu0
        %v2649 = vadd.f32 0.0, %v2648
        %v2650 = vpop.f32.mrf.mxu0
        %2651 = vmatprep.mubr.bf16.mxu0 0
        %2652 = vmatmul.mubr.bf16.gmra.mxu0 %v1712
        %v2653 = vpop.f32.mrf.mxu0
        %v2654 = vadd.f32 0.0, %v2653
        %v2655 = vpop.f32.mrf.mxu0
        %v2656 = vpop.f32.mrf.mxu0
        %v2657 = vadd.f32 0.0, %v2656
        %v2658 = vpop.f32.mrf.mxu0
        %2659 = vmatprep.mubr.bf16.mxu0 0
        %2660 = vmatmul.mubr.bf16.gmra.mxu0 %v1714
        %v2661 = vpop.f32.mrf.mxu0
        %v2662 = vadd.f32 0.0, %v2661
        %v2663 = vpop.f32.mrf.mxu0
        %v2664 = vpop.f32.mrf.mxu0
        %v2665 = vadd.f32 0.0, %v2664
        %v2666 = vpop.f32.mrf.mxu0
        %2667 = vmatprep.mubr.bf16.mxu0 0
        %2668 = vmatmul.mubr.bf16.gmra.mxu0 %v1716
        %v2669 = vpop.f32.mrf.mxu0
        %v2670 = vadd.f32 0.0, %v2669
        %v2671 = vpop.f32.mrf.mxu0
        %v2672 = vpop.f32.mrf.mxu0
        %v2673 = vadd.f32 0.0, %v2672
        %v2674 = vpop.f32.mrf.mxu0
        %2675 = vmatprep.mubr.bf16.mxu0 0
        %2676 = vmatmul.mubr.bf16.gmra.mxu0 %v1718
        %v2677 = vpop.f32.mrf.mxu0
        %v2678 = vadd.f32 0.0, %v2677
        %v2679 = vpop.f32.mrf.mxu0
        %v2680 = vpop.f32.mrf.mxu0
        %v2681 = vadd.f32 0.0, %v2680
        %v2682 = vpop.f32.mrf.mxu0
        %2683 = vmatprep.mubr.bf16.mxu0 0
        %2684 = vmatmul.mubr.bf16.gmra.mxu0 %v1720
        %v2685 = vpop.f32.mrf.mxu0
        %v2686 = vadd.f32 0.0, %v2685
        %v2687 = vpop.f32.mrf.mxu0
        %v2688 = vpop.f32.mrf.mxu0
        %v2689 = vadd.f32 0.0, %v2688
        %v2690 = vpop.f32.mrf.mxu0
        %2691 = vmatprep.mubr.bf16.mxu0 0
        %2692 = vmatmul.mubr.bf16.gmra.mxu0 %v1722
        %v2693 = vpop.f32.mrf.mxu0
        %v2694 = vadd.f32 0.0, %v2693
        %v2695 = vpop.f32.mrf.mxu0
        %v2696 = vpop.f32.mrf.mxu0
        %v2697 = vadd.f32 0.0, %v2696
        %v2698 = vpop.f32.mrf.mxu0
        %2699 = vmatprep.mubr.bf16.mxu0 0
        %2700 = vmatmul.mubr.bf16.gmra.mxu0 %v1724
        %v2701 = vpop.f32.mrf.mxu0
        %v2702 = vadd.f32 0.0, %v2701
        %v2703 = vpop.f32.mrf.mxu0
        %v2704 = vpop.f32.mrf.mxu0
        %v2705 = vadd.f32 0.0, %v2704
        %v2706 = vpop.f32.mrf.mxu0
        %2707 = vmatprep.mubr.bf16.mxu0 0
        %2708 = vmatmul.mubr.bf16.gmra.mxu0 %v1726
        %v2709 = vpop.f32.mrf.mxu0
        %v2710 = vadd.f32 0.0, %v2709
        %v2711 = vpop.f32.mrf.mxu0
        %v2712 = vpop.f32.mrf.mxu0
        %v2713 = vadd.f32 0.0, %v2712
        %v2714 = vpop.f32.mrf.mxu0
        %2715 = vmatprep.mubr.bf16.mxu0 0
        %2716 = vmatmul.mubr.bf16.gmra.mxu0 %v1728
        %v2717 = vpop.f32.mrf.mxu0
        %v2718 = vadd.f32 0.0, %v2717
        %v2719 = vpop.f32.mrf.mxu0
        %v2720 = vpop.f32.mrf.mxu0
        %v2721 = vadd.f32 0.0, %v2720
        %v2722 = vpop.f32.mrf.mxu0
        %2723 = vdwg.mxu0
        %v2724 = vld [vmem:[%s564] sm:$0xff]
        %v2725 = vld [vmem:[%s564 + $0x8] sm:$0xff]
        %v2726 = vld [vmem:[%s564 + $0x10] sm:$0xff]
        %v2727 = vld [vmem:[%s564 + $0x18] sm:$0xff]
        %v2728 = vld [vmem:[%s564 + $0x20] sm:$0xff]
        %v2729 = vld [vmem:[%s564 + $0x28] sm:$0xff]
        %v2730 = vld [vmem:[%s564 + $0x30] sm:$0xff]
        %v2731 = vld [vmem:[%s564 + $0x38] sm:$0xff]
        %v2732 = vld [vmem:[%s564 + $0x40] sm:$0xff]
        %v2733 = vld [vmem:[%s564 + $0x48] sm:$0xff]
        %v2734 = vld [vmem:[%s564 + $0x50] sm:$0xff]
        %v2735 = vld [vmem:[%s564 + $0x58] sm:$0xff]
        %v2736 = vld [vmem:[%s564 + $0x60] sm:$0xff]
        %v2737 = vld [vmem:[%s564 + $0x68] sm:$0xff]
        %v2738 = vld [vmem:[%s564 + $0x70] sm:$0xff]
        %v2739 = vld [vmem:[%s564 + $0x78] sm:$0xff]
        %v2740 = vld [vmem:[%s564 + $0x80] sm:$0xff]
        %v2741 = vld [vmem:[%s564 + $0x88] sm:$0xff]
        %v2742 = vld [vmem:[%s564 + $0x90] sm:$0xff]
        %v2743 = vld [vmem:[%s564 + $0x98] sm:$0xff]
        %v2744 = vld [vmem:[%s564 + $0xa0] sm:$0xff]
        %v2745 = vld [vmem:[%s564 + $0xa8] sm:$0xff]
        %v2746 = vld [vmem:[%s564 + $0xb0] sm:$0xff]
        %v2747 = vld [vmem:[%s564 + $0xb8] sm:$0xff]
        %v2748 = vld [vmem:[%s564 + $0xc0] sm:$0xff]
        %v2749 = vld [vmem:[%s564 + $0xc8] sm:$0xff]
        %v2750 = vld [vmem:[%s564 + $0xd0] sm:$0xff]
        %v2751 = vld [vmem:[%s564 + $0xd8] sm:$0xff]
        %v2752 = vld [vmem:[%s564 + $0xe0] sm:$0xff]
        %v2753 = vld [vmem:[%s564 + $0xe8] sm:$0xff]
        %v2754 = vadd.f32 %v2724, %v2606
        %v2755 = vadd.f32 %v2725, %v2609
        %v2756 = vadd.f32 %v2726, %v2614
        %v2757 = vadd.f32 %v2727, %v2617
        %v2758 = vadd.f32 %v2728, %v2622
        %v2759 = vadd.f32 %v2729, %v2625
        %v2760 = vadd.f32 %v2730, %v2630
        %v2761 = vadd.f32 %v2731, %v2633
        %v2762 = vadd.f32 %v2732, %v2638
        %v2763 = vadd.f32 %v2733, %v2641
        %v2764 = vadd.f32 %v2734, %v2646
        %v2765 = vadd.f32 %v2735, %v2649
        %v2766 = vadd.f32 %v2736, %v2654
        %v2767 = vadd.f32 %v2737, %v2657
        %v2768 = vadd.f32 %v2738, %v2662
        %v2769 = vadd.f32 %v2739, %v2665
        %v2770 = vadd.f32 %v2740, %v2670
        %v2771 = vadd.f32 %v2741, %v2673
        %v2772 = vadd.f32 %v2742, %v2678
        %v2773 = vadd.f32 %v2743, %v2681
        %v2774 = vadd.f32 %v2744, %v2686
        %v2775 = vadd.f32 %v2745, %v2689
        %v2776 = vadd.f32 %v2746, %v2694
        %v2777 = vadd.f32 %v2747, %v2697
        %v2778 = vadd.f32 %v2748, %v2702
        %v2779 = vadd.f32 %v2749, %v2705
        %v2780 = vadd.f32 %v2750, %v2710
        %v2781 = vadd.f32 %v2751, %v2713
        %v2782 = vadd.f32 %v2752, %v2718
        %v2783 = vadd.f32 %v2753, %v2721
        %2784 = vst [vmem:[%s564] sm:$0xff] %v2754
        %2785 = vst [vmem:[%s564 + $0x8] sm:$0xff] %v2755
        %2786 = vst [vmem:[%s564 + $0x10] sm:$0xff] %v2756
        %2787 = vst [vmem:[%s564 + $0x18] sm:$0xff] %v2757
        %2788 = vst [vmem:[%s564 + $0x20] sm:$0xff] %v2758
        %2789 = vst [vmem:[%s564 + $0x28] sm:$0xff] %v2759
        %2790 = vst [vmem:[%s564 + $0x30] sm:$0xff] %v2760
        %2791 = vst [vmem:[%s564 + $0x38] sm:$0xff] %v2761
        %2792 = vst [vmem:[%s564 + $0x40] sm:$0xff] %v2762
        %2793 = vst [vmem:[%s564 + $0x48] sm:$0xff] %v2763
        %2794 = vst [vmem:[%s564 + $0x50] sm:$0xff] %v2764
        %2795 = vst [vmem:[%s564 + $0x58] sm:$0xff] %v2765
        %2796 = vst [vmem:[%s564 + $0x60] sm:$0xff] %v2766
        %2797 = vst [vmem:[%s564 + $0x68] sm:$0xff] %v2767
        %2798 = vst [vmem:[%s564 + $0x70] sm:$0xff] %v2768
        %2799 = vst [vmem:[%s564 + $0x78] sm:$0xff] %v2769
        %2800 = vst [vmem:[%s564 + $0x80] sm:$0xff] %v2770
        %2801 = vst [vmem:[%s564 + $0x88] sm:$0xff] %v2771
        %2802 = vst [vmem:[%s564 + $0x90] sm:$0xff] %v2772
        %2803 = vst [vmem:[%s564 + $0x98] sm:$0xff] %v2773
        %2804 = vst [vmem:[%s564 + $0xa0] sm:$0xff] %v2774
        %2805 = vst [vmem:[%s564 + $0xa8] sm:$0xff] %v2775
        %2806 = vst [vmem:[%s564 + $0xb0] sm:$0xff] %v2776
        %2807 = vst [vmem:[%s564 + $0xb8] sm:$0xff] %v2777
        %2808 = vst [vmem:[%s564 + $0xc0] sm:$0xff] %v2778
        %2809 = vst [vmem:[%s564 + $0xc8] sm:$0xff] %v2779
        %2810 = vst [vmem:[%s564 + $0xd0] sm:$0xff] %v2780
        %2811 = vst [vmem:[%s564 + $0xd8] sm:$0xff] %v2781
        %2812 = vst [vmem:[%s564 + $0xe0] sm:$0xff] %v2782
        %2813 = vst [vmem:[%s564 + $0xe8] sm:$0xff] %v2783
        %s2814 = sand.u32 %s228, 1
        %s2815 = sand.u32 %s228, 1
        %s2816 = smul.addr %s2815, 256
        %s2817 = scalar_lea.vmem [#allocation3], %s2816
        // Predicated region
        $region90: #{conv3d_aware.1} parent=84 // pred_check
          %p2818 = pneg %p238
        $region91: #{conv3d_aware.1} parent=84 // pred_check_branch
          %2820 = sbr.rel (%p2818) target = $region93
        $region92: #{conv3d_aware.1} parent=84 // pred_region
          %s2821 = smul.u32 2, %s23
          %s2822 = smul.addr %s22, 96
          %s2823 = sadd.s32 %s2821, %s2822
          %s2824 = smul.addr %s2823, 8
          %s2825 = scalar_lea.vmem %s7, %s2824
          // Predicated region
          $region94: #{conv3d_aware.1} parent=92 // pred_check
            _
          $region95: #{conv3d_aware.1} parent=92 // pred_check_branch
            %2827 = sbr.rel (0) target = $region97
          $region96: #{conv3d_aware.1} parent=92 // pred_region
            // Predicated region
            $region98: #{conv3d_aware.1} parent=96 // pred_check
              _
            $region99: #{conv3d_aware.1} parent=96 // pred_check_branch
              %2829 = sbr.rel (0) target = $region101
            $region100: #{conv3d_aware.1} parent=96 // pred_region
              // Predicated region
              $region113: #{conv3d_aware.1} parent=100 // pred_check
                _
              $region114: #{conv3d_aware.1} parent=100 // pred_check_branch
                %2907 = sbr.rel (0) target = $region116
              $region115: #{conv3d_aware.1} parent=100 // pred_region
                loop: start=0, step=1, limit=1
                $region117: #{conv3d_aware.1} parent=115 // loop_pre_header
                  _
                $region118: #{conv3d_aware.1} parent=115 // loop_header
                  %s2909 = sphi 0, %s2913
                  %p2910 = scmp.ge.s32.totalorder %s2909, 1
                  %s2914 = sphi %s2817, %s2817
                  %s2915 = sphi %s2825, %s2825
                $region119: #{conv3d_aware.1} parent=115 // loop_header_branch
                  %2912 = sbr.rel (%p2910) target = $region123
                $region120: #{conv3d_aware.1} parent=115 // loop_body
                  %v2916 = vld [vmem:[%s2914] sm:$0xff]
                  %2917 = vst [vmem:[%s2915] sm:$0xff] %v2916
                  %v2918 = vld [vmem:[%s2914 + $0x8] sm:$0xff]
                  %2919 = vst [vmem:[%s2915 + $0x8] sm:$0xff] %v2918
                  %v2920 = vld [vmem:[%s2914 + $0x10] sm:$0xff]
                  %2921 = vst [vmem:[%s2915 + $0x30] sm:$0xff] %v2920
                  %v2922 = vld [vmem:[%s2914 + $0x18] sm:$0xff]
                  %2923 = vst [vmem:[%s2915 + $0x38] sm:$0xff] %v2922
                  %v2924 = vld [vmem:[%s2914 + $0x20] sm:$0xff]
                  %2925 = vst [vmem:[%s2915 + $0x60] sm:$0xff] %v2924
                  %v2926 = vld [vmem:[%s2914 + $0x28] sm:$0xff]
                  %2927 = vst [vmem:[%s2915 + $0x68] sm:$0xff] %v2926
                  %v2928 = vld [vmem:[%s2914 + $0x30] sm:$0xff]
                  %2929 = vst [vmem:[%s2915 + $0x90] sm:$0xff] %v2928
                  %v2930 = vld [vmem:[%s2914 + $0x38] sm:$0xff]
                  %2931 = vst [vmem:[%s2915 + $0x98] sm:$0xff] %v2930
                  %v2932 = vld [vmem:[%s2914 + $0x40] sm:$0xff]
                  %2933 = vst [vmem:[%s2915 + $0xc0] sm:$0xff] %v2932
                  %v2934 = vld [vmem:[%s2914 + $0x48] sm:$0xff]
                  %2935 = vst [vmem:[%s2915 + $0xc8] sm:$0xff] %v2934
                  %v2936 = vld [vmem:[%s2914 + $0x50] sm:$0xff]
                  %2937 = vst [vmem:[%s2915 + $0xf0] sm:$0xff] %v2936
                  %v2938 = vld [vmem:[%s2914 + $0x58] sm:$0xff]
                  %2939 = vst [vmem:[%s2915 + $0xf8] sm:$0xff] %v2938
                  %v2940 = vld [vmem:[%s2914 + $0x60] sm:$0xff]
                  %2941 = vst [vmem:[%s2915 + $0x120] sm:$0xff] %v2940
                  %v2942 = vld [vmem:[%s2914 + $0x68] sm:$0xff]
                  %2943 = vst [vmem:[%s2915 + $0x128] sm:$0xff] %v2942
                  %v2944 = vld [vmem:[%s2914 + $0x70] sm:$0xff]
                  %2945 = vst [vmem:[%s2915 + $0x150] sm:$0xff] %v2944
                  %v2946 = vld [vmem:[%s2914 + $0x78] sm:$0xff]
                  %2947 = vst [vmem:[%s2915 + $0x158] sm:$0xff] %v2946
                  %v2948 = vld [vmem:[%s2914 + $0x80] sm:$0xff]
                  %2949 = vst [vmem:[%s2915 + $0x180] sm:$0xff] %v2948
                  %v2950 = vld [vmem:[%s2914 + $0x88] sm:$0xff]
                  %2951 = vst [vmem:[%s2915 + $0x188] sm:$0xff] %v2950
                  %v2952 = vld [vmem:[%s2914 + $0x90] sm:$0xff]
                  %2953 = vst [vmem:[%s2915 + $0x1b0] sm:$0xff] %v2952
                  %v2954 = vld [vmem:[%s2914 + $0x98] sm:$0xff]
                  %2955 = vst [vmem:[%s2915 + $0x1b8] sm:$0xff] %v2954
                  %v2956 = vld [vmem:[%s2914 + $0xa0] sm:$0xff]
                  %2957 = vst [vmem:[%s2915 + $0x1e0] sm:$0xff] %v2956
                  %v2958 = vld [vmem:[%s2914 + $0xa8] sm:$0xff]
                  %2959 = vst [vmem:[%s2915 + $0x1e8] sm:$0xff] %v2958
                  %v2960 = vld [vmem:[%s2914 + $0xb0] sm:$0xff]
                  %2961 = vst [vmem:[%s2915 + $0x210] sm:$0xff] %v2960
                  %v2962 = vld [vmem:[%s2914 + $0xb8] sm:$0xff]
                  %2963 = vst [vmem:[%s2915 + $0x218] sm:$0xff] %v2962
                  %v2964 = vld [vmem:[%s2914 + $0xc0] sm:$0xff]
                  %2965 = vst [vmem:[%s2915 + $0x240] sm:$0xff] %v2964
                  %v2966 = vld [vmem:[%s2914 + $0xc8] sm:$0xff]
                  %2967 = vst [vmem:[%s2915 + $0x248] sm:$0xff] %v2966
                  %v2968 = vld [vmem:[%s2914 + $0xd0] sm:$0xff]
                  %2969 = vst [vmem:[%s2915 + $0x270] sm:$0xff] %v2968
                  %v2970 = vld [vmem:[%s2914 + $0xd8] sm:$0xff]
                  %2971 = vst [vmem:[%s2915 + $0x278] sm:$0xff] %v2970
                  %v2972 = vld [vmem:[%s2914 + $0xe0] sm:$0xff]
                  %2973 = vst [vmem:[%s2915 + $0x2a0] sm:$0xff] %v2972
                  %v2974 = vld [vmem:[%s2914 + $0xe8] sm:$0xff]
                  %2975 = vst [vmem:[%s2915 + $0x2a8] sm:$0xff] %v2974
                  %v2976 = vld [vmem:[%s2914 + $0xf0] sm:$0xff]
                  %2977 = vst [vmem:[%s2915 + $0x2d0] sm:$0xff] %v2976
                  %v2978 = vld [vmem:[%s2914 + $0xf8] sm:$0xff]
                  %2979 = vst [vmem:[%s2915 + $0x2d8] sm:$0xff] %v2978
                $region121: #{conv3d_aware.1} parent=115 // loop_footer
                  %s2913 = sadd.s32 1, %s2909
                $region122: #{conv3d_aware.1} parent=115 // loop_footer_branch
                  %2908 = sbr.rel target = $region118
                $region123: #{conv3d_aware.1} parent=115 // loop_exit
                  _
              $region116: #{conv3d_aware.1} parent=100 // pred_fallthru
                _
              // Predicated region
              $region124: #{conv3d_aware.1} parent=100 // pred_check
                _
              $region125: #{conv3d_aware.1} parent=100 // pred_check_branch
                %2981 = sbr.rel target = $region127
              $region126: #{conv3d_aware.1} parent=100 // pred_region
                _
              $region127: #{conv3d_aware.1} parent=100 // pred_fallthru
                _
            $region101: #{conv3d_aware.1} parent=96 // pred_fallthru
              _
            // Predicated region
            $region102: #{conv3d_aware.1} parent=96 // pred_check
              _
            $region103: #{conv3d_aware.1} parent=96 // pred_check_branch
              %2831 = sbr.rel target = $region105
            $region104: #{conv3d_aware.1} parent=96 // pred_region
              %s2833 = ssub.s32 256, 1
              loop: start=0, step=1, limit=1
              $region106: #{conv3d_aware.1} parent=104 // loop_pre_header
                _
              $region107: #{conv3d_aware.1} parent=104 // loop_header
                %s2835 = sphi 0, %s2839
                %p2836 = scmp.ge.s32.totalorder %s2835, 1
                %s2840 = sphi %s2817, %s2817
                %s2841 = sphi %s2825, %s2825
              $region108: #{conv3d_aware.1} parent=104 // loop_header_branch
                %2838 = sbr.rel (%p2836) target = $region112
              $region109: #{conv3d_aware.1} parent=104 // loop_body
                %v2842 = vld [vmem:[%s2840] sm:%s2833]
                %2843 = vst [vmem:[%s2841] sm:%s2833] %v2842
                %v2844 = vld [vmem:[%s2840 + $0x8] sm:%s2833]
                %2845 = vst [vmem:[%s2841 + $0x8] sm:%s2833] %v2844
                %v2846 = vld [vmem:[%s2840 + $0x10] sm:%s2833]
                %2847 = vst [vmem:[%s2841 + $0x30] sm:%s2833] %v2846
                %v2848 = vld [vmem:[%s2840 + $0x18] sm:%s2833]
                %2849 = vst [vmem:[%s2841 + $0x38] sm:%s2833] %v2848
                %v2850 = vld [vmem:[%s2840 + $0x20] sm:%s2833]
                %2851 = vst [vmem:[%s2841 + $0x60] sm:%s2833] %v2850
                %v2852 = vld [vmem:[%s2840 + $0x28] sm:%s2833]
                %2853 = vst [vmem:[%s2841 + $0x68] sm:%s2833] %v2852
                %v2854 = vld [vmem:[%s2840 + $0x30] sm:%s2833]
                %2855 = vst [vmem:[%s2841 + $0x90] sm:%s2833] %v2854
                %v2856 = vld [vmem:[%s2840 + $0x38] sm:%s2833]
                %2857 = vst [vmem:[%s2841 + $0x98] sm:%s2833] %v2856
                %v2858 = vld [vmem:[%s2840 + $0x40] sm:%s2833]
                %2859 = vst [vmem:[%s2841 + $0xc0] sm:%s2833] %v2858
                %v2860 = vld [vmem:[%s2840 + $0x48] sm:%s2833]
                %2861 = vst [vmem:[%s2841 + $0xc8] sm:%s2833] %v2860
                %v2862 = vld [vmem:[%s2840 + $0x50] sm:%s2833]
                %2863 = vst [vmem:[%s2841 + $0xf0] sm:%s2833] %v2862
                %v2864 = vld [vmem:[%s2840 + $0x58] sm:%s2833]
                %2865 = vst [vmem:[%s2841 + $0xf8] sm:%s2833] %v2864
                %v2866 = vld [vmem:[%s2840 + $0x60] sm:%s2833]
                %2867 = vst [vmem:[%s2841 + $0x120] sm:%s2833] %v2866
                %v2868 = vld [vmem:[%s2840 + $0x68] sm:%s2833]
                %2869 = vst [vmem:[%s2841 + $0x128] sm:%s2833] %v2868
                %v2870 = vld [vmem:[%s2840 + $0x70] sm:%s2833]
                %2871 = vst [vmem:[%s2841 + $0x150] sm:%s2833] %v2870
                %v2872 = vld [vmem:[%s2840 + $0x78] sm:%s2833]
                %2873 = vst [vmem:[%s2841 + $0x158] sm:%s2833] %v2872
                %v2874 = vld [vmem:[%s2840 + $0x80] sm:%s2833]
                %2875 = vst [vmem:[%s2841 + $0x180] sm:%s2833] %v2874
                %v2876 = vld [vmem:[%s2840 + $0x88] sm:%s2833]
                %2877 = vst [vmem:[%s2841 + $0x188] sm:%s2833] %v2876
                %v2878 = vld [vmem:[%s2840 + $0x90] sm:%s2833]
                %2879 = vst [vmem:[%s2841 + $0x1b0] sm:%s2833] %v2878
                %v2880 = vld [vmem:[%s2840 + $0x98] sm:%s2833]
                %2881 = vst [vmem:[%s2841 + $0x1b8] sm:%s2833] %v2880
                %v2882 = vld [vmem:[%s2840 + $0xa0] sm:%s2833]
                %2883 = vst [vmem:[%s2841 + $0x1e0] sm:%s2833] %v2882
                %v2884 = vld [vmem:[%s2840 + $0xa8] sm:%s2833]
                %2885 = vst [vmem:[%s2841 + $0x1e8] sm:%s2833] %v2884
                %v2886 = vld [vmem:[%s2840 + $0xb0] sm:%s2833]
                %2887 = vst [vmem:[%s2841 + $0x210] sm:%s2833] %v2886
                %v2888 = vld [vmem:[%s2840 + $0xb8] sm:%s2833]
                %2889 = vst [vmem:[%s2841 + $0x218] sm:%s2833] %v2888
                %v2890 = vld [vmem:[%s2840 + $0xc0] sm:%s2833]
                %2891 = vst [vmem:[%s2841 + $0x240] sm:%s2833] %v2890
                %v2892 = vld [vmem:[%s2840 + $0xc8] sm:%s2833]
                %2893 = vst [vmem:[%s2841 + $0x248] sm:%s2833] %v2892
                %v2894 = vld [vmem:[%s2840 + $0xd0] sm:%s2833]
                %2895 = vst [vmem:[%s2841 + $0x270] sm:%s2833] %v2894
                %v2896 = vld [vmem:[%s2840 + $0xd8] sm:%s2833]
                %2897 = vst [vmem:[%s2841 + $0x278] sm:%s2833] %v2896
                %v2898 = vld [vmem:[%s2840 + $0xe0] sm:%s2833]
                %2899 = vst [vmem:[%s2841 + $0x2a0] sm:%s2833] %v2898
                %v2900 = vld [vmem:[%s2840 + $0xe8] sm:%s2833]
                %2901 = vst [vmem:[%s2841 + $0x2a8] sm:%s2833] %v2900
                %v2902 = vld [vmem:[%s2840 + $0xf0] sm:%s2833]
                %2903 = vst [vmem:[%s2841 + $0x2d0] sm:%s2833] %v2902
                %v2904 = vld [vmem:[%s2840 + $0xf8] sm:%s2833]
                %2905 = vst [vmem:[%s2841 + $0x2d8] sm:%s2833] %v2904
              $region110: #{conv3d_aware.1} parent=104 // loop_footer
                %s2839 = sadd.s32 1, %s2835
              $region111: #{conv3d_aware.1} parent=104 // loop_footer_branch
                %2834 = sbr.rel target = $region107
              $region112: #{conv3d_aware.1} parent=104 // loop_exit
                _
            $region105: #{conv3d_aware.1} parent=96 // pred_fallthru
              _
          $region97: #{conv3d_aware.1} parent=92 // pred_fallthru
            _
          %2982 = vnop
        $region93: #{conv3d_aware.1} parent=84 // pred_fallthru
          _
      $region85: #{conv3d_aware.1} parent=5 // pred_fallthru
        _
      %p2983 = scmp.le.s32.totalorder 2, %s13
      // Predicated region
      $region128: #{conv3d_aware.1} parent=5 // pred_check
        %p2984 = pneg %p2983
      $region129: #{conv3d_aware.1} parent=5 // pred_check_branch
        %2986 = sbr.rel (%p2984) target = $region131
      $region130: #{conv3d_aware.1} parent=5 // pred_region
        %s2987 = ssub.s32 %s13, 2
        // Predicated region
        $region132: #{conv3d_aware.1} parent=130 // pred_check
          %p2988 = pneg %p244
        $region133: #{conv3d_aware.1} parent=130 // pred_check_branch
          %2990 = sbr.rel (%p2988) target = $region135
        $region134: #{conv3d_aware.1} parent=130 // pred_region
          %s2991 = sand.u32 %s229, 1
          %s2992 = sand.u32 %s229, 1
          %s2993 = smul.addr %s2992, 256
          %s2994 = scalar_lea.vmem [#allocation3], %s2993
        $region135: #{conv3d_aware.1} parent=130 // pred_fallthru
          _
      $region131: #{conv3d_aware.1} parent=5 // pred_fallthru
        _
    $region6: #{conv3d_aware.1} parent=1 // loop_footer
      %s17 = sadd.s32 1, %s13
    $region7: #{conv3d_aware.1} parent=1 // loop_footer_branch
      %12 = sbr.rel target = $region3
    $region8: #{conv3d_aware.1} parent=1 // loop_exit
      _

</llo_original>
